<compile_context>
chip_gen: v7x
topology: tpu7x:2x2x1
jax: 0.10.0
libtpu: 0.0.40
codegen_flags: <defaults>
</compile_context>

<pallas_src>
import math
import functools

import jax
import jax.numpy as jnp
from jax import lax
from jax.experimental import pallas as pl
from jax.experimental.pallas import tpu as pltpu


def _layernorm(x, gamma, beta, eps=1e-5):
    # Fused single-pass statistics: var = E[x^2] - mean^2 (two independent
    # reductions instead of two serialized ones).
    d = x.shape[-1]
    inv_d = 1.0 / d
    mean = jnp.sum(x, axis=-1, keepdims=True) * inv_d
    ex2 = jnp.sum(x * x, axis=-1, keepdims=True) * inv_d
    var = ex2 - mean * mean
    inv = lax.rsqrt(var + eps)
    return (x - mean) * inv * gamma + beta


def encoder_kernel(src_ref,
                   wqkv_t_ref, bqkv_ref,
                   wout_t_ref, bout_ref,
                   g1_ref, bt1_ref,
                   w1_t_ref, b1_ref,
                   w2_t_ref, b2_ref,
                   g2_ref, bt2_ref,
                   out_ref,
                   ctx_ref,                      # VMEM scratch [bb*S, D] bf16
                   *, nhead, seq_len, f_chunk):
    M, D = src_ref.shape                          # M = bb * S
    S = seq_len
    bb = M // S
    head_dim = D // nhead
    F = w1_t_ref.shape[1]
    n_f_chunks = F // f_chunk

    x = src_ref[...]                              # [M, D] f32
    x_bf = x.astype(jnp.bfloat16)

    # ---- fused QKV projection (scale already folded into Q weights/bias) ----
    # Cast to bf16 once; every consumer is a bf16 MXU operand.
    qkv = (jnp.dot(x_bf, wqkv_t_ref[...], preferred_element_type=jnp.float32)
           + bqkv_ref[...]).astype(jnp.bfloat16)  # [M, 3D] bf16

    # ---- multi-head self-attention ------------------------------------------
    # Each head writes its context into a lane slice of the bf16 scratch; the
    # per-iteration temporaries (scores, probs) die at the scratch store.
    for b in range(bb):                           # bb is small and static
        r = b * S
        for h in range(nhead):
            c = h * head_dim
            qh = qkv[r:r + S, 0 * D + c:0 * D + c + head_dim]     # [S, Dh] bf16
            kh = qkv[r:r + S, 1 * D + c:1 * D + c + head_dim]
            vh = qkv[r:r + S, 2 * D + c:2 * D + c + head_dim]
            # QK^T with the transpose absorbed into the MXU contraction.
            scores = lax.dot_general(qh, kh, (((1,), (1,)), ((), ())),
                                     preferred_element_type=jnp.float32)  # [S,S]
            m = jnp.max(scores, axis=-1, keepdims=True)
            e = jnp.exp(scores - m)
            p = (e * pl.reciprocal(jnp.sum(e, axis=-1, keepdims=True),
                                   approx=True)).astype(jnp.bfloat16)
            ctx_ref[r:r + S, c:c + head_dim] = jnp.dot(
                p, vh, preferred_element_type=jnp.float32).astype(jnp.bfloat16)

    # One full-width output projection (feeds the whole MXU depth once).
    attn_out = jnp.dot(ctx_ref[...], wout_t_ref[...],
                       preferred_element_type=jnp.float32) + bout_ref[...]

    # ---- residual + LayerNorm 1 (dropout = identity in eval) ---------------
    x1 = _layernorm(x + attn_out, g1_ref[...], bt1_ref[...])
    x1_bf = x1.astype(jnp.bfloat16)

    # ---- feedforward, tiled over F: never materialize [M, F] f32 ------------
    ff = jnp.zeros((M, D), jnp.float32)
    for j in range(n_f_chunks):                   # static chunk loop
        c = j * f_chunk
        h1 = (jnp.dot(x1_bf, w1_t_ref[:, c:c + f_chunk],
                      preferred_element_type=jnp.float32)
              + b1_ref[:, c:c + f_chunk])
        h1 = jnp.maximum(h1, 0.0).astype(jnp.bfloat16)
        ff = ff + jnp.dot(h1, w2_t_ref[c:c + f_chunk, :],
                          preferred_element_type=jnp.float32)

    # ---- residual + LayerNorm 2 ---------------------------------------------
    out_ref[...] = _layernorm(x1 + ff + b2_ref[...], g2_ref[...], bt2_ref[...])


def _pick_f_chunk(F, target=512):
    """Largest divisor of F that is <= target (FFN hidden-dim tile)."""
    if F <= target:
        return F
    for c in range(target, 0, -1):
        if F % c == 0:
            return c
    return F


def _auto_batch_block(B, S, D, F):
    """Pick bb = batches per grid step.

    Goals (perf review): keep >= 2 grid steps so the pipeline overlaps DMA
    with compute and "parallel" semantics can use both v7x TensorCores; keep
    the rough per-step f32 working set well inside the VMEM budget; otherwise
    feed the MXU as many rows (bb*S) per step as possible.  bb*S must be a
    multiple of 8 whenever bb < B (block-tiling rule).
    """
    budget = 12 * 1024 * 1024            # ~1/4 of the 48 MiB limit we request
    fc = _pick_f_chunk(F)
    best = 1
    for bb in range(1, max(1, B // 2) + 1):
        if B % bb:
            continue
        if bb < B and (bb * S) % 8:
            continue
        rows = bb * S
        # f32 x/attn_out/x1/ff (4 slabs) + bf16 qkv + ctx + one head's scores
        # + one f32 FFN chunk.
        live = rows * (4 * 4 * D + 2 * 4 * D) + S * S * 4 + rows * 4 * fc
        if live <= budget:
            best = bb
    return best


def time_series_transformer_encoder(src, params, nhead, batch_block=None):
    """src: [B, S, D] float32 -> [B, S, D] float32 (eval-mode forward)."""
    B, S, D = src.shape
    F = params["w1_t"].shape[1]
    assert D % nhead == 0
    head_dim = D // nhead

    bb = _auto_batch_block(B, S, D, F) if batch_block is None else batch_block
    assert B % bb == 0, "batch must be divisible by the batch block"
    if bb < B and (bb * S) % 8 != 0:
        bb = B                              # can't tile rows by 8 -> single step
    f_chunk = _pick_f_chunk(F)

    src_flat = src.reshape(B * S, D)        # batch*seq -> matmul M dimension
    kernel = functools.partial(encoder_kernel, nhead=nhead, seq_len=S,
                               f_chunk=f_chunk)

    # Advisory cost estimate so XLA schedules around the custom call sensibly.
    flops = (2 * B * S * D * 3 * D                       # fused QKV projection
             + 2 * B * nhead * S * S * head_dim * 2      # QK^T and attn @ V
             + 2 * B * S * D * D                         # output projection
             + 2 * B * S * D * F * 2)                    # FFN (two linears)
    transcendentals = B * nhead * S * S                  # softmax exp
    bytes_accessed = int(2 * src.size * src.dtype.itemsize
                         + sum(int(p.size) * p.dtype.itemsize
                               for p in params.values()))

    args = (src_flat,
            params["wqkv_t"], params["bqkv"],
            params["wout_t"], params["bout"],
            params["g1"], params["bt1"],
            params["w1_t"], params["b1"],
            params["w2_t"], params["b2"],
            params["g2"], params["bt2"])

    def build(single_buffer_weights):
        def const_spec(shape):
            idx = lambda i, _n=len(shape): (0,) * _n
            if single_buffer_weights:
                # Weights never change block index -> a second buffer is waste.
                return pl.BlockSpec(shape, idx, pipeline_mode=pl.Buffered(1))
            return pl.BlockSpec(shape, idx)

        return pl.pallas_call(
            kernel,
            out_shape=jax.ShapeDtypeStruct((B * S, D), jnp.float32),
            grid=(B // bb,),
            in_specs=[
                pl.BlockSpec((bb * S, D), lambda i: (i, 0)),    # src (flattened)
                const_spec((D, 3 * D)),                         # wqkv_t (bf16)
                const_spec((1, 3 * D)),                         # bqkv
                const_spec((D, D)),                             # wout_t (bf16)
                const_spec((1, D)),                             # bout
                const_spec((1, D)),                             # norm1 gamma
                const_spec((1, D)),                             # norm1 beta
                const_spec((D, F)),                             # w1_t (bf16)
                const_spec((1, F)),                             # b1
                const_spec((F, D)),                             # w2_t (bf16)
                const_spec((1, D)),                             # b2
                const_spec((1, D)),                             # norm2 gamma
                const_spec((1, D)),                             # norm2 beta
            ],
            out_specs=pl.BlockSpec((bb * S, D), lambda i: (i, 0)),
            scratch_shapes=[pltpu.VMEM((bb * S, D), jnp.bfloat16)],  # head ctx
            compiler_params=pltpu.CompilerParams(
                dimension_semantics=("parallel",),
                # Above every chip's scoped default (16 MiB v5e, 32 MiB
                # v6e/v7x), below v7x's 64 MiB physical.  Re-derive per chip
                # (v6e can go ~100 MiB with larger bb) for production sizes.
                vmem_limit_bytes=48 * 1024 * 1024),
            cost_estimate=pl.CostEstimate(flops=int(flops),
                                          transcendentals=int(transcendentals),
                                          bytes_accessed=bytes_accessed),
        )

    try:
        out_flat = build(True)(*args)
    except Exception:
        # pl.Buffered(1) (single-buffered invariant weights) unsupported on
        # this jax/libtpu build -> fall back to default double-buffering.
        out_flat = build(False)(*args)

    return out_flat.reshape(B, S, D)


def init_params(key, d_model, nhead, dim_feedforward, compute_dtype=jnp.bfloat16):
    ks = jax.random.split(key, 8)
    s = 0.1
    head_dim = d_model // nhead
    scale = 1.0 / math.sqrt(head_dim)

    # PyTorch linear computes x @ W.T + b; we store transposed weights so the
    # kernel does a plain x @ W.  The attention scale is folded into the Q rows
    # of the fused QKV weight/bias (static, so free at runtime).
    wqkv = jax.random.normal(ks[0], (3 * d_model, d_model), jnp.float32) * s
    bqkv = jax.random.normal(ks[1], (3 * d_model,), jnp.float32) * s
    wqkv = wqkv.at[:d_model].multiply(scale)
    bqkv = bqkv.at[:d_model].multiply(scale)

    wout = jax.random.normal(ks[2], (d_model, d_model), jnp.float32) * s
    bout = jax.random.normal(ks[3], (d_model,), jnp.float32) * s
    w1 = jax.random.normal(ks[4], (dim_feedforward, d_model), jnp.float32) * s
    b1 = jax.random.normal(ks[5], (dim_feedforward,), jnp.float32) * s
    w2 = jax.random.normal(ks[6], (d_model, dim_feedforward), jnp.float32) * s
    b2 = jax.random.normal(ks[7], (d_model,), jnp.float32) * s

    return dict(
        wqkv_t=wqkv.T.astype(compute_dtype), bqkv=bqkv.reshape(1, -1),
        wout_t=wout.T.astype(compute_dtype), bout=bout.reshape(1, -1),
        g1=jnp.ones((1, d_model), jnp.float32),
        bt1=jnp.zeros((1, d_model), jnp.float32),
        w1_t=w1.T.astype(compute_dtype), b1=b1.reshape(1, -1),
        w2_t=w2.T.astype(compute_dtype), b2=b2.reshape(1, -1),
        g2=jnp.ones((1, d_model), jnp.float32),
        bt2=jnp.zeros((1, d_model), jnp.float32),
    )


if __name__ == "__main__":
    B, S, D = 2, 8, 32
    NHEAD, DIM_FF = 4, 64

    key = jax.random.PRNGKey(0)
    k_src, k_par = jax.random.split(key)
    src = jax.random.normal(k_src, (B, S, D), jnp.float32)
    params = init_params(k_par, D, NHEAD, DIM_FF)

    out = time_series_transformer_encoder(src, params, NHEAD)
    jax.block_until_ready(out)
    assert out.shape == (B, S, D)
    assert bool(jnp.all(jnp.isfinite(out)))
    print("KERNEL_OK")
</pallas_src>

<mosaic_0001>
module attributes {stable_mosaic.version = 11 : i64} {
  func.func @encoder_kernel(%arg0: i32, %arg1: memref<8x32xf32, #tpu.memory_space<vmem>>, %arg2: memref<32x96xbf16, #tpu.memory_space<vmem>>, %arg3: memref<1x96xf32, #tpu.memory_space<vmem>>, %arg4: memref<32x32xbf16, #tpu.memory_space<vmem>>, %arg5: memref<1x32xf32, #tpu.memory_space<vmem>>, %arg6: memref<1x32xf32, #tpu.memory_space<vmem>>, %arg7: memref<1x32xf32, #tpu.memory_space<vmem>>, %arg8: memref<32x64xbf16, #tpu.memory_space<vmem>>, %arg9: memref<1x64xf32, #tpu.memory_space<vmem>>, %arg10: memref<64x32xbf16, #tpu.memory_space<vmem>>, %arg11: memref<1x32xf32, #tpu.memory_space<vmem>>, %arg12: memref<1x32xf32, #tpu.memory_space<vmem>>, %arg13: memref<1x32xf32, #tpu.memory_space<vmem>>, %arg14: memref<8x32xf32, #tpu.memory_space<vmem>>, %arg15: memref<8x32xbf16, #tpu.memory_space<vmem>>) attributes {dimension_semantics = [#tpu.dimension_semantics<parallel>], iteration_bounds = array<i64: 2>, scalar_prefetch = 0 : i64, scratch_operands = 1 : i64, tpu.core_type = #tpu.core_type<tc>, window_params = [{transform_indices = @transform_0, window_bounds = array<i64: 8, 32>}, {pipeline_mode = #tpu.pipeline_mode<synchronous>, transform_indices = @transform_1, window_bounds = array<i64: 32, 96>}, {pipeline_mode = #tpu.pipeline_mode<synchronous>, transform_indices = @transform_2, window_bounds = array<i64: 1, 96>}, {pipeline_mode = #tpu.pipeline_mode<synchronous>, transform_indices = @transform_3, window_bounds = array<i64: 32, 32>}, {pipeline_mode = #tpu.pipeline_mode<synchronous>, transform_indices = @transform_4, window_bounds = array<i64: 1, 32>}, {pipeline_mode = #tpu.pipeline_mode<synchronous>, transform_indices = @transform_5, window_bounds = array<i64: 1, 32>}, {pipeline_mode = #tpu.pipeline_mode<synchronous>, transform_indices = @transform_6, window_bounds = array<i64: 1, 32>}, {pipeline_mode = #tpu.pipeline_mode<synchronous>, transform_indices = @transform_7, window_bounds = array<i64: 32, 64>}, {pipeline_mode = #tpu.pipeline_mode<synchronous>, transform_indices = @transform_8, window_bounds = array<i64: 1, 64>}, {pipeline_mode = #tpu.pipeline_mode<synchronous>, transform_indices = @transform_9, window_bounds = array<i64: 64, 32>}, {pipeline_mode = #tpu.pipeline_mode<synchronous>, transform_indices = @transform_10, window_bounds = array<i64: 1, 32>}, {pipeline_mode = #tpu.pipeline_mode<synchronous>, transform_indices = @transform_11, window_bounds = array<i64: 1, 32>}, {pipeline_mode = #tpu.pipeline_mode<synchronous>, transform_indices = @transform_12, window_bounds = array<i64: 1, 32>}, {transform_indices = @transform_13, window_bounds = array<i64: 8, 32>}]} {
    %c0 = arith.constant 0 : index
    %c0_0 = arith.constant 0 : index
    %0 = vector.load %arg1[%c0, %c0_0] : memref<8x32xf32, #tpu.memory_space<vmem>>, vector<8x32xf32>
    %1 = arith.truncf %0 : vector<8x32xf32> to vector<8x32xbf16>
    %c0_1 = arith.constant 0 : index
    %c0_2 = arith.constant 0 : index
    %2 = vector.load %arg2[%c0_1, %c0_2] : memref<32x96xbf16, #tpu.memory_space<vmem>>, vector<32x96xbf16>
    %cst = arith.constant dense<0.000000e+00> : vector<8x96xf32>
    %3 = tpu.matmul %1, %2, %cst {dimension_numbers = #tpu.dot_dimension_numbers<[1], [0], [0], [1], [0, 0, 1, 1], [], []>} : vector<8x32xbf16>, vector<32x96xbf16>, vector<8x96xf32> -> vector<8x96xf32>
    %c0_3 = arith.constant 0 : index
    %c0_4 = arith.constant 0 : index
    %4 = vector.load %arg3[%c0_3, %c0_4] : memref<1x96xf32, #tpu.memory_space<vmem>>, vector<1x96xf32>
    %5 = vector.broadcast %4 : vector<1x96xf32> to vector<8x96xf32>
    %6 = arith.addf %3, %5 : vector<8x96xf32>
    %7 = arith.truncf %6 : vector<8x96xf32> to vector<8x96xbf16>
    %8 = vector.extract_strided_slice %7 {offsets = [0, 0], sizes = [8, 8], strides = [1, 1]} : vector<8x96xbf16> to vector<8x8xbf16>
    %9 = vector.extract_strided_slice %7 {offsets = [0, 32], sizes = [8, 8], strides = [1, 1]} : vector<8x96xbf16> to vector<8x8xbf16>
    %10 = vector.extract_strided_slice %7 {offsets = [0, 64], sizes = [8, 8], strides = [1, 1]} : vector<8x96xbf16> to vector<8x8xbf16>
    %cst_5 = arith.constant dense<0.000000e+00> : vector<8x8xf32>
    %11 = tpu.matmul %8, %9, %cst_5 {dimension_numbers = #tpu.dot_dimension_numbers<[1], [1], [0], [0], [0, 0, 1, 0], [], []>} : vector<8x8xbf16>, vector<8x8xbf16>, vector<8x8xf32> -> vector<8x8xf32>
    %cst_6 = arith.constant dense<0xFF800000> : vector<8xf32>
    %12 = vector.multi_reduction <maximumf>, %11, %cst_6 [1] : vector<8x8xf32> to vector<8xf32>
    %13 = vector.shape_cast %12 : vector<8xf32> to vector<8x1xf32>
    %14 = vector.broadcast %13 : vector<8x1xf32> to vector<8x8xf32>
    %15 = arith.subf %11, %14 : vector<8x8xf32>
    %16 = math.exp %15 : vector<8x8xf32>
    %cst_7 = arith.constant dense<0.000000e+00> : vector<8xf32>
    %17 = vector.multi_reduction <add>, %16, %cst_7 [1] : vector<8x8xf32> to vector<8xf32>
    %18 = vector.shape_cast %17 : vector<8xf32> to vector<8x1xf32>
    %19 = tpu.reciprocal %18 {approx = true} : vector<8x1xf32> -> vector<8x1xf32>
    %20 = vector.broadcast %19 : vector<8x1xf32> to vector<8x8xf32>
    %21 = arith.mulf %16, %20 : vector<8x8xf32>
    %22 = arith.truncf %21 : vector<8x8xf32> to vector<8x8xbf16>
    %cst_8 = arith.constant dense<0.000000e+00> : vector<8x8xf32>
    %23 = tpu.matmul %22, %10, %cst_8 {dimension_numbers = #tpu.dot_dimension_numbers<[1], [0], [0], [1], [0, 0, 1, 1], [], []>} : vector<8x8xbf16>, vector<8x8xbf16>, vector<8x8xf32> -> vector<8x8xf32>
    %24 = arith.truncf %23 : vector<8x8xf32> to vector<8x8xbf16>
    %c0_9 = arith.constant 0 : index
    %c0_10 = arith.constant 0 : index
    %25 = vector.load %arg15[%c0_9, %c0_10] : memref<8x32xbf16, #tpu.memory_space<vmem>>, vector<8x8xbf16>
    tpu.vector_store %arg15[%c0_9, %c0_10], %24 {strides = array<i32>} : memref<8x32xbf16, #tpu.memory_space<vmem>>, vector<8x8xbf16>,
    %26 = vector.extract_strided_slice %7 {offsets = [0, 8], sizes = [8, 8], strides = [1, 1]} : vector<8x96xbf16> to vector<8x8xbf16>
    %27 = vector.extract_strided_slice %7 {offsets = [0, 40], sizes = [8, 8], strides = [1, 1]} : vector<8x96xbf16> to vector<8x8xbf16>
    %28 = vector.extract_strided_slice %7 {offsets = [0, 72], sizes = [8, 8], strides = [1, 1]} : vector<8x96xbf16> to vector<8x8xbf16>
    %cst_11 = arith.constant dense<0.000000e+00> : vector<8x8xf32>
    %29 = tpu.matmul %26, %27, %cst_11 {dimension_numbers = #tpu.dot_dimension_numbers<[1], [1], [0], [0], [0, 0, 1, 0], [], []>} : vector<8x8xbf16>, vector<8x8xbf16>, vector<8x8xf32> -> vector<8x8xf32>
    %cst_12 = arith.constant dense<0xFF800000> : vector<8xf32>
    %30 = vector.multi_reduction <maximumf>, %29, %cst_12 [1] : vector<8x8xf32> to vector<8xf32>
    %31 = vector.shape_cast %30 : vector<8xf32> to vector<8x1xf32>
    %32 = vector.broadcast %31 : vector<8x1xf32> to vector<8x8xf32>
    %33 = arith.subf %29, %32 : vector<8x8xf32>
    %34 = math.exp %33 : vector<8x8xf32>
    %cst_13 = arith.constant dense<0.000000e+00> : vector<8xf32>
    %35 = vector.multi_reduction <add>, %34, %cst_13 [1] : vector<8x8xf32> to vector<8xf32>
    %36 = vector.shape_cast %35 : vector<8xf32> to vector<8x1xf32>
    %37 = tpu.reciprocal %36 {approx = true} : vector<8x1xf32> -> vector<8x1xf32>
    %38 = vector.broadcast %37 : vector<8x1xf32> to vector<8x8xf32>
    %39 = arith.mulf %34, %38 : vector<8x8xf32>
    %40 = arith.truncf %39 : vector<8x8xf32> to vector<8x8xbf16>
    %cst_14 = arith.constant dense<0.000000e+00> : vector<8x8xf32>
    %41 = tpu.matmul %40, %28, %cst_14 {dimension_numbers = #tpu.dot_dimension_numbers<[1], [0], [0], [1], [0, 0, 1, 1], [], []>} : vector<8x8xbf16>, vector<8x8xbf16>, vector<8x8xf32> -> vector<8x8xf32>
    %42 = arith.truncf %41 : vector<8x8xf32> to vector<8x8xbf16>
    %c0_15 = arith.constant 0 : index
    %c8 = arith.constant 8 : index
    %43 = vector.load %arg15[%c0_15, %c8] : memref<8x32xbf16, #tpu.memory_space<vmem>>, vector<8x8xbf16>
    tpu.vector_store %arg15[%c0_15, %c8], %42 {strides = array<i32>} : memref<8x32xbf16, #tpu.memory_space<vmem>>, vector<8x8xbf16>,
    %44 = vector.extract_strided_slice %7 {offsets = [0, 16], sizes = [8, 8], strides = [1, 1]} : vector<8x96xbf16> to vector<8x8xbf16>
    %45 = vector.extract_strided_slice %7 {offsets = [0, 48], sizes = [8, 8], strides = [1, 1]} : vector<8x96xbf16> to vector<8x8xbf16>
    %46 = vector.extract_strided_slice %7 {offsets = [0, 80], sizes = [8, 8], strides = [1, 1]} : vector<8x96xbf16> to vector<8x8xbf16>
    %cst_16 = arith.constant dense<0.000000e+00> : vector<8x8xf32>
    %47 = tpu.matmul %44, %45, %cst_16 {dimension_numbers = #tpu.dot_dimension_numbers<[1], [1], [0], [0], [0, 0, 1, 0], [], []>} : vector<8x8xbf16>, vector<8x8xbf16>, vector<8x8xf32> -> vector<8x8xf32>
    %cst_17 = arith.constant dense<0xFF800000> : vector<8xf32>
    %48 = vector.multi_reduction <maximumf>, %47, %cst_17 [1] : vector<8x8xf32> to vector<8xf32>
    %49 = vector.shape_cast %48 : vector<8xf32> to vector<8x1xf32>
    %50 = vector.broadcast %49 : vector<8x1xf32> to vector<8x8xf32>
    %51 = arith.subf %47, %50 : vector<8x8xf32>
    %52 = math.exp %51 : vector<8x8xf32>
    %cst_18 = arith.constant dense<0.000000e+00> : vector<8xf32>
    %53 = vector.multi_reduction <add>, %52, %cst_18 [1] : vector<8x8xf32> to vector<8xf32>
    %54 = vector.shape_cast %53 : vector<8xf32> to vector<8x1xf32>
    %55 = tpu.reciprocal %54 {approx = true} : vector<8x1xf32> -> vector<8x1xf32>
    %56 = vector.broadcast %55 : vector<8x1xf32> to vector<8x8xf32>
    %57 = arith.mulf %52, %56 : vector<8x8xf32>
    %58 = arith.truncf %57 : vector<8x8xf32> to vector<8x8xbf16>
    %cst_19 = arith.constant dense<0.000000e+00> : vector<8x8xf32>
    %59 = tpu.matmul %58, %46, %cst_19 {dimension_numbers = #tpu.dot_dimension_numbers<[1], [0], [0], [1], [0, 0, 1, 1], [], []>} : vector<8x8xbf16>, vector<8x8xbf16>, vector<8x8xf32> -> vector<8x8xf32>
    %60 = arith.truncf %59 : vector<8x8xf32> to vector<8x8xbf16>
    %c0_20 = arith.constant 0 : index
    %c16 = arith.constant 16 : index
    %61 = vector.load %arg15[%c0_20, %c16] : memref<8x32xbf16, #tpu.memory_space<vmem>>, vector<8x8xbf16>
    tpu.vector_store %arg15[%c0_20, %c16], %60 {strides = array<i32>} : memref<8x32xbf16, #tpu.memory_space<vmem>>, vector<8x8xbf16>,
    %62 = vector.extract_strided_slice %7 {offsets = [0, 24], sizes = [8, 8], strides = [1, 1]} : vector<8x96xbf16> to vector<8x8xbf16>
    %63 = vector.extract_strided_slice %7 {offsets = [0, 56], sizes = [8, 8], strides = [1, 1]} : vector<8x96xbf16> to vector<8x8xbf16>
    %64 = vector.extract_strided_slice %7 {offsets = [0, 88], sizes = [8, 8], strides = [1, 1]} : vector<8x96xbf16> to vector<8x8xbf16>
    %cst_21 = arith.constant dense<0.000000e+00> : vector<8x8xf32>
    %65 = tpu.matmul %62, %63, %cst_21 {dimension_numbers = #tpu.dot_dimension_numbers<[1], [1], [0], [0], [0, 0, 1, 0], [], []>} : vector<8x8xbf16>, vector<8x8xbf16>, vector<8x8xf32> -> vector<8x8xf32>
    %cst_22 = arith.constant dense<0xFF800000> : vector<8xf32>
    %66 = vector.multi_reduction <maximumf>, %65, %cst_22 [1] : vector<8x8xf32> to vector<8xf32>
    %67 = vector.shape_cast %66 : vector<8xf32> to vector<8x1xf32>
    %68 = vector.broadcast %67 : vector<8x1xf32> to vector<8x8xf32>
    %69 = arith.subf %65, %68 : vector<8x8xf32>
    %70 = math.exp %69 : vector<8x8xf32>
    %cst_23 = arith.constant dense<0.000000e+00> : vector<8xf32>
    %71 = vector.multi_reduction <add>, %70, %cst_23 [1] : vector<8x8xf32> to vector<8xf32>
    %72 = vector.shape_cast %71 : vector<8xf32> to vector<8x1xf32>
    %73 = tpu.reciprocal %72 {approx = true} : vector<8x1xf32> -> vector<8x1xf32>
    %74 = vector.broadcast %73 : vector<8x1xf32> to vector<8x8xf32>
    %75 = arith.mulf %70, %74 : vector<8x8xf32>
    %76 = arith.truncf %75 : vector<8x8xf32> to vector<8x8xbf16>
    %cst_24 = arith.constant dense<0.000000e+00> : vector<8x8xf32>
    %77 = tpu.matmul %76, %64, %cst_24 {dimension_numbers = #tpu.dot_dimension_numbers<[1], [0], [0], [1], [0, 0, 1, 1], [], []>} : vector<8x8xbf16>, vector<8x8xbf16>, vector<8x8xf32> -> vector<8x8xf32>
    %78 = arith.truncf %77 : vector<8x8xf32> to vector<8x8xbf16>
    %c0_25 = arith.constant 0 : index
    %c24 = arith.constant 24 : index
    %79 = vector.load %arg15[%c0_25, %c24] : memref<8x32xbf16, #tpu.memory_space<vmem>>, vector<8x8xbf16>
    tpu.vector_store %arg15[%c0_25, %c24], %78 {strides = array<i32>} : memref<8x32xbf16, #tpu.memory_space<vmem>>, vector<8x8xbf16>,
    %c0_26 = arith.constant 0 : index
    %c0_27 = arith.constant 0 : index
    %80 = vector.load %arg15[%c0_26, %c0_27] : memref<8x32xbf16, #tpu.memory_space<vmem>>, vector<8x32xbf16>
    %c0_28 = arith.constant 0 : index
    %c0_29 = arith.constant 0 : index
    %81 = vector.load %arg4[%c0_28, %c0_29] : memref<32x32xbf16, #tpu.memory_space<vmem>>, vector<32x32xbf16>
    %cst_30 = arith.constant dense<0.000000e+00> : vector<8x32xf32>
    %82 = tpu.matmul %80, %81, %cst_30 {dimension_numbers = #tpu.dot_dimension_numbers<[1], [0], [0], [1], [0, 0, 1, 1], [], []>} : vector<8x32xbf16>, vector<32x32xbf16>, vector<8x32xf32> -> vector<8x32xf32>
    %c0_31 = arith.constant 0 : index
    %c0_32 = arith.constant 0 : index
    %83 = vector.load %arg5[%c0_31, %c0_32] : memref<1x32xf32, #tpu.memory_space<vmem>>, vector<1x32xf32>
    %84 = vector.broadcast %83 : vector<1x32xf32> to vector<8x32xf32>
    %85 = arith.addf %82, %84 : vector<8x32xf32>
    %86 = arith.addf %0, %85 : vector<8x32xf32>
    %c0_33 = arith.constant 0 : index
    %c0_34 = arith.constant 0 : index
    %87 = vector.load %arg6[%c0_33, %c0_34] : memref<1x32xf32, #tpu.memory_space<vmem>>, vector<1x32xf32>
    %c0_35 = arith.constant 0 : index
    %c0_36 = arith.constant 0 : index
    %88 = vector.load %arg7[%c0_35, %c0_36] : memref<1x32xf32, #tpu.memory_space<vmem>>, vector<1x32xf32>
    %cst_37 = arith.constant dense<0.000000e+00> : vector<8xf32>
    %89 = vector.multi_reduction <add>, %86, %cst_37 [1] : vector<8x32xf32> to vector<8xf32>
    %90 = vector.shape_cast %89 : vector<8xf32> to vector<8x1xf32>
    %cst_38 = arith.constant 3.125000e-02 : f32
    %91 = vector.broadcast %cst_38 : f32 to vector<8x1xf32>
    %92 = arith.mulf %90, %91 : vector<8x1xf32>
    %93 = arith.mulf %86, %86 : vector<8x32xf32>
    %cst_39 = arith.constant dense<0.000000e+00> : vector<8xf32>
    %94 = vector.multi_reduction <add>, %93, %cst_39 [1] : vector<8x32xf32> to vector<8xf32>
    %95 = vector.shape_cast %94 : vector<8xf32> to vector<8x1xf32>
    %cst_40 = arith.constant 3.125000e-02 : f32
    %96 = vector.broadcast %cst_40 : f32 to vector<8x1xf32>
    %97 = arith.mulf %95, %96 : vector<8x1xf32>
    %98 = arith.mulf %92, %92 : vector<8x1xf32>
    %99 = arith.subf %97, %98 : vector<8x1xf32>
    %cst_41 = arith.constant 9.99999974E-6 : f32
    %100 = vector.broadcast %cst_41 : f32 to vector<8x1xf32>
    %101 = arith.addf %99, %100 : vector<8x1xf32>
    %102 = math.rsqrt %101 : vector<8x1xf32>
    %103 = vector.broadcast %92 : vector<8x1xf32> to vector<8x32xf32>
    %104 = arith.subf %86, %103 : vector<8x32xf32>
    %105 = vector.broadcast %102 : vector<8x1xf32> to vector<8x32xf32>
    %106 = arith.mulf %104, %105 : vector<8x32xf32>
    %107 = vector.broadcast %87 : vector<1x32xf32> to vector<8x32xf32>
    %108 = arith.mulf %106, %107 : vector<8x32xf32>
    %109 = vector.broadcast %88 : vector<1x32xf32> to vector<8x32xf32>
    %110 = arith.addf %108, %109 : vector<8x32xf32>
    %111 = arith.truncf %110 : vector<8x32xf32> to vector<8x32xbf16>
    %cst_42 = arith.constant 0.000000e+00 : f32
    %112 = vector.broadcast %cst_42 : f32 to vector<8x32xf32>
    %c0_43 = arith.constant 0 : index
    %c0_44 = arith.constant 0 : index
    %113 = vector.load %arg8[%c0_43, %c0_44] : memref<32x64xbf16, #tpu.memory_space<vmem>>, vector<32x64xbf16>
    %cst_45 = arith.constant dense<0.000000e+00> : vector<8x64xf32>
    %114 = tpu.matmul %111, %113, %cst_45 {dimension_numbers = #tpu.dot_dimension_numbers<[1], [0], [0], [1], [0, 0, 1, 1], [], []>} : vector<8x32xbf16>, vector<32x64xbf16>, vector<8x64xf32> -> vector<8x64xf32>
    %c0_46 = arith.constant 0 : index
    %c0_47 = arith.constant 0 : index
    %115 = vector.load %arg9[%c0_46, %c0_47] : memref<1x64xf32, #tpu.memory_space<vmem>>, vector<1x64xf32>
    %116 = vector.broadcast %115 : vector<1x64xf32> to vector<8x64xf32>
    %117 = arith.addf %114, %116 : vector<8x64xf32>
    %cst_48 = arith.constant 0.000000e+00 : f32
    %118 = vector.broadcast %cst_48 : f32 to vector<8x64xf32>
    %119 = arith.maximumf %117, %118 : vector<8x64xf32>
    %120 = arith.truncf %119 : vector<8x64xf32> to vector<8x64xbf16>
    %c0_49 = arith.constant 0 : index
    %c0_50 = arith.constant 0 : index
    %121 = vector.load %arg10[%c0_49, %c0_50] : memref<64x32xbf16, #tpu.memory_space<vmem>>, vector<64x32xbf16>
    %cst_51 = arith.constant dense<0.000000e+00> : vector<8x32xf32>
    %122 = tpu.matmul %120, %121, %cst_51 {dimension_numbers = #tpu.dot_dimension_numbers<[1], [0], [0], [1], [0, 0, 1, 1], [], []>} : vector<8x64xbf16>, vector<64x32xbf16>, vector<8x32xf32> -> vector<8x32xf32>
    %123 = arith.addf %112, %122 : vector<8x32xf32>
    %124 = arith.addf %110, %123 : vector<8x32xf32>
    %c0_52 = arith.constant 0 : index
    %c0_53 = arith.constant 0 : index
    %125 = vector.load %arg11[%c0_52, %c0_53] : memref<1x32xf32, #tpu.memory_space<vmem>>, vector<1x32xf32>
    %126 = vector.broadcast %125 : vector<1x32xf32> to vector<8x32xf32>
    %127 = arith.addf %124, %126 : vector<8x32xf32>
    %c0_54 = arith.constant 0 : index
    %c0_55 = arith.constant 0 : index
    %128 = vector.load %arg12[%c0_54, %c0_55] : memref<1x32xf32, #tpu.memory_space<vmem>>, vector<1x32xf32>
    %c0_56 = arith.constant 0 : index
    %c0_57 = arith.constant 0 : index
    %129 = vector.load %arg13[%c0_56, %c0_57] : memref<1x32xf32, #tpu.memory_space<vmem>>, vector<1x32xf32>
    %cst_58 = arith.constant dense<0.000000e+00> : vector<8xf32>
    %130 = vector.multi_reduction <add>, %127, %cst_58 [1] : vector<8x32xf32> to vector<8xf32>
    %131 = vector.shape_cast %130 : vector<8xf32> to vector<8x1xf32>
    %cst_59 = arith.constant 3.125000e-02 : f32
    %132 = vector.broadcast %cst_59 : f32 to vector<8x1xf32>
    %133 = arith.mulf %131, %132 : vector<8x1xf32>
    %134 = arith.mulf %127, %127 : vector<8x32xf32>
    %cst_60 = arith.constant dense<0.000000e+00> : vector<8xf32>
    %135 = vector.multi_reduction <add>, %134, %cst_60 [1] : vector<8x32xf32> to vector<8xf32>
    %136 = vector.shape_cast %135 : vector<8xf32> to vector<8x1xf32>
    %cst_61 = arith.constant 3.125000e-02 : f32
    %137 = vector.broadcast %cst_61 : f32 to vector<8x1xf32>
    %138 = arith.mulf %136, %137 : vector<8x1xf32>
    %139 = arith.mulf %133, %133 : vector<8x1xf32>
    %140 = arith.subf %138, %139 : vector<8x1xf32>
    %cst_62 = arith.constant 9.99999974E-6 : f32
    %141 = vector.broadcast %cst_62 : f32 to vector<8x1xf32>
    %142 = arith.addf %140, %141 : vector<8x1xf32>
    %143 = math.rsqrt %142 : vector<8x1xf32>
    %144 = vector.broadcast %133 : vector<8x1xf32> to vector<8x32xf32>
    %145 = arith.subf %127, %144 : vector<8x32xf32>
    %146 = vector.broadcast %143 : vector<8x1xf32> to vector<8x32xf32>
    %147 = arith.mulf %145, %146 : vector<8x32xf32>
    %148 = vector.broadcast %128 : vector<1x32xf32> to vector<8x32xf32>
    %149 = arith.mulf %147, %148 : vector<8x32xf32>
    %150 = vector.broadcast %129 : vector<1x32xf32> to vector<8x32xf32>
    %151 = arith.addf %149, %150 : vector<8x32xf32>
    %c0_63 = arith.constant 0 : index
    %c0_64 = arith.constant 0 : index
    %152 = vector.load %arg14[%c0_63, %c0_64] : memref<8x32xf32, #tpu.memory_space<vmem>>, vector<8x32xf32>
    tpu.vector_store %arg14[%c0_63, %c0_64], %151 {strides = array<i32>} : memref<8x32xf32, #tpu.memory_space<vmem>>, vector<8x32xf32>,
    return
  }
  func.func @transform_0(%arg0: i32) -> (i32, i32) {
    %c0_i32 = arith.constant 0 : i32
    %c0_i32_0 = arith.constant 0 : i32
    return %arg0, %c0_i32 : i32, i32
  }
  func.func @transform_1(%arg0: i32) -> (i32, i32) {
    %c0_i32 = arith.constant 0 : i32
    %c0_i32_0 = arith.constant 0 : i32
    %c0_i32_1 = arith.constant 0 : i32
    return %c0_i32, %c0_i32_0 : i32, i32
  }
  func.func @transform_2(%arg0: i32) -> (i32, i32) {
    %c0_i32 = arith.constant 0 : i32
    %c0_i32_0 = arith.constant 0 : i32
    %c0_i32_1 = arith.constant 0 : i32
    return %c0_i32, %c0_i32_0 : i32, i32
  }
  func.func @transform_3(%arg0: i32) -> (i32, i32) {
    %c0_i32 = arith.constant 0 : i32
    %c0_i32_0 = arith.constant 0 : i32
    %c0_i32_1 = arith.constant 0 : i32
    return %c0_i32, %c0_i32_0 : i32, i32
  }
  func.func @transform_4(%arg0: i32) -> (i32, i32) {
    %c0_i32 = arith.constant 0 : i32
    %c0_i32_0 = arith.constant 0 : i32
    %c0_i32_1 = arith.constant 0 : i32
    return %c0_i32, %c0_i32_0 : i32, i32
  }
  func.func @transform_5(%arg0: i32) -> (i32, i32) {
    %c0_i32 = arith.constant 0 : i32
    %c0_i32_0 = arith.constant 0 : i32
    %c0_i32_1 = arith.constant 0 : i32
    return %c0_i32, %c0_i32_0 : i32, i32
  }
  func.func @transform_6(%arg0: i32) -> (i32, i32) {
    %c0_i32 = arith.constant 0 : i32
    %c0_i32_0 = arith.constant 0 : i32
    %c0_i32_1 = arith.constant 0 : i32
    return %c0_i32, %c0_i32_0 : i32, i32
  }
  func.func @transform_7(%arg0: i32) -> (i32, i32) {
    %c0_i32 = arith.constant 0 : i32
    %c0_i32_0 = arith.constant 0 : i32
    %c0_i32_1 = arith.constant 0 : i32
    return %c0_i32, %c0_i32_0 : i32, i32
  }
  func.func @transform_8(%arg0: i32) -> (i32, i32) {
    %c0_i32 = arith.constant 0 : i32
    %c0_i32_0 = arith.constant 0 : i32
    %c0_i32_1 = arith.constant 0 : i32
    return %c0_i32, %c0_i32_0 : i32, i32
  }
  func.func @transform_9(%arg0: i32) -> (i32, i32) {
    %c0_i32 = arith.constant 0 : i32
    %c0_i32_0 = arith.constant 0 : i32
    %c0_i32_1 = arith.constant 0 : i32
    return %c0_i32, %c0_i32_0 : i32, i32
  }
  func.func @transform_10(%arg0: i32) -> (i32, i32) {
    %c0_i32 = arith.constant 0 : i32
    %c0_i32_0 = arith.constant 0 : i32
    %c0_i32_1 = arith.constant 0 : i32
    return %c0_i32, %c0_i32_0 : i32, i32
  }
  func.func @transform_11(%arg0: i32) -> (i32, i32) {
    %c0_i32 = arith.constant 0 : i32
    %c0_i32_0 = arith.constant 0 : i32
    %c0_i32_1 = arith.constant 0 : i32
    return %c0_i32, %c0_i32_0 : i32, i32
  }
  func.func @transform_12(%arg0: i32) -> (i32, i32) {
    %c0_i32 = arith.constant 0 : i32
    %c0_i32_0 = arith.constant 0 : i32
    %c0_i32_1 = arith.constant 0 : i32
    return %c0_i32, %c0_i32_0 : i32, i32
  }
  func.func @transform_13(%arg0: i32) -> (i32, i32) {
    %c0_i32 = arith.constant 0 : i32
    %c0_i32_0 = arith.constant 0 : i32
    return %arg0, %c0_i32 : i32, i32
  }
}

module attributes {stable_mosaic.version = 11 : i64} {
  func.func @encoder_kernel(%arg0: i32, %arg1: memref<8x32xf32, #tpu.memory_space<vmem>>, %arg2: memref<32x96xbf16, #tpu.memory_space<vmem>>, %arg3: memref<1x96xf32, #tpu.memory_space<vmem>>, %arg4: memref<32x32xbf16, #tpu.memory_space<vmem>>, %arg5: memref<1x32xf32, #tpu.memory_space<vmem>>, %arg6: memref<1x32xf32, #tpu.memory_space<vmem>>, %arg7: memref<1x32xf32, #tpu.memory_space<vmem>>, %arg8: memref<32x64xbf16, #tpu.memory_space<vmem>>, %arg9: memref<1x64xf32, #tpu.memory_space<vmem>>, %arg10: memref<64x32xbf16, #tpu.memory_space<vmem>>, %arg11: memref<1x32xf32, #tpu.memory_space<vmem>>, %arg12: memref<1x32xf32, #tpu.memory_space<vmem>>, %arg13: memref<1x32xf32, #tpu.memory_space<vmem>>, %arg14: memref<8x32xf32, #tpu.memory_space<vmem>>, %arg15: memref<8x32xbf16, #tpu.memory_space<vmem>>) attributes {dimension_semantics = [#tpu.dimension_semantics<parallel>], iteration_bounds = array<i64: 2>, scalar_prefetch = 0 : i64, scratch_operands = 1 : i64, tpu.core_type = #tpu.core_type<tc>, window_params = [{transform_indices = @transform_0, window_bounds = array<i64: 8, 32>}, {pipeline_mode = #tpu.pipeline_mode<synchronous>, transform_indices = @transform_1, window_bounds = array<i64: 32, 96>}, {pipeline_mode = #tpu.pipeline_mode<synchronous>, transform_indices = @transform_2, window_bounds = array<i64: 1, 96>}, {pipeline_mode = #tpu.pipeline_mode<synchronous>, transform_indices = @transform_3, window_bounds = array<i64: 32, 32>}, {pipeline_mode = #tpu.pipeline_mode<synchronous>, transform_indices = @transform_4, window_bounds = array<i64: 1, 32>}, {pipeline_mode = #tpu.pipeline_mode<synchronous>, transform_indices = @transform_5, window_bounds = array<i64: 1, 32>}, {pipeline_mode = #tpu.pipeline_mode<synchronous>, transform_indices = @transform_6, window_bounds = array<i64: 1, 32>}, {pipeline_mode = #tpu.pipeline_mode<synchronous>, transform_indices = @transform_7, window_bounds = array<i64: 32, 64>}, {pipeline_mode = #tpu.pipeline_mode<synchronous>, transform_indices = @transform_8, window_bounds = array<i64: 1, 64>}, {pipeline_mode = #tpu.pipeline_mode<synchronous>, transform_indices = @transform_9, window_bounds = array<i64: 64, 32>}, {pipeline_mode = #tpu.pipeline_mode<synchronous>, transform_indices = @transform_10, window_bounds = array<i64: 1, 32>}, {pipeline_mode = #tpu.pipeline_mode<synchronous>, transform_indices = @transform_11, window_bounds = array<i64: 1, 32>}, {pipeline_mode = #tpu.pipeline_mode<synchronous>, transform_indices = @transform_12, window_bounds = array<i64: 1, 32>}, {transform_indices = @transform_13, window_bounds = array<i64: 8, 32>}]} {
    %c0 = arith.constant 0 : index
    %c0_0 = arith.constant 0 : index
    %0 = vector.load %arg1[%c0, %c0_0] : memref<8x32xf32, #tpu.memory_space<vmem>>, vector<8x32xf32>
    %1 = arith.truncf %0 : vector<8x32xf32> to vector<8x32xbf16>
    %c0_1 = arith.constant 0 : index
    %c0_2 = arith.constant 0 : index
    %2 = vector.load %arg2[%c0_1, %c0_2] : memref<32x96xbf16, #tpu.memory_space<vmem>>, vector<32x96xbf16>
    %cst = arith.constant dense<0.000000e+00> : vector<8x96xf32>
    %3 = tpu.matmul %1, %2, %cst {dimension_numbers = #tpu.dot_dimension_numbers<[1], [0], [0], [1], [0, 0, 1, 1], [], []>} : vector<8x32xbf16>, vector<32x96xbf16>, vector<8x96xf32> -> vector<8x96xf32>
    %c0_3 = arith.constant 0 : index
    %c0_4 = arith.constant 0 : index
    %4 = vector.load %arg3[%c0_3, %c0_4] : memref<1x96xf32, #tpu.memory_space<vmem>>, vector<1x96xf32>
    %5 = vector.broadcast %4 : vector<1x96xf32> to vector<8x96xf32>
    %6 = arith.addf %3, %5 : vector<8x96xf32>
    %7 = arith.truncf %6 : vector<8x96xf32> to vector<8x96xbf16>
    %8 = vector.extract_strided_slice %7 {offsets = [0, 0], sizes = [8, 8], strides = [1, 1]} : vector<8x96xbf16> to vector<8x8xbf16>
    %9 = vector.extract_strided_slice %7 {offsets = [0, 32], sizes = [8, 8], strides = [1, 1]} : vector<8x96xbf16> to vector<8x8xbf16>
    %10 = vector.extract_strided_slice %7 {offsets = [0, 64], sizes = [8, 8], strides = [1, 1]} : vector<8x96xbf16> to vector<8x8xbf16>
    %cst_5 = arith.constant dense<0.000000e+00> : vector<8x8xf32>
    %11 = tpu.matmul %8, %9, %cst_5 {dimension_numbers = #tpu.dot_dimension_numbers<[1], [1], [0], [0], [0, 0, 1, 0], [], []>} : vector<8x8xbf16>, vector<8x8xbf16>, vector<8x8xf32> -> vector<8x8xf32>
    %cst_6 = arith.constant dense<0xFF800000> : vector<8xf32>
    %12 = vector.multi_reduction <maximumf>, %11, %cst_6 [1] : vector<8x8xf32> to vector<8xf32>
    %13 = vector.shape_cast %12 : vector<8xf32> to vector<8x1xf32>
    %14 = vector.broadcast %13 : vector<8x1xf32> to vector<8x8xf32>
    %15 = arith.subf %11, %14 : vector<8x8xf32>
    %16 = math.exp %15 : vector<8x8xf32>
    %cst_7 = arith.constant dense<0.000000e+00> : vector<8xf32>
    %17 = vector.multi_reduction <add>, %16, %cst_7 [1] : vector<8x8xf32> to vector<8xf32>
    %18 = vector.shape_cast %17 : vector<8xf32> to vector<8x1xf32>
    %19 = tpu.reciprocal %18 {approx = true} : vector<8x1xf32> -> vector<8x1xf32>
    %20 = vector.broadcast %19 : vector<8x1xf32> to vector<8x8xf32>
    %21 = arith.mulf %16, %20 : vector<8x8xf32>
    %22 = arith.truncf %21 : vector<8x8xf32> to vector<8x8xbf16>
    %cst_8 = arith.constant dense<0.000000e+00> : vector<8x8xf32>
    %23 = tpu.matmul %22, %10, %cst_8 {dimension_numbers = #tpu.dot_dimension_numbers<[1], [0], [0], [1], [0, 0, 1, 1], [], []>} : vector<8x8xbf16>, vector<8x8xbf16>, vector<8x8xf32> -> vector<8x8xf32>
    %24 = arith.truncf %23 : vector<8x8xf32> to vector<8x8xbf16>
    %c0_9 = arith.constant 0 : index
    %c0_10 = arith.constant 0 : index
    %25 = vector.load %arg15[%c0_9, %c0_10] : memref<8x32xbf16, #tpu.memory_space<vmem>>, vector<8x8xbf16>
    tpu.vector_store %arg15[%c0_9, %c0_10], %24 {strides = array<i32>} : memref<8x32xbf16, #tpu.memory_space<vmem>>, vector<8x8xbf16>,
    %26 = vector.extract_strided_slice %7 {offsets = [0, 8], sizes = [8, 8], strides = [1, 1]} : vector<8x96xbf16> to vector<8x8xbf16>
    %27 = vector.extract_strided_slice %7 {offsets = [0, 40], sizes = [8, 8], strides = [1, 1]} : vector<8x96xbf16> to vector<8x8xbf16>
    %28 = vector.extract_strided_slice %7 {offsets = [0, 72], sizes = [8, 8], strides = [1, 1]} : vector<8x96xbf16> to vector<8x8xbf16>
    %cst_11 = arith.constant dense<0.000000e+00> : vector<8x8xf32>
    %29 = tpu.matmul %26, %27, %cst_11 {dimension_numbers = #tpu.dot_dimension_numbers<[1], [1], [0], [0], [0, 0, 1, 0], [], []>} : vector<8x8xbf16>, vector<8x8xbf16>, vector<8x8xf32> -> vector<8x8xf32>
    %cst_12 = arith.constant dense<0xFF800000> : vector<8xf32>
    %30 = vector.multi_reduction <maximumf>, %29, %cst_12 [1] : vector<8x8xf32> to vector<8xf32>
    %31 = vector.shape_cast %30 : vector<8xf32> to vector<8x1xf32>
    %32 = vector.broadcast %31 : vector<8x1xf32> to vector<8x8xf32>
    %33 = arith.subf %29, %32 : vector<8x8xf32>
    %34 = math.exp %33 : vector<8x8xf32>
    %cst_13 = arith.constant dense<0.000000e+00> : vector<8xf32>
    %35 = vector.multi_reduction <add>, %34, %cst_13 [1] : vector<8x8xf32> to vector<8xf32>
    %36 = vector.shape_cast %35 : vector<8xf32> to vector<8x1xf32>
    %37 = tpu.reciprocal %36 {approx = true} : vector<8x1xf32> -> vector<8x1xf32>
    %38 = vector.broadcast %37 : vector<8x1xf32> to vector<8x8xf32>
    %39 = arith.mulf %34, %38 : vector<8x8xf32>
    %40 = arith.truncf %39 : vector<8x8xf32> to vector<8x8xbf16>
    %cst_14 = arith.constant dense<0.000000e+00> : vector<8x8xf32>
    %41 = tpu.matmul %40, %28, %cst_14 {dimension_numbers = #tpu.dot_dimension_numbers<[1], [0], [0], [1], [0, 0, 1, 1], [], []>} : vector<8x8xbf16>, vector<8x8xbf16>, vector<8x8xf32> -> vector<8x8xf32>
    %42 = arith.truncf %41 : vector<8x8xf32> to vector<8x8xbf16>
    %c0_15 = arith.constant 0 : index
    %c8 = arith.constant 8 : index
    %43 = vector.load %arg15[%c0_15, %c8] : memref<8x32xbf16, #tpu.memory_space<vmem>>, vector<8x8xbf16>
    tpu.vector_store %arg15[%c0_15, %c8], %42 {strides = array<i32>} : memref<8x32xbf16, #tpu.memory_space<vmem>>, vector<8x8xbf16>,
    %44 = vector.extract_strided_slice %7 {offsets = [0, 16], sizes = [8, 8], strides = [1, 1]} : vector<8x96xbf16> to vector<8x8xbf16>
    %45 = vector.extract_strided_slice %7 {offsets = [0, 48], sizes = [8, 8], strides = [1, 1]} : vector<8x96xbf16> to vector<8x8xbf16>
    %46 = vector.extract_strided_slice %7 {offsets = [0, 80], sizes = [8, 8], strides = [1, 1]} : vector<8x96xbf16> to vector<8x8xbf16>
    %cst_16 = arith.constant dense<0.000000e+00> : vector<8x8xf32>
    %47 = tpu.matmul %44, %45, %cst_16 {dimension_numbers = #tpu.dot_dimension_numbers<[1], [1], [0], [0], [0, 0, 1, 0], [], []>} : vector<8x8xbf16>, vector<8x8xbf16>, vector<8x8xf32> -> vector<8x8xf32>
    %cst_17 = arith.constant dense<0xFF800000> : vector<8xf32>
    %48 = vector.multi_reduction <maximumf>, %47, %cst_17 [1] : vector<8x8xf32> to vector<8xf32>
    %49 = vector.shape_cast %48 : vector<8xf32> to vector<8x1xf32>
    %50 = vector.broadcast %49 : vector<8x1xf32> to vector<8x8xf32>
    %51 = arith.subf %47, %50 : vector<8x8xf32>
    %52 = math.exp %51 : vector<8x8xf32>
    %cst_18 = arith.constant dense<0.000000e+00> : vector<8xf32>
    %53 = vector.multi_reduction <add>, %52, %cst_18 [1] : vector<8x8xf32> to vector<8xf32>
    %54 = vector.shape_cast %53 : vector<8xf32> to vector<8x1xf32>
    %55 = tpu.reciprocal %54 {approx = true} : vector<8x1xf32> -> vector<8x1xf32>
    %56 = vector.broadcast %55 : vector<8x1xf32> to vector<8x8xf32>
    %57 = arith.mulf %52, %56 : vector<8x8xf32>
    %58 = arith.truncf %57 : vector<8x8xf32> to vector<8x8xbf16>
    %cst_19 = arith.constant dense<0.000000e+00> : vector<8x8xf32>
    %59 = tpu.matmul %58, %46, %cst_19 {dimension_numbers = #tpu.dot_dimension_numbers<[1], [0], [0], [1], [0, 0, 1, 1], [], []>} : vector<8x8xbf16>, vector<8x8xbf16>, vector<8x8xf32> -> vector<8x8xf32>
    %60 = arith.truncf %59 : vector<8x8xf32> to vector<8x8xbf16>
    %c0_20 = arith.constant 0 : index
    %c16 = arith.constant 16 : index
    %61 = vector.load %arg15[%c0_20, %c16] : memref<8x32xbf16, #tpu.memory_space<vmem>>, vector<8x8xbf16>
    tpu.vector_store %arg15[%c0_20, %c16], %60 {strides = array<i32>} : memref<8x32xbf16, #tpu.memory_space<vmem>>, vector<8x8xbf16>,
    %62 = vector.extract_strided_slice %7 {offsets = [0, 24], sizes = [8, 8], strides = [1, 1]} : vector<8x96xbf16> to vector<8x8xbf16>
    %63 = vector.extract_strided_slice %7 {offsets = [0, 56], sizes = [8, 8], strides = [1, 1]} : vector<8x96xbf16> to vector<8x8xbf16>
    %64 = vector.extract_strided_slice %7 {offsets = [0, 88], sizes = [8, 8], strides = [1, 1]} : vector<8x96xbf16> to vector<8x8xbf16>
    %cst_21 = arith.constant dense<0.000000e+00> : vector<8x8xf32>
    %65 = tpu.matmul %62, %63, %cst_21 {dimension_numbers = #tpu.dot_dimension_numbers<[1], [1], [0], [0], [0, 0, 1, 0], [], []>} : vector<8x8xbf16>, vector<8x8xbf16>, vector<8x8xf32> -> vector<8x8xf32>
    %cst_22 = arith.constant dense<0xFF800000> : vector<8xf32>
    %66 = vector.multi_reduction <maximumf>, %65, %cst_22 [1] : vector<8x8xf32> to vector<8xf32>
    %67 = vector.shape_cast %66 : vector<8xf32> to vector<8x1xf32>
    %68 = vector.broadcast %67 : vector<8x1xf32> to vector<8x8xf32>
    %69 = arith.subf %65, %68 : vector<8x8xf32>
    %70 = math.exp %69 : vector<8x8xf32>
    %cst_23 = arith.constant dense<0.000000e+00> : vector<8xf32>
    %71 = vector.multi_reduction <add>, %70, %cst_23 [1] : vector<8x8xf32> to vector<8xf32>
    %72 = vector.shape_cast %71 : vector<8xf32> to vector<8x1xf32>
    %73 = tpu.reciprocal %72 {approx = true} : vector<8x1xf32> -> vector<8x1xf32>
    %74 = vector.broadcast %73 : vector<8x1xf32> to vector<8x8xf32>
    %75 = arith.mulf %70, %74 : vector<8x8xf32>
    %76 = arith.truncf %75 : vector<8x8xf32> to vector<8x8xbf16>
    %cst_24 = arith.constant dense<0.000000e+00> : vector<8x8xf32>
    %77 = tpu.matmul %76, %64, %cst_24 {dimension_numbers = #tpu.dot_dimension_numbers<[1], [0], [0], [1], [0, 0, 1, 1], [], []>} : vector<8x8xbf16>, vector<8x8xbf16>, vector<8x8xf32> -> vector<8x8xf32>
    %78 = arith.truncf %77 : vector<8x8xf32> to vector<8x8xbf16>
    %c0_25 = arith.constant 0 : index
    %c24 = arith.constant 24 : index
    %79 = vector.load %arg15[%c0_25, %c24] : memref<8x32xbf16, #tpu.memory_space<vmem>>, vector<8x8xbf16>
    tpu.vector_store %arg15[%c0_25, %c24], %78 {strides = array<i32>} : memref<8x32xbf16, #tpu.memory_space<vmem>>, vector<8x8xbf16>,
    %c0_26 = arith.constant 0 : index
    %c0_27 = arith.constant 0 : index
    %80 = vector.load %arg15[%c0_26, %c0_27] : memref<8x32xbf16, #tpu.memory_space<vmem>>, vector<8x32xbf16>
    %c0_28 = arith.constant 0 : index
    %c0_29 = arith.constant 0 : index
    %81 = vector.load %arg4[%c0_28, %c0_29] : memref<32x32xbf16, #tpu.memory_space<vmem>>, vector<32x32xbf16>
    %cst_30 = arith.constant dense<0.000000e+00> : vector<8x32xf32>
    %82 = tpu.matmul %80, %81, %cst_30 {dimension_numbers = #tpu.dot_dimension_numbers<[1], [0], [0], [1], [0, 0, 1, 1], [], []>} : vector<8x32xbf16>, vector<32x32xbf16>, vector<8x32xf32> -> vector<8x32xf32>
    %c0_31 = arith.constant 0 : index
    %c0_32 = arith.constant 0 : index
    %83 = vector.load %arg5[%c0_31, %c0_32] : memref<1x32xf32, #tpu.memory_space<vmem>>, vector<1x32xf32>
    %84 = vector.broadcast %83 : vector<1x32xf32> to vector<8x32xf32>
    %85 = arith.addf %82, %84 : vector<8x32xf32>
    %86 = arith.addf %0, %85 : vector<8x32xf32>
    %c0_33 = arith.constant 0 : index
    %c0_34 = arith.constant 0 : index
    %87 = vector.load %arg6[%c0_33, %c0_34] : memref<1x32xf32, #tpu.memory_space<vmem>>, vector<1x32xf32>
    %c0_35 = arith.constant 0 : index
    %c0_36 = arith.constant 0 : index
    %88 = vector.load %arg7[%c0_35, %c0_36] : memref<1x32xf32, #tpu.memory_space<vmem>>, vector<1x32xf32>
    %cst_37 = arith.constant dense<0.000000e+00> : vector<8xf32>
    %89 = vector.multi_reduction <add>, %86, %cst_37 [1] : vector<8x32xf32> to vector<8xf32>
    %90 = vector.shape_cast %89 : vector<8xf32> to vector<8x1xf32>
    %cst_38 = arith.constant 3.125000e-02 : f32
    %91 = vector.broadcast %cst_38 : f32 to vector<8x1xf32>
    %92 = arith.mulf %90, %91 : vector<8x1xf32>
    %93 = arith.mulf %86, %86 : vector<8x32xf32>
    %cst_39 = arith.constant dense<0.000000e+00> : vector<8xf32>
    %94 = vector.multi_reduction <add>, %93, %cst_39 [1] : vector<8x32xf32> to vector<8xf32>
    %95 = vector.shape_cast %94 : vector<8xf32> to vector<8x1xf32>
    %cst_40 = arith.constant 3.125000e-02 : f32
    %96 = vector.broadcast %cst_40 : f32 to vector<8x1xf32>
    %97 = arith.mulf %95, %96 : vector<8x1xf32>
    %98 = arith.mulf %92, %92 : vector<8x1xf32>
    %99 = arith.subf %97, %98 : vector<8x1xf32>
    %cst_41 = arith.constant 9.99999974E-6 : f32
    %100 = vector.broadcast %cst_41 : f32 to vector<8x1xf32>
    %101 = arith.addf %99, %100 : vector<8x1xf32>
    %102 = math.rsqrt %101 : vector<8x1xf32>
    %103 = vector.broadcast %92 : vector<8x1xf32> to vector<8x32xf32>
    %104 = arith.subf %86, %103 : vector<8x32xf32>
    %105 = vector.broadcast %102 : vector<8x1xf32> to vector<8x32xf32>
    %106 = arith.mulf %104, %105 : vector<8x32xf32>
    %107 = vector.broadcast %87 : vector<1x32xf32> to vector<8x32xf32>
    %108 = arith.mulf %106, %107 : vector<8x32xf32>
    %109 = vector.broadcast %88 : vector<1x32xf32> to vector<8x32xf32>
    %110 = arith.addf %108, %109 : vector<8x32xf32>
    %111 = arith.truncf %110 : vector<8x32xf32> to vector<8x32xbf16>
    %cst_42 = arith.constant 0.000000e+00 : f32
    %112 = vector.broadcast %cst_42 : f32 to vector<8x32xf32>
    %c0_43 = arith.constant 0 : index
    %c0_44 = arith.constant 0 : index
    %113 = vector.load %arg8[%c0_43, %c0_44] : memref<32x64xbf16, #tpu.memory_space<vmem>>, vector<32x64xbf16>
    %cst_45 = arith.constant dense<0.000000e+00> : vector<8x64xf32>
    %114 = tpu.matmul %111, %113, %cst_45 {dimension_numbers = #tpu.dot_dimension_numbers<[1], [0], [0], [1], [0, 0, 1, 1], [], []>} : vector<8x32xbf16>, vector<32x64xbf16>, vector<8x64xf32> -> vector<8x64xf32>
    %c0_46 = arith.constant 0 : index
    %c0_47 = arith.constant 0 : index
    %115 = vector.load %arg9[%c0_46, %c0_47] : memref<1x64xf32, #tpu.memory_space<vmem>>, vector<1x64xf32>
    %116 = vector.broadcast %115 : vector<1x64xf32> to vector<8x64xf32>
    %117 = arith.addf %114, %116 : vector<8x64xf32>
    %cst_48 = arith.constant 0.000000e+00 : f32
    %118 = vector.broadcast %cst_48 : f32 to vector<8x64xf32>
    %119 = arith.maximumf %117, %118 : vector<8x64xf32>
    %120 = arith.truncf %119 : vector<8x64xf32> to vector<8x64xbf16>
    %c0_49 = arith.constant 0 : index
    %c0_50 = arith.constant 0 : index
    %121 = vector.load %arg10[%c0_49, %c0_50] : memref<64x32xbf16, #tpu.memory_space<vmem>>, vector<64x32xbf16>
    %cst_51 = arith.constant dense<0.000000e+00> : vector<8x32xf32>
    %122 = tpu.matmul %120, %121, %cst_51 {dimension_numbers = #tpu.dot_dimension_numbers<[1], [0], [0], [1], [0, 0, 1, 1], [], []>} : vector<8x64xbf16>, vector<64x32xbf16>, vector<8x32xf32> -> vector<8x32xf32>
    %123 = arith.addf %112, %122 : vector<8x32xf32>
    %124 = arith.addf %110, %123 : vector<8x32xf32>
    %c0_52 = arith.constant 0 : index
    %c0_53 = arith.constant 0 : index
    %125 = vector.load %arg11[%c0_52, %c0_53] : memref<1x32xf32, #tpu.memory_space<vmem>>, vector<1x32xf32>
    %126 = vector.broadcast %125 : vector<1x32xf32> to vector<8x32xf32>
    %127 = arith.addf %124, %126 : vector<8x32xf32>
    %c0_54 = arith.constant 0 : index
    %c0_55 = arith.constant 0 : index
    %128 = vector.load %arg12[%c0_54, %c0_55] : memref<1x32xf32, #tpu.memory_space<vmem>>, vector<1x32xf32>
    %c0_56 = arith.constant 0 : index
    %c0_57 = arith.constant 0 : index
    %129 = vector.load %arg13[%c0_56, %c0_57] : memref<1x32xf32, #tpu.memory_space<vmem>>, vector<1x32xf32>
    %cst_58 = arith.constant dense<0.000000e+00> : vector<8xf32>
    %130 = vector.multi_reduction <add>, %127, %cst_58 [1] : vector<8x32xf32> to vector<8xf32>
    %131 = vector.shape_cast %130 : vector<8xf32> to vector<8x1xf32>
    %cst_59 = arith.constant 3.125000e-02 : f32
    %132 = vector.broadcast %cst_59 : f32 to vector<8x1xf32>
    %133 = arith.mulf %131, %132 : vector<8x1xf32>
    %134 = arith.mulf %127, %127 : vector<8x32xf32>
    %cst_60 = arith.constant dense<0.000000e+00> : vector<8xf32>
    %135 = vector.multi_reduction <add>, %134, %cst_60 [1] : vector<8x32xf32> to vector<8xf32>
    %136 = vector.shape_cast %135 : vector<8xf32> to vector<8x1xf32>
    %cst_61 = arith.constant 3.125000e-02 : f32
    %137 = vector.broadcast %cst_61 : f32 to vector<8x1xf32>
    %138 = arith.mulf %136, %137 : vector<8x1xf32>
    %139 = arith.mulf %133, %133 : vector<8x1xf32>
    %140 = arith.subf %138, %139 : vector<8x1xf32>
    %cst_62 = arith.constant 9.99999974E-6 : f32
    %141 = vector.broadcast %cst_62 : f32 to vector<8x1xf32>
    %142 = arith.addf %140, %141 : vector<8x1xf32>
    %143 = math.rsqrt %142 : vector<8x1xf32>
    %144 = vector.broadcast %133 : vector<8x1xf32> to vector<8x32xf32>
    %145 = arith.subf %127, %144 : vector<8x32xf32>
    %146 = vector.broadcast %143 : vector<8x1xf32> to vector<8x32xf32>
    %147 = arith.mulf %145, %146 : vector<8x32xf32>
    %148 = vector.broadcast %128 : vector<1x32xf32> to vector<8x32xf32>
    %149 = arith.mulf %147, %148 : vector<8x32xf32>
    %150 = vector.broadcast %129 : vector<1x32xf32> to vector<8x32xf32>
    %151 = arith.addf %149, %150 : vector<8x32xf32>
    %c0_63 = arith.constant 0 : index
    %c0_64 = arith.constant 0 : index
    %152 = vector.load %arg14[%c0_63, %c0_64] : memref<8x32xf32, #tpu.memory_space<vmem>>, vector<8x32xf32>
    tpu.vector_store %arg14[%c0_63, %c0_64], %151 {strides = array<i32>} : memref<8x32xf32, #tpu.memory_space<vmem>>, vector<8x32xf32>,
    return
  }
  func.func @transform_0(%arg0: i32) -> (i32, i32) {
    %c0_i32 = arith.constant 0 : i32
    %c0_i32_0 = arith.constant 0 : i32
    return %arg0, %c0_i32 : i32, i32
  }
  func.func @transform_1(%arg0: i32) -> (i32, i32) {
    %c0_i32 = arith.constant 0 : i32
    %c0_i32_0 = arith.constant 0 : i32
    %c0_i32_1 = arith.constant 0 : i32
    return %c0_i32, %c0_i32_0 : i32, i32
  }
  func.func @transform_2(%arg0: i32) -> (i32, i32) {
    %c0_i32 = arith.constant 0 : i32
    %c0_i32_0 = arith.constant 0 : i32
    %c0_i32_1 = arith.constant 0 : i32
    return %c0_i32, %c0_i32_0 : i32, i32
  }
  func.func @transform_3(%arg0: i32) -> (i32, i32) {
    %c0_i32 = arith.constant 0 : i32
    %c0_i32_0 = arith.constant 0 : i32
    %c0_i32_1 = arith.constant 0 : i32
    return %c0_i32, %c0_i32_0 : i32, i32
  }
  func.func @transform_4(%arg0: i32) -> (i32, i32) {
    %c0_i32 = arith.constant 0 : i32
    %c0_i32_0 = arith.constant 0 : i32
    %c0_i32_1 = arith.constant 0 : i32
    return %c0_i32, %c0_i32_0 : i32, i32
  }
  func.func @transform_5(%arg0: i32) -> (i32, i32) {
    %c0_i32 = arith.constant 0 : i32
    %c0_i32_0 = arith.constant 0 : i32
    %c0_i32_1 = arith.constant 0 : i32
    return %c0_i32, %c0_i32_0 : i32, i32
  }
  func.func @transform_6(%arg0: i32) -> (i32, i32) {
    %c0_i32 = arith.constant 0 : i32
    %c0_i32_0 = arith.constant 0 : i32
    %c0_i32_1 = arith.constant 0 : i32
    return %c0_i32, %c0_i32_0 : i32, i32
  }
  func.func @transform_7(%arg0: i32) -> (i32, i32) {
    %c0_i32 = arith.constant 0 : i32
    %c0_i32_0 = arith.constant 0 : i32
    %c0_i32_1 = arith.constant 0 : i32
    return %c0_i32, %c0_i32_0 : i32, i32
  }
  func.func @transform_8(%arg0: i32) -> (i32, i32) {
    %c0_i32 = arith.constant 0 : i32
    %c0_i32_0 = arith.constant 0 : i32
    %c0_i32_1 = arith.constant 0 : i32
    return %c0_i32, %c0_i32_0 : i32, i32
  }
  func.func @transform_9(%arg0: i32) -> (i32, i32) {
    %c0_i32 = arith.constant 0 : i32
    %c0_i32_0 = arith.constant 0 : i32
    %c0_i32_1 = arith.constant 0 : i32
    return %c0_i32, %c0_i32_0 : i32, i32
  }
  func.func @transform_10(%arg0: i32) -> (i32, i32) {
    %c0_i32 = arith.constant 0 : i32
    %c0_i32_0 = arith.constant 0 : i32
    %c0_i32_1 = arith.constant 0 : i32
    return %c0_i32, %c0_i32_0 : i32, i32
  }
  func.func @transform_11(%arg0: i32) -> (i32, i32) {
    %c0_i32 = arith.constant 0 : i32
    %c0_i32_0 = arith.constant 0 : i32
    %c0_i32_1 = arith.constant 0 : i32
    return %c0_i32, %c0_i32_0 : i32, i32
  }
  func.func @transform_12(%arg0: i32) -> (i32, i32) {
    %c0_i32 = arith.constant 0 : i32
    %c0_i32_0 = arith.constant 0 : i32
    %c0_i32_1 = arith.constant 0 : i32
    return %c0_i32, %c0_i32_0 : i32, i32
  }
  func.func @transform_13(%arg0: i32) -> (i32, i32) {
    %c0_i32 = arith.constant 0 : i32
    %c0_i32_0 = arith.constant 0 : i32
    return %arg0, %c0_i32 : i32, i32
  }
}

</mosaic_0001>

<llo_original>
// kernel: tpu_custom_call.1
$region0: #{tpu_custom_call.1}
  #allocation0 [shape = 'u32[]', space=smem, size = 0x4, offset = 0x4, fixed_abs, tag = 'smem constant byte address 0x4 - core index']
  #allocation1 [shape = 'u32[144,128]{1,0:T(1,128)}', space=vmem, size = 0x12000, scoped, tag = 'internal scratch']
  #allocation2 [shape = 'bf16[8,32]{1,0:T(8,128)(2,1)}', space=vmem, size = 0x800, scoped, tag = 'scratch operand']
  %s0 = inlined_call_operand.vmem [shape: f32[16,32], index: 0, kind: input, shape index: {}]
  %s1 = inlined_call_operand.vmem [shape: bf16[32,96], index: 1, kind: input, shape index: {}]
  %s2 = inlined_call_operand.vmem [shape: f32[1,96], index: 2, kind: input, shape index: {}]
  %s3 = inlined_call_operand.vmem [shape: bf16[32,32], index: 3, kind: input, shape index: {}]
  %s4 = inlined_call_operand.vmem [shape: f32[1,32], index: 4, kind: input, shape index: {}]
  %s5 = inlined_call_operand.vmem [shape: f32[1,32], index: 5, kind: input, shape index: {}]
  %s6 = inlined_call_operand.vmem [shape: f32[1,32], index: 6, kind: input, shape index: {}]
  %s7 = inlined_call_operand.hbm [shape: bf16[32,64], index: 7, kind: input, shape index: {}]
  %s8 = inlined_call_operand.vmem [shape: f32[1,64], index: 8, kind: input, shape index: {}]
  %s9 = inlined_call_operand.vmem [shape: bf16[64,32], index: 9, kind: input, shape index: {}]
  %s10 = inlined_call_operand.vmem [shape: f32[1,32], index: 10, kind: input, shape index: {}]
  %s11 = inlined_call_operand.vmem [shape: f32[1,32], index: 11, kind: input, shape index: {}]
  %s12 = inlined_call_operand.vmem [shape: f32[1,32], index: 12, kind: input, shape index: {}]
  %s13 = inlined_call_operand.hbm [shape: f32[16,32], index: 13, kind: output, shape index: {}]
  %s14 = sld [smem:[#allocation0]]
  $region89: #{tpu_custom_call.1} parent=0
    _
  %s16 = ssub.s32 1, %s14
  %s17 = scalar_select 0, %s16, %s14
  $region1: #{tpu_custom_call.1} parent=0
    #allocation3 [shape = 'u8[8192]{0}', space=vmem, size = 0x2000, scoped, tag = 'input window, operand 7, single buffered']
    #allocation4 [shape = 's32[2]{0}', space=sflag, size = 0x8, scoped, tag = 'scoped memory for tpu_custom_call.1']
    #allocation5 [shape = 's32[2]{0}', space=sflag, size = 0x8, scoped, tag = 'scoped memory for tpu_custom_call.1']
    #allocation6 [shape = 'u8[8192]{0}', space=vmem, size = 0x2000, scoped, tag = 'output window, operand 0']
    %18 = vsyncpa [#allocation4], 0
    %19 = vsyncpa [#allocation5], 0
    %s20 = scalar_lea.sflag [#allocation5], 1
    %21 = vsyncpa %s20, 0
    loop: start=0, step=1, limit=4
    $region2: #{tpu_custom_call.1} parent=1 // loop_pre_header
      _
    $region3: #{tpu_custom_call.1} parent=1 // loop_header
      %s23 = sphi 0, %s27
      %p24 = scmp.ge.s32.totalorder %s23, 4
      %s33 = sphi 0, %s35
      %s36 = sphi 0, %s33
      %s37 = sphi 0, %s36
      %s53 = sphi 0, %s37
      %s57 = sphi 0, %s57
      %s59 = sphi 0, %s57
      %s60 = sphi 0, %s59
      %s74 = sphi 0, %s60
      %s78 = sphi 0, %s78
      %s80 = sphi 0, %s78
      %s81 = sphi 0, %s80
      %s95 = sphi 0, %s81
      %s99 = sphi 0, %s99
      %s101 = sphi 0, %s99
      %s102 = sphi 0, %s101
      %s116 = sphi 0, %s102
      %s120 = sphi 0, %s120
      %s122 = sphi 0, %s120
      %s123 = sphi 0, %s122
      %s137 = sphi 0, %s123
      %s141 = sphi 0, %s141
      %s143 = sphi 0, %s141
      %s144 = sphi 0, %s143
      %s158 = sphi 0, %s144
      %s162 = sphi 0, %s162
      %s164 = sphi 0, %s162
      %s165 = sphi 0, %s164
      %s179 = sphi 0, %s165
      %s183 = sphi 0, %s183
      %s185 = sphi 0, %s183
      %s186 = sphi 0, %s185
      %s200 = sphi 0, %s186
      %s204 = sphi 0, %s204
      %s206 = sphi 0, %s204
      %s207 = sphi 0, %s206
      %s221 = sphi 0, %s207
      %s225 = sphi 0, %s225
      %s227 = sphi 0, %s225
      %s228 = sphi 0, %s227
      %s242 = sphi 0, %s228
      %s246 = sphi 0, %s246
      %s248 = sphi 0, %s246
      %s249 = sphi 0, %s248
      %s263 = sphi 0, %s249
      %s267 = sphi 0, %s267
      %s269 = sphi 0, %s267
      %s270 = sphi 0, %s269
      %s284 = sphi 0, %s270
      %s288 = sphi 0, %s288
      %s290 = sphi 0, %s288
      %s291 = sphi 0, %s290
      %s305 = sphi 0, %s291
      %s311 = sphi 0, %s313
      %s314 = sphi 0, %s311
      %s315 = sphi 0, %s314
      %s331 = sphi 0, %s315
    $region4: #{tpu_custom_call.1} parent=1 // loop_header_branch
      %26 = sbr.rel (%p24) target = $region8
    $region5: #{tpu_custom_call.1} parent=1 // loop_body
      %s28 = ssub.s32 %s23, 1
      %s29 = ssub.s32 %s23, 2
      %s30 = sadd.s32 %s23, 1
      %s31 = ssub.s32 %s23, %s30
      %p32 = scmp.eq.s32.totalorder %s31, 0
      %s34 = sadd.s32 %s33, 1
      %s35 = scalar_select %p32, %s33, %s34
      %p38 = pneg %p32
      %p39 = scmp.eq.s32.totalorder %s23, 1
      %p40 = por %p38, %p39
      %p41 = scmp.ne.s32.totalorder %s33, %s36
      %p42 = scmp.eq.s32.totalorder %s23, 0
      %p43 = por %p41, %p42
      %p44 = scmp.ne.s32.totalorder %s33, %s36
      %p45 = scmp.eq.s32.totalorder %s28, 1
      %p46 = por %p44, %p45
      %p47 = scmp.ne.s32.totalorder %s36, %s37
      %p48 = scmp.eq.s32.totalorder %s28, 0
      %p49 = por %p47, %p48
      %p50 = scmp.ne.s32.totalorder %s36, %s37
      %p51 = scmp.eq.s32.totalorder %s29, 1
      %p52 = por %p50, %p51
      %p54 = scmp.ne.s32.totalorder %s37, %s53
      %p55 = scmp.eq.s32.totalorder %s29, 0
      %p56 = por %p54, %p55
      %s58 = sadd.s32 %s57, 1
      %p61 = scmp.eq.s32.totalorder %s23, 1
      %p62 = scmp.ne.s32.totalorder %s57, %s59
      %p63 = scmp.eq.s32.totalorder %s23, 0
      %p64 = por %p62, %p63
      %p65 = scmp.ne.s32.totalorder %s57, %s59
      %p66 = scmp.eq.s32.totalorder %s28, 1
      %p67 = por %p65, %p66
      %p68 = scmp.ne.s32.totalorder %s59, %s60
      %p69 = scmp.eq.s32.totalorder %s28, 0
      %p70 = por %p68, %p69
      %p71 = scmp.ne.s32.totalorder %s59, %s60
      %p72 = scmp.eq.s32.totalorder %s29, 1
      %p73 = por %p71, %p72
      %p75 = scmp.ne.s32.totalorder %s60, %s74
      %p76 = scmp.eq.s32.totalorder %s29, 0
      %p77 = por %p75, %p76
      %s79 = sadd.s32 %s78, 1
      %p82 = scmp.eq.s32.totalorder %s23, 1
      %p83 = scmp.ne.s32.totalorder %s78, %s80
      %p84 = scmp.eq.s32.totalorder %s23, 0
      %p85 = por %p83, %p84
      %p86 = scmp.ne.s32.totalorder %s78, %s80
      %p87 = scmp.eq.s32.totalorder %s28, 1
      %p88 = por %p86, %p87
      %p89 = scmp.ne.s32.totalorder %s80, %s81
      %p90 = scmp.eq.s32.totalorder %s28, 0
      %p91 = por %p89, %p90
      %p92 = scmp.ne.s32.totalorder %s80, %s81
      %p93 = scmp.eq.s32.totalorder %s29, 1
      %p94 = por %p92, %p93
      %p96 = scmp.ne.s32.totalorder %s81, %s95
      %p97 = scmp.eq.s32.totalorder %s29, 0
      %p98 = por %p96, %p97
      %s100 = sadd.s32 %s99, 1
      %p103 = scmp.eq.s32.totalorder %s23, 1
      %p104 = scmp.ne.s32.totalorder %s99, %s101
      %p105 = scmp.eq.s32.totalorder %s23, 0
      %p106 = por %p104, %p105
      %p107 = scmp.ne.s32.totalorder %s99, %s101
      %p108 = scmp.eq.s32.totalorder %s28, 1
      %p109 = por %p107, %p108
      %p110 = scmp.ne.s32.totalorder %s101, %s102
      %p111 = scmp.eq.s32.totalorder %s28, 0
      %p112 = por %p110, %p111
      %p113 = scmp.ne.s32.totalorder %s101, %s102
      %p114 = scmp.eq.s32.totalorder %s29, 1
      %p115 = por %p113, %p114
      %p117 = scmp.ne.s32.totalorder %s102, %s116
      %p118 = scmp.eq.s32.totalorder %s29, 0
      %p119 = por %p117, %p118
      %s121 = sadd.s32 %s120, 1
      %p124 = scmp.eq.s32.totalorder %s23, 1
      %p125 = scmp.ne.s32.totalorder %s120, %s122
      %p126 = scmp.eq.s32.totalorder %s23, 0
      %p127 = por %p125, %p126
      %p128 = scmp.ne.s32.totalorder %s120, %s122
      %p129 = scmp.eq.s32.totalorder %s28, 1
      %p130 = por %p128, %p129
      %p131 = scmp.ne.s32.totalorder %s122, %s123
      %p132 = scmp.eq.s32.totalorder %s28, 0
      %p133 = por %p131, %p132
      %p134 = scmp.ne.s32.totalorder %s122, %s123
      %p135 = scmp.eq.s32.totalorder %s29, 1
      %p136 = por %p134, %p135
      %p138 = scmp.ne.s32.totalorder %s123, %s137
      %p139 = scmp.eq.s32.totalorder %s29, 0
      %p140 = por %p138, %p139
      %s142 = sadd.s32 %s141, 1
      %p145 = scmp.eq.s32.totalorder %s23, 1
      %p146 = scmp.ne.s32.totalorder %s141, %s143
      %p147 = scmp.eq.s32.totalorder %s23, 0
      %p148 = por %p146, %p147
      %p149 = scmp.ne.s32.totalorder %s141, %s143
      %p150 = scmp.eq.s32.totalorder %s28, 1
      %p151 = por %p149, %p150
      %p152 = scmp.ne.s32.totalorder %s143, %s144
      %p153 = scmp.eq.s32.totalorder %s28, 0
      %p154 = por %p152, %p153
      %p155 = scmp.ne.s32.totalorder %s143, %s144
      %p156 = scmp.eq.s32.totalorder %s29, 1
      %p157 = por %p155, %p156
      %p159 = scmp.ne.s32.totalorder %s144, %s158
      %p160 = scmp.eq.s32.totalorder %s29, 0
      %p161 = por %p159, %p160
      %s163 = sadd.s32 %s162, 1
      %p166 = scmp.eq.s32.totalorder %s23, 1
      %p167 = scmp.ne.s32.totalorder %s162, %s164
      %p168 = scmp.eq.s32.totalorder %s23, 0
      %p169 = por %p167, %p168
      %p170 = scmp.ne.s32.totalorder %s162, %s164
      %p171 = scmp.eq.s32.totalorder %s28, 1
      %p172 = por %p170, %p171
      %p173 = scmp.ne.s32.totalorder %s164, %s165
      %p174 = scmp.eq.s32.totalorder %s28, 0
      %p175 = por %p173, %p174
      %p176 = scmp.ne.s32.totalorder %s164, %s165
      %p177 = scmp.eq.s32.totalorder %s29, 1
      %p178 = por %p176, %p177
      %p180 = scmp.ne.s32.totalorder %s165, %s179
      %p181 = scmp.eq.s32.totalorder %s29, 0
      %p182 = por %p180, %p181
      %s184 = sadd.s32 %s183, 1
      %p187 = scmp.eq.s32.totalorder %s23, 1
      %p188 = scmp.ne.s32.totalorder %s183, %s185
      %p189 = scmp.eq.s32.totalorder %s23, 0
      %p190 = por %p188, %p189
      %p191 = scmp.ne.s32.totalorder %s183, %s185
      %p192 = scmp.eq.s32.totalorder %s28, 1
      %p193 = por %p191, %p192
      %p194 = scmp.ne.s32.totalorder %s185, %s186
      %p195 = scmp.eq.s32.totalorder %s28, 0
      %p196 = por %p194, %p195
      %p197 = scmp.ne.s32.totalorder %s185, %s186
      %p198 = scmp.eq.s32.totalorder %s29, 1
      %p199 = por %p197, %p198
      %p201 = scmp.ne.s32.totalorder %s186, %s200
      %p202 = scmp.eq.s32.totalorder %s29, 0
      %p203 = por %p201, %p202
      %s205 = sadd.s32 %s204, 1
      %p208 = scmp.eq.s32.totalorder %s23, 1
      %p209 = scmp.ne.s32.totalorder %s204, %s206
      %p210 = scmp.eq.s32.totalorder %s23, 0
      %p211 = por %p209, %p210
      %p212 = scmp.ne.s32.totalorder %s204, %s206
      %p213 = scmp.eq.s32.totalorder %s28, 1
      %p214 = por %p212, %p213
      %p215 = scmp.ne.s32.totalorder %s206, %s207
      %p216 = scmp.eq.s32.totalorder %s28, 0
      %p217 = por %p215, %p216
      %p218 = scmp.ne.s32.totalorder %s206, %s207
      %p219 = scmp.eq.s32.totalorder %s29, 1
      %p220 = por %p218, %p219
      %p222 = scmp.ne.s32.totalorder %s207, %s221
      %p223 = scmp.eq.s32.totalorder %s29, 0
      %p224 = por %p222, %p223
      %s226 = sadd.s32 %s225, 1
      %p229 = scmp.eq.s32.totalorder %s23, 1
      %p230 = scmp.ne.s32.totalorder %s225, %s227
      %p231 = scmp.eq.s32.totalorder %s23, 0
      %p232 = por %p230, %p231
      %p233 = scmp.ne.s32.totalorder %s225, %s227
      %p234 = scmp.eq.s32.totalorder %s28, 1
      %p235 = por %p233, %p234
      %p236 = scmp.ne.s32.totalorder %s227, %s228
      %p237 = scmp.eq.s32.totalorder %s28, 0
      %p238 = por %p236, %p237
      %p239 = scmp.ne.s32.totalorder %s227, %s228
      %p240 = scmp.eq.s32.totalorder %s29, 1
      %p241 = por %p239, %p240
      %p243 = scmp.ne.s32.totalorder %s228, %s242
      %p244 = scmp.eq.s32.totalorder %s29, 0
      %p245 = por %p243, %p244
      %s247 = sadd.s32 %s246, 1
      %p250 = scmp.eq.s32.totalorder %s23, 1
      %p251 = scmp.ne.s32.totalorder %s246, %s248
      %p252 = scmp.eq.s32.totalorder %s23, 0
      %p253 = por %p251, %p252
      %p254 = scmp.ne.s32.totalorder %s246, %s248
      %p255 = scmp.eq.s32.totalorder %s28, 1
      %p256 = por %p254, %p255
      %p257 = scmp.ne.s32.totalorder %s248, %s249
      %p258 = scmp.eq.s32.totalorder %s28, 0
      %p259 = por %p257, %p258
      %p260 = scmp.ne.s32.totalorder %s248, %s249
      %p261 = scmp.eq.s32.totalorder %s29, 1
      %p262 = por %p260, %p261
      %p264 = scmp.ne.s32.totalorder %s249, %s263
      %p265 = scmp.eq.s32.totalorder %s29, 0
      %p266 = por %p264, %p265
      %s268 = sadd.s32 %s267, 1
      %p271 = scmp.eq.s32.totalorder %s23, 1
      %p272 = scmp.ne.s32.totalorder %s267, %s269
      %p273 = scmp.eq.s32.totalorder %s23, 0
      %p274 = por %p272, %p273
      %p275 = scmp.ne.s32.totalorder %s267, %s269
      %p276 = scmp.eq.s32.totalorder %s28, 1
      %p277 = por %p275, %p276
      %p278 = scmp.ne.s32.totalorder %s269, %s270
      %p279 = scmp.eq.s32.totalorder %s28, 0
      %p280 = por %p278, %p279
      %p281 = scmp.ne.s32.totalorder %s269, %s270
      %p282 = scmp.eq.s32.totalorder %s29, 1
      %p283 = por %p281, %p282
      %p285 = scmp.ne.s32.totalorder %s270, %s284
      %p286 = scmp.eq.s32.totalorder %s29, 0
      %p287 = por %p285, %p286
      %s289 = sadd.s32 %s288, 1
      %p292 = scmp.eq.s32.totalorder %s23, 1
      %p293 = scmp.ne.s32.totalorder %s288, %s290
      %p294 = scmp.eq.s32.totalorder %s23, 0
      %p295 = por %p293, %p294
      %p296 = scmp.ne.s32.totalorder %s288, %s290
      %p297 = scmp.eq.s32.totalorder %s28, 1
      %p298 = por %p296, %p297
      %p299 = scmp.ne.s32.totalorder %s290, %s291
      %p300 = scmp.eq.s32.totalorder %s28, 0
      %p301 = por %p299, %p300
      %p302 = scmp.ne.s32.totalorder %s290, %s291
      %p303 = scmp.eq.s32.totalorder %s29, 1
      %p304 = por %p302, %p303
      %p306 = scmp.ne.s32.totalorder %s291, %s305
      %p307 = scmp.eq.s32.totalorder %s29, 0
      %p308 = por %p306, %p307
      %s309 = ssub.s32 %s23, %s30
      %p310 = scmp.eq.s32.totalorder %s309, 0
      %s312 = sadd.s32 %s311, 1
      %s313 = scalar_select %p310, %s311, %s312
      %p316 = pneg %p310
      %p317 = scmp.eq.s32.totalorder %s23, 1
      %p318 = por %p316, %p317
      %p319 = scmp.ne.s32.totalorder %s311, %s314
      %p320 = scmp.eq.s32.totalorder %s23, 0
      %p321 = por %p319, %p320
      %p322 = scmp.ne.s32.totalorder %s311, %s314
      %p323 = scmp.eq.s32.totalorder %s28, 1
      %p324 = por %p322, %p323
      %p325 = scmp.ne.s32.totalorder %s314, %s315
      %p326 = scmp.eq.s32.totalorder %s28, 0
      %p327 = por %p325, %p326
      %p328 = scmp.ne.s32.totalorder %s314, %s315
      %p329 = scmp.eq.s32.totalorder %s29, 1
      %p330 = por %p328, %p329
      %p332 = scmp.ne.s32.totalorder %s315, %s331
      %p333 = scmp.eq.s32.totalorder %s29, 0
      %p334 = por %p332, %p333
      %p335 = scmp.le.s32.totalorder 1, %s23
      %p336 = scmp.lt.s32.totalorder %s23, 3
      %p337 = pnand %p335, %p336
      %p338 = pneg %p337
      // Predicated region
      $region9: #{tpu_custom_call.1} parent=5 // pred_check
        _
      $region10: #{tpu_custom_call.1} parent=5 // pred_check_branch
        %340 = sbr.rel (%p337) target = $region12
      $region11: #{tpu_custom_call.1} parent=5 // pred_region
        %s341 = ssub.s32 %s23, 1
        // Predicated region
        $region13: #{tpu_custom_call.1} parent=11 // pred_check
          %p342 = pneg %p70
        $region14: #{tpu_custom_call.1} parent=11 // pred_check_branch
          %344 = sbr.rel (%p342) target = $region16
        $region15: #{tpu_custom_call.1} parent=11 // pred_region
          _
        $region16: #{tpu_custom_call.1} parent=11 // pred_fallthru
          _
        // Predicated region
        $region17: #{tpu_custom_call.1} parent=11 // pred_check
          %p345 = pneg %p91
        $region18: #{tpu_custom_call.1} parent=11 // pred_check_branch
          %347 = sbr.rel (%p345) target = $region20
        $region19: #{tpu_custom_call.1} parent=11 // pred_region
          _
        $region20: #{tpu_custom_call.1} parent=11 // pred_fallthru
          _
        // Predicated region
        $region21: #{tpu_custom_call.1} parent=11 // pred_check
          %p348 = pneg %p112
        $region22: #{tpu_custom_call.1} parent=11 // pred_check_branch
          %350 = sbr.rel (%p348) target = $region24
        $region23: #{tpu_custom_call.1} parent=11 // pred_region
          _
        $region24: #{tpu_custom_call.1} parent=11 // pred_fallthru
          _
        // Predicated region
        $region25: #{tpu_custom_call.1} parent=11 // pred_check
          %p351 = pneg %p133
        $region26: #{tpu_custom_call.1} parent=11 // pred_check_branch
          %353 = sbr.rel (%p351) target = $region28
        $region27: #{tpu_custom_call.1} parent=11 // pred_region
          _
        $region28: #{tpu_custom_call.1} parent=11 // pred_fallthru
          _
        // Predicated region
        $region29: #{tpu_custom_call.1} parent=11 // pred_check
          %p354 = pneg %p154
        $region30: #{tpu_custom_call.1} parent=11 // pred_check_branch
          %356 = sbr.rel (%p354) target = $region32
        $region31: #{tpu_custom_call.1} parent=11 // pred_region
          _
        $region32: #{tpu_custom_call.1} parent=11 // pred_fallthru
          _
        // Predicated region
        $region33: #{tpu_custom_call.1} parent=11 // pred_check
          %p357 = pneg %p175
        $region34: #{tpu_custom_call.1} parent=11 // pred_check_branch
          %359 = sbr.rel (%p357) target = $region36
        $region35: #{tpu_custom_call.1} parent=11 // pred_region
          _
        $region36: #{tpu_custom_call.1} parent=11 // pred_fallthru
          _
        // Predicated region
        $region37: #{tpu_custom_call.1} parent=11 // pred_check
          %p360 = pneg %p196
        $region38: #{tpu_custom_call.1} parent=11 // pred_check_branch
          %362 = sbr.rel (%p360) target = $region40
        $region39: #{tpu_custom_call.1} parent=11 // pred_region
          %s364 = ssub.s32 256, 256
          %365 = vsyncadd [#allocation4], %s364
          %s366 = sshll.u32 [#allocation3], 4
          %s367 = int_to_ptr.vmem [resolvable:$true] %s366
          %372 = dma.hbm_to_vmem [thread:$0]  %s7, 256, %s367, [#allocation4], 64, 64, 4
        $region40: #{tpu_custom_call.1} parent=11 // pred_fallthru
          _
        // Predicated region
        $region41: #{tpu_custom_call.1} parent=11 // pred_check
          %p373 = pneg %p217
        $region42: #{tpu_custom_call.1} parent=11 // pred_check_branch
          %375 = sbr.rel (%p373) target = $region44
        $region43: #{tpu_custom_call.1} parent=11 // pred_region
          _
        $region44: #{tpu_custom_call.1} parent=11 // pred_fallthru
          _
        // Predicated region
        $region45: #{tpu_custom_call.1} parent=11 // pred_check
          %p376 = pneg %p238
        $region46: #{tpu_custom_call.1} parent=11 // pred_check_branch
          %378 = sbr.rel (%p376) target = $region48
        $region47: #{tpu_custom_call.1} parent=11 // pred_region
          _
        $region48: #{tpu_custom_call.1} parent=11 // pred_fallthru
          _
        // Predicated region
        $region49: #{tpu_custom_call.1} parent=11 // pred_check
          %p379 = pneg %p259
        $region50: #{tpu_custom_call.1} parent=11 // pred_check_branch
          %381 = sbr.rel (%p379) target = $region52
        $region51: #{tpu_custom_call.1} parent=11 // pred_region
          _
        $region52: #{tpu_custom_call.1} parent=11 // pred_fallthru
          _
        // Predicated region
        $region53: #{tpu_custom_call.1} parent=11 // pred_check
          %p382 = pneg %p280
        $region54: #{tpu_custom_call.1} parent=11 // pred_check_branch
          %384 = sbr.rel (%p382) target = $region56
        $region55: #{tpu_custom_call.1} parent=11 // pred_region
          _
        $region56: #{tpu_custom_call.1} parent=11 // pred_fallthru
          _
        // Predicated region
        $region57: #{tpu_custom_call.1} parent=11 // pred_check
          %p385 = pneg %p301
        $region58: #{tpu_custom_call.1} parent=11 // pred_check_branch
          %387 = sbr.rel (%p385) target = $region60
        $region59: #{tpu_custom_call.1} parent=11 // pred_region
          _
        $region60: #{tpu_custom_call.1} parent=11 // pred_fallthru
          _
      $region12: #{tpu_custom_call.1} parent=5 // pred_fallthru
        _
      %p388 = scmp.lt.s32.totalorder %s23, 2
      // Predicated region
      $region61: #{tpu_custom_call.1} parent=5 // pred_check
        %p389 = pneg %p388
      $region62: #{tpu_custom_call.1} parent=5 // pred_check_branch
        %391 = sbr.rel (%p389) target = $region64
      $region63: #{tpu_custom_call.1} parent=5 // pred_region
        // Predicated region
        $region65: #{tpu_custom_call.1} parent=63 // pred_check
          %p392 = pneg %p43
        $region66: #{tpu_custom_call.1} parent=63 // pred_check_branch
          %394 = sbr.rel (%p392) target = $region68
        $region67: #{tpu_custom_call.1} parent=63 // pred_region
          %p395 = scmp.lt.s32.totalorder %s23, 1
          %s396 = scalar_select %p395, %s23, 1
          %s397 = smul.addr %s396, 8
          %s398 = scalar_lea.vmem %s0, %s397
        $region68: #{tpu_custom_call.1} parent=63 // pred_fallthru
          _
      $region64: #{tpu_custom_call.1} parent=5 // pred_fallthru
        _
      %p399 = scmp.le.s32.totalorder 1, %s23
      %p400 = scmp.lt.s32.totalorder %s23, 3
      %p401 = pnand %p399, %p400
      %p402 = pneg %p401
      // Predicated region
      $region69: #{tpu_custom_call.1} parent=5 // pred_check
        _
      $region70: #{tpu_custom_call.1} parent=5 // pred_check_branch
        %404 = sbr.rel (%p401) target = $region72
      $region71: #{tpu_custom_call.1} parent=5 // pred_region
        %s405 = ssub.s32 %s23, 1
        // Predicated region
        $region73: #{tpu_custom_call.1} parent=71 // pred_check
          %p406 = pneg %p196
        $region74: #{tpu_custom_call.1} parent=71 // pred_check_branch
          %408 = sbr.rel (%p406) target = $region76
        $region75: #{tpu_custom_call.1} parent=71 // pred_region
          %409 = dma.done [#allocation4], 256
        $region76: #{tpu_custom_call.1} parent=71 // pred_fallthru
          _
        %p410 = scmp.lt.s32.totalorder %s28, 1
        %s411 = scalar_select %p410, %s28, 1
        %s412 = smul.addr %s411, 8
        %s413 = scalar_lea.vmem %s0, %s412
        %p414 = pneg %p49
        %p415 = pneg %p46
        %p416 = pneg %p70
        %p417 = pneg %p67
        %p418 = pneg %p91
        %p419 = pneg %p88
        %p420 = pneg %p112
        %p421 = pneg %p109
        %p422 = pneg %p133
        %p423 = pneg %p130
        %p424 = pneg %p154
        %p425 = pneg %p151
        %p426 = pneg %p175
        %p427 = pneg %p172
        %p428 = pneg %p196
        %p429 = pneg %p193
        %p430 = pneg %p217
        %p431 = pneg %p214
        %p432 = pneg %p238
        %p433 = pneg %p235
        %p434 = pneg %p259
        %p435 = pneg %p256
        %p436 = pneg %p280
        %p437 = pneg %p277
        %p438 = pneg %p301
        %p439 = pneg %p298
        %p440 = pneg %p327
        %p441 = pneg %p324
        %s442 = sand.u32 %s314, 1
        %s443 = scalar_lea.sflag [#allocation5], %s442
        %s444 = sand.u32 %s314, 1
        %s445 = smul.addr %s444, 8
        %s446 = scalar_lea.vmem [#allocation6], %s445
        %p447 = scmp.lt.s32.totalorder %s28, 1
        %s448 = scalar_select %p447, %s28, 1
        %s449 = smul.addr %s448, 8
        %s450 = scalar_lea.vmem %s0, %s449
        %v452 = vld [vmem:[%s450] sm:$0xff]
        %v453 = vpack.c.bf16 %v452, %v452
        %v454 = vld [vmem:[%s1] sm:$0xf]
        %v455 = vld [vmem:[%s1 + $0x4] sm:$0xf]
        %v456 = vld [vmem:[%s1 + $0x8] sm:$0xf]
        %v457 = vld [vmem:[%s1 + $0xc] sm:$0xf]
        %v458 = vld [vmem:[%s2] sm:$0x1]
        %v460 = vlaneseq
        %v461 = vshrl.u32 %v460, 7
        %v462 = vsub.s32 0, %v461
        %v463 = vrot.slane %v458, %v462
        %v469 = vunpack.c.l.b16 %v454
        %v470 = vunpack.c.l.b16 %v455
        %v471 = vunpack.c.l.b16 %v456
        %v472 = vunpack.c.l.b16 %v457
        %v473 = vpack.c.b16 %v470, %v469
        %v474 = vpack.c.b16 %v472, %v471
        %vm477 = vcmask 261120
        %v479 = vsel %vm477, %v453, 0
        %481 = vmatprep.subr.bf16.mxu0 0
        %482 = vmatpush1.bf16.msra.mxu0 %v473
        %483 = vmatprep.subr.bf16.mxu0 0
        %484 = vmatpush1.bf16.msra.mxu0 %v474
        %485 = vmatprep.subr.bf16.mxu0 0
        %486 = vmatpush1.bf16.msra.mxu0 0
        %487 = vmatprep.subr.bf16.mxu0 0
        %488 = vmatpush1.bf16.msra.mxu0 0
        %489 = vmatprep.subr.bf16.mxu0 0
        %490 = vmatpush1.bf16.msra.mxu0 0
        %491 = vmatprep.subr.bf16.mxu0 0
        %492 = vmatpush1.bf16.msra.mxu0 0
        %493 = vmatprep.subr.bf16.mxu0 0
        %494 = vmatpush1.bf16.msra.mxu0 0
        %495 = vmatprep.subr.bf16.mxu0 0
        %496 = vmatpush1.bf16.msra.mxu0 0
        %497 = vmatprep.subr.bf16.mxu0 0
        %498 = vmatpush1.bf16.msra.mxu0 0
        %499 = vmatprep.subr.bf16.mxu0 0
        %500 = vmatpush1.bf16.msra.mxu0 0
        %501 = vmatprep.subr.bf16.mxu0 0
        %502 = vmatpush1.bf16.msra.mxu0 0
        %503 = vmatprep.subr.bf16.mxu0 0
        %504 = vmatpush1.bf16.msra.mxu0 0
        %505 = vmatprep.subr.bf16.mxu0 0
        %506 = vmatpush1.bf16.msra.mxu0 0
        %507 = vmatprep.subr.bf16.mxu0 0
        %508 = vmatpush1.bf16.msra.mxu0 0
        %509 = vmatprep.subr.bf16.mxu0 0
        %510 = vmatpush1.bf16.msra.mxu0 0
        %511 = vmatprep.subr.bf16.mxu0 0
        %512 = vmatpush1.bf16.msra.mxu0 0
        %513 = vmatprep.mubr.bf16.mxu0 0
        %514 = vmatmul.mubr.bf16.gmra.mrb[0].mxu0 %v479
        %v515 = vpop.f32.mrb[0].mxu0
        %v516 = vadd.f32 %v463, %v515
        %v517 = vpop.f32.mrb[0].mxu0
        %v518 = vpop.f32.mrb[0].mxu0
        %v519 = vpop.f32.mrb[0].mxu0
        %520 = vdwg.mxu0
        %v521 = vpack.c.bf16 %v516, %v516
        %523 = vrot.lane.b32.xlu0 %v521, 96
        %v524 = vpop.permute.xlu0 %523
        %vm525 = vcmask 64512
        %v527 = vsel %vm525, %v521, 0
        %v530 = vsel %vm525, %v524, 0
        %532 = vmatprep.subr.bf16.mxu0 0
        %533 = vmatpush1.bf16.xpose.msra.mxu0 %v530
        %534 = vmatprep.subr.bf16.mxu0 0
        %535 = vmatpush1.bf16.xpose.msra.mxu0 0
        %536 = vmatprep.subr.bf16.mxu0 0
        %537 = vmatpush1.bf16.xpose.msra.mxu0 0
        %538 = vmatprep.subr.bf16.mxu0 0
        %539 = vmatpush1.bf16.xpose.msra.mxu0 0
        %540 = vmatprep.subr.bf16.mxu0 0
        %541 = vmatpush1.bf16.xpose.msra.mxu0 0
        %542 = vmatprep.subr.bf16.mxu0 0
        %543 = vmatpush1.bf16.xpose.msra.mxu0 0
        %544 = vmatprep.subr.bf16.mxu0 0
        %545 = vmatpush1.bf16.xpose.msra.mxu0 0
        %546 = vmatprep.subr.bf16.mxu0 0
        %547 = vmatpush1.bf16.xpose.msra.mxu0 0
        %548 = vmatprep.subr.bf16.mxu0 0
        %549 = vmatpush1.bf16.xpose.msra.mxu0 0
        %550 = vmatprep.subr.bf16.mxu0 0
        %551 = vmatpush1.bf16.xpose.msra.mxu0 0
        %552 = vmatprep.subr.bf16.mxu0 0
        %553 = vmatpush1.bf16.xpose.msra.mxu0 0
        %554 = vmatprep.subr.bf16.mxu0 0
        %555 = vmatpush1.bf16.xpose.msra.mxu0 0
        %556 = vmatprep.subr.bf16.mxu0 0
        %557 = vmatpush1.bf16.xpose.msra.mxu0 0
        %558 = vmatprep.subr.bf16.mxu0 0
        %559 = vmatpush1.bf16.xpose.msra.mxu0 0
        %560 = vmatprep.subr.bf16.mxu0 0
        %561 = vmatpush1.bf16.xpose.msra.mxu0 0
        %562 = vmatprep.subr.bf16.mxu0 0
        %563 = vmatpush1.bf16.xpose.msra.mxu0 0
        %564 = vmatprep.mubr.bf16.mxu0 0
        %565 = vmatmul.mubr.bf16.gmra.mrb[0].mxu0 %v527
        %v566 = vpop.f32.mrb[0].mxu0
        %v567 = vadd.f32 0.0, %v566
        %v568 = vpop.f32.mrb[0].mxu0
        %v569 = vpop.f32.mrb[0].mxu0
        %v570 = vpop.f32.mrb[0].mxu0
        %571 = vdwg.mxu0
        %v572 = vsel %vm525, %v567, -inf
        %573 = vmax.xlane.f32.xlu0 %v572
        %v574 = vpop.xlane.xlu0 %573
        %v575 = vsub.f32 %v567, %v574
        %v576 = vmul.f32 %v575, 1.442695
        %v577 = vpow.pop %v576
        %v578 = vsel %vm525, %v577, 0.0
        %579 = vadd.xlane.f32.xlu0 %v578
        %v580 = vpop.xlane.xlu0 %579
        %v581 = vrcp.pop %v580
        %v582 = vmul.f32 %v577, %v581
        %v583 = vpack.c.bf16 %v582, %v582
        %584 = vrot.lane.b32.xlu0 %v521, 64
        %v585 = vpop.permute.xlu0 %584
        %v587 = vsel %vm525, %v583, 0
        %vm589 = vcmask 1043456
        %v591 = vsel %vm589, %v585, 0
        %593 = vmatprep.subr.bf16.mxu0 0
        %594 = vmatpush1.bf16.msra.mxu0 %v591
        %595 = vmatprep.subr.bf16.mxu0 0
        %596 = vmatpush1.bf16.msra.mxu0 0
        %597 = vmatprep.subr.bf16.mxu0 0
        %598 = vmatpush1.bf16.msra.mxu0 0
        %599 = vmatprep.subr.bf16.mxu0 0
        %600 = vmatpush1.bf16.msra.mxu0 0
        %601 = vmatprep.subr.bf16.mxu0 0
        %602 = vmatpush1.bf16.msra.mxu0 0
        %603 = vmatprep.subr.bf16.mxu0 0
        %604 = vmatpush1.bf16.msra.mxu0 0
        %605 = vmatprep.subr.bf16.mxu0 0
        %606 = vmatpush1.bf16.msra.mxu0 0
        %607 = vmatprep.subr.bf16.mxu0 0
        %608 = vmatpush1.bf16.msra.mxu0 0
        %609 = vmatprep.subr.bf16.mxu0 0
        %610 = vmatpush1.bf16.msra.mxu0 0
        %611 = vmatprep.subr.bf16.mxu0 0
        %612 = vmatpush1.bf16.msra.mxu0 0
        %613 = vmatprep.subr.bf16.mxu0 0
        %614 = vmatpush1.bf16.msra.mxu0 0
        %615 = vmatprep.subr.bf16.mxu0 0
        %616 = vmatpush1.bf16.msra.mxu0 0
        %617 = vmatprep.subr.bf16.mxu0 0
        %618 = vmatpush1.bf16.msra.mxu0 0
        %619 = vmatprep.subr.bf16.mxu0 0
        %620 = vmatpush1.bf16.msra.mxu0 0
        %621 = vmatprep.subr.bf16.mxu0 0
        %622 = vmatpush1.bf16.msra.mxu0 0
        %623 = vmatprep.subr.bf16.mxu0 0
        %624 = vmatpush1.bf16.msra.mxu0 0
        %625 = vmatprep.mubr.bf16.mxu0 0
        %626 = vmatmul.mubr.bf16.gmra.mrb[0].mxu0 %v587
        %v627 = vpop.f32.mrb[0].mxu0
        %v628 = vadd.f32 0.0, %v627
        %v629 = vpop.f32.mrb[0].mxu0
        %v630 = vpop.f32.mrb[0].mxu0
        %v631 = vpop.f32.mrb[0].mxu0
        %632 = vdwg.mxu0
        %v633 = vpack.c.bf16 %v628, %v628
        %vm634 = vcmask 60416
        %635 = vst.msk [vmem:[#allocation2] sm:$0xf] %vm634, %v633
        %636 = vrot.lane.b32.xlu0 %v521, 120
        %v637 = vpop.permute.xlu0 %636
        %638 = vrot.lane.b32.xlu0 %v521, 88
        %v639 = vpop.permute.xlu0 %638
        %v641 = vsel %vm525, %v637, 0
        %v644 = vsel %vm525, %v639, 0
        %646 = vmatprep.subr.bf16.mxu0 0
        %647 = vmatpush1.bf16.xpose.msra.mxu0 %v644
        %648 = vmatprep.subr.bf16.mxu0 0
        %649 = vmatpush1.bf16.xpose.msra.mxu0 0
        %650 = vmatprep.subr.bf16.mxu0 0
        %651 = vmatpush1.bf16.xpose.msra.mxu0 0
        %652 = vmatprep.subr.bf16.mxu0 0
        %653 = vmatpush1.bf16.xpose.msra.mxu0 0
        %654 = vmatprep.subr.bf16.mxu0 0
        %655 = vmatpush1.bf16.xpose.msra.mxu0 0
        %656 = vmatprep.subr.bf16.mxu0 0
        %657 = vmatpush1.bf16.xpose.msra.mxu0 0
        %658 = vmatprep.subr.bf16.mxu0 0
        %659 = vmatpush1.bf16.xpose.msra.mxu0 0
        %660 = vmatprep.subr.bf16.mxu0 0
        %661 = vmatpush1.bf16.xpose.msra.mxu0 0
        %662 = vmatprep.subr.bf16.mxu0 0
        %663 = vmatpush1.bf16.xpose.msra.mxu0 0
        %664 = vmatprep.subr.bf16.mxu0 0
        %665 = vmatpush1.bf16.xpose.msra.mxu0 0
        %666 = vmatprep.subr.bf16.mxu0 0
        %667 = vmatpush1.bf16.xpose.msra.mxu0 0
        %668 = vmatprep.subr.bf16.mxu0 0
        %669 = vmatpush1.bf16.xpose.msra.mxu0 0
        %670 = vmatprep.subr.bf16.mxu0 0
        %671 = vmatpush1.bf16.xpose.msra.mxu0 0
        %672 = vmatprep.subr.bf16.mxu0 0
        %673 = vmatpush1.bf16.xpose.msra.mxu0 0
        %674 = vmatprep.subr.bf16.mxu0 0
        %675 = vmatpush1.bf16.xpose.msra.mxu0 0
        %676 = vmatprep.subr.bf16.mxu0 0
        %677 = vmatpush1.bf16.xpose.msra.mxu0 0
        %678 = vmatprep.mubr.bf16.mxu0 0
        %679 = vmatmul.mubr.bf16.gmra.mrb[0].mxu0 %v641
        %v680 = vpop.f32.mrb[0].mxu0
        %v681 = vadd.f32 0.0, %v680
        %v682 = vpop.f32.mrb[0].mxu0
        %v683 = vpop.f32.mrb[0].mxu0
        %v684 = vpop.f32.mrb[0].mxu0
        %685 = vdwg.mxu0
        %v686 = vsel %vm525, %v681, -inf
        %687 = vmax.xlane.f32.xlu0 %v686
        %v688 = vpop.xlane.xlu0 %687
        %v689 = vsub.f32 %v681, %v688
        %v690 = vmul.f32 %v689, 1.442695
        %v691 = vpow.pop %v690
        %v692 = vsel %vm525, %v691, 0.0
        %693 = vadd.xlane.f32.xlu0 %v692
        %v694 = vpop.xlane.xlu0 %693
        %v695 = vrcp.pop %v694
        %v696 = vmul.f32 %v691, %v695
        %v697 = vpack.c.bf16 %v696, %v696
        %698 = vrot.lane.b32.xlu0 %v521, 56
        %v699 = vpop.permute.xlu0 %698
        %v701 = vsel %vm525, %v697, 0
        %v704 = vsel %vm589, %v699, 0
        %706 = vmatprep.subr.bf16.mxu0 0
        %707 = vmatpush1.bf16.msra.mxu0 %v704
        %708 = vmatprep.subr.bf16.mxu0 0
        %709 = vmatpush1.bf16.msra.mxu0 0
        %710 = vmatprep.subr.bf16.mxu0 0
        %711 = vmatpush1.bf16.msra.mxu0 0
        %712 = vmatprep.subr.bf16.mxu0 0
        %713 = vmatpush1.bf16.msra.mxu0 0
        %714 = vmatprep.subr.bf16.mxu0 0
        %715 = vmatpush1.bf16.msra.mxu0 0
        %716 = vmatprep.subr.bf16.mxu0 0
        %717 = vmatpush1.bf16.msra.mxu0 0
        %718 = vmatprep.subr.bf16.mxu0 0
        %719 = vmatpush1.bf16.msra.mxu0 0
        %720 = vmatprep.subr.bf16.mxu0 0
        %721 = vmatpush1.bf16.msra.mxu0 0
        %722 = vmatprep.subr.bf16.mxu0 0
        %723 = vmatpush1.bf16.msra.mxu0 0
        %724 = vmatprep.subr.bf16.mxu0 0
        %725 = vmatpush1.bf16.msra.mxu0 0
        %726 = vmatprep.subr.bf16.mxu0 0
        %727 = vmatpush1.bf16.msra.mxu0 0
        %728 = vmatprep.subr.bf16.mxu0 0
        %729 = vmatpush1.bf16.msra.mxu0 0
        %730 = vmatprep.subr.bf16.mxu0 0
        %731 = vmatpush1.bf16.msra.mxu0 0
        %732 = vmatprep.subr.bf16.mxu0 0
        %733 = vmatpush1.bf16.msra.mxu0 0
        %734 = vmatprep.subr.bf16.mxu0 0
        %735 = vmatpush1.bf16.msra.mxu0 0
        %736 = vmatprep.subr.bf16.mxu0 0
        %737 = vmatpush1.bf16.msra.mxu0 0
        %738 = vmatprep.mubr.bf16.mxu0 0
        %739 = vmatmul.mubr.bf16.gmra.mrb[0].mxu0 %v701
        %v740 = vpop.f32.mrb[0].mxu0
        %v741 = vadd.f32 0.0, %v740
        %v742 = vpop.f32.mrb[0].mxu0
        %v743 = vpop.f32.mrb[0].mxu0
        %v744 = vpop.f32.mrb[0].mxu0
        %745 = vdwg.mxu0
        %v746 = vpack.c.bf16 %v741, %v741
        %v748 = vunpack.c.l.b16 %v746
        %v749 = vpack.c.b16 %v748, %v748
        %750 = vrot.lane.b32.xlu0 %v749, 8
        %v751 = vpop.permute.xlu0 %750
        %vm753 = vcmask 126016
        %754 = vst.msk [vmem:[#allocation2] sm:$0xf] %vm753, %v751
        %755 = vrot.lane.b32.xlu0 %v521, 112
        %v756 = vpop.permute.xlu0 %755
        %757 = vrot.lane.b32.xlu0 %v521, 80
        %v758 = vpop.permute.xlu0 %757
        %v760 = vsel %vm525, %v756, 0
        %v763 = vsel %vm525, %v758, 0
        %765 = vmatprep.subr.bf16.mxu0 0
        %766 = vmatpush1.bf16.xpose.msra.mxu0 %v763
        %767 = vmatprep.subr.bf16.mxu0 0
        %768 = vmatpush1.bf16.xpose.msra.mxu0 0
        %769 = vmatprep.subr.bf16.mxu0 0
        %770 = vmatpush1.bf16.xpose.msra.mxu0 0
        %771 = vmatprep.subr.bf16.mxu0 0
        %772 = vmatpush1.bf16.xpose.msra.mxu0 0
        %773 = vmatprep.subr.bf16.mxu0 0
        %774 = vmatpush1.bf16.xpose.msra.mxu0 0
        %775 = vmatprep.subr.bf16.mxu0 0
        %776 = vmatpush1.bf16.xpose.msra.mxu0 0
        %777 = vmatprep.subr.bf16.mxu0 0
        %778 = vmatpush1.bf16.xpose.msra.mxu0 0
        %779 = vmatprep.subr.bf16.mxu0 0
        %780 = vmatpush1.bf16.xpose.msra.mxu0 0
        %781 = vmatprep.subr.bf16.mxu0 0
        %782 = vmatpush1.bf16.xpose.msra.mxu0 0
        %783 = vmatprep.subr.bf16.mxu0 0
        %784 = vmatpush1.bf16.xpose.msra.mxu0 0
        %785 = vmatprep.subr.bf16.mxu0 0
        %786 = vmatpush1.bf16.xpose.msra.mxu0 0
        %787 = vmatprep.subr.bf16.mxu0 0
        %788 = vmatpush1.bf16.xpose.msra.mxu0 0
        %789 = vmatprep.subr.bf16.mxu0 0
        %790 = vmatpush1.bf16.xpose.msra.mxu0 0
        %791 = vmatprep.subr.bf16.mxu0 0
        %792 = vmatpush1.bf16.xpose.msra.mxu0 0
        %793 = vmatprep.subr.bf16.mxu0 0
        %794 = vmatpush1.bf16.xpose.msra.mxu0 0
        %795 = vmatprep.subr.bf16.mxu0 0
        %796 = vmatpush1.bf16.xpose.msra.mxu0 0
        %797 = vmatprep.mubr.bf16.mxu0 0
        %798 = vmatmul.mubr.bf16.gmra.mrb[0].mxu0 %v760
        %v799 = vpop.f32.mrb[0].mxu0
        %v800 = vadd.f32 0.0, %v799
        %v801 = vpop.f32.mrb[0].mxu0
        %v802 = vpop.f32.mrb[0].mxu0
        %v803 = vpop.f32.mrb[0].mxu0
        %804 = vdwg.mxu0
        %v805 = vsel %vm525, %v800, -inf
        %806 = vmax.xlane.f32.xlu0 %v805
        %v807 = vpop.xlane.xlu0 %806
        %v808 = vsub.f32 %v800, %v807
        %v809 = vmul.f32 %v808, 1.442695
        %v810 = vpow.pop %v809
        %v811 = vsel %vm525, %v810, 0.0
        %812 = vadd.xlane.f32.xlu0 %v811
        %v813 = vpop.xlane.xlu0 %812
        %v814 = vrcp.pop %v813
        %v815 = vmul.f32 %v810, %v814
        %v816 = vpack.c.bf16 %v815, %v815
        %817 = vrot.lane.b32.xlu0 %v521, 48
        %v818 = vpop.permute.xlu0 %817
        %v820 = vsel %vm525, %v816, 0
        %v823 = vsel %vm589, %v818, 0
        %825 = vmatprep.subr.bf16.mxu0 0
        %826 = vmatpush1.bf16.msra.mxu0 %v823
        %827 = vmatprep.subr.bf16.mxu0 0
        %828 = vmatpush1.bf16.msra.mxu0 0
        %829 = vmatprep.subr.bf16.mxu0 0
        %830 = vmatpush1.bf16.msra.mxu0 0
        %831 = vmatprep.subr.bf16.mxu0 0
        %832 = vmatpush1.bf16.msra.mxu0 0
        %833 = vmatprep.subr.bf16.mxu0 0
        %834 = vmatpush1.bf16.msra.mxu0 0
        %835 = vmatprep.subr.bf16.mxu0 0
        %836 = vmatpush1.bf16.msra.mxu0 0
        %837 = vmatprep.subr.bf16.mxu0 0
        %838 = vmatpush1.bf16.msra.mxu0 0
        %839 = vmatprep.subr.bf16.mxu0 0
        %840 = vmatpush1.bf16.msra.mxu0 0
        %841 = vmatprep.subr.bf16.mxu0 0
        %842 = vmatpush1.bf16.msra.mxu0 0
        %843 = vmatprep.subr.bf16.mxu0 0
        %844 = vmatpush1.bf16.msra.mxu0 0
        %845 = vmatprep.subr.bf16.mxu0 0
        %846 = vmatpush1.bf16.msra.mxu0 0
        %847 = vmatprep.subr.bf16.mxu0 0
        %848 = vmatpush1.bf16.msra.mxu0 0
        %849 = vmatprep.subr.bf16.mxu0 0
        %850 = vmatpush1.bf16.msra.mxu0 0
        %851 = vmatprep.subr.bf16.mxu0 0
        %852 = vmatpush1.bf16.msra.mxu0 0
        %853 = vmatprep.subr.bf16.mxu0 0
        %854 = vmatpush1.bf16.msra.mxu0 0
        %855 = vmatprep.subr.bf16.mxu0 0
        %856 = vmatpush1.bf16.msra.mxu0 0
        %857 = vmatprep.mubr.bf16.mxu0 0
        %858 = vmatmul.mubr.bf16.gmra.mrb[0].mxu0 %v820
        %v859 = vpop.f32.mrb[0].mxu0
        %v860 = vadd.f32 0.0, %v859
        %v861 = vpop.f32.mrb[0].mxu0
        %v862 = vpop.f32.mrb[0].mxu0
        %v863 = vpop.f32.mrb[0].mxu0
        %864 = vdwg.mxu0
        %v865 = vpack.c.bf16 %v860, %v860
        %v867 = vunpack.c.l.b16 %v865
        %v868 = vpack.c.b16 %v867, %v867
        %869 = vrot.lane.b32.xlu0 %v868, 16
        %v870 = vpop.permute.xlu0 %869
        %vm872 = vcmask 191616
        %873 = vst.msk [vmem:[#allocation2] sm:$0xf] %vm872, %v870
        %874 = vrot.lane.b32.xlu0 %v521, 104
        %v875 = vpop.permute.xlu0 %874
        %876 = vrot.lane.b32.xlu0 %v521, 72
        %v877 = vpop.permute.xlu0 %876
        %v879 = vsel %vm525, %v875, 0
        %v882 = vsel %vm525, %v877, 0
        %884 = vmatprep.subr.bf16.mxu0 0
        %885 = vmatpush1.bf16.xpose.msra.mxu0 %v882
        %886 = vmatprep.subr.bf16.mxu0 0
        %887 = vmatpush1.bf16.xpose.msra.mxu0 0
        %888 = vmatprep.subr.bf16.mxu0 0
        %889 = vmatpush1.bf16.xpose.msra.mxu0 0
        %890 = vmatprep.subr.bf16.mxu0 0
        %891 = vmatpush1.bf16.xpose.msra.mxu0 0
        %892 = vmatprep.subr.bf16.mxu0 0
        %893 = vmatpush1.bf16.xpose.msra.mxu0 0
        %894 = vmatprep.subr.bf16.mxu0 0
        %895 = vmatpush1.bf16.xpose.msra.mxu0 0
        %896 = vmatprep.subr.bf16.mxu0 0
        %897 = vmatpush1.bf16.xpose.msra.mxu0 0
        %898 = vmatprep.subr.bf16.mxu0 0
        %899 = vmatpush1.bf16.xpose.msra.mxu0 0
        %900 = vmatprep.subr.bf16.mxu0 0
        %901 = vmatpush1.bf16.xpose.msra.mxu0 0
        %902 = vmatprep.subr.bf16.mxu0 0
        %903 = vmatpush1.bf16.xpose.msra.mxu0 0
        %904 = vmatprep.subr.bf16.mxu0 0
        %905 = vmatpush1.bf16.xpose.msra.mxu0 0
        %906 = vmatprep.subr.bf16.mxu0 0
        %907 = vmatpush1.bf16.xpose.msra.mxu0 0
        %908 = vmatprep.subr.bf16.mxu0 0
        %909 = vmatpush1.bf16.xpose.msra.mxu0 0
        %910 = vmatprep.subr.bf16.mxu0 0
        %911 = vmatpush1.bf16.xpose.msra.mxu0 0
        %912 = vmatprep.subr.bf16.mxu0 0
        %913 = vmatpush1.bf16.xpose.msra.mxu0 0
        %914 = vmatprep.subr.bf16.mxu0 0
        %915 = vmatpush1.bf16.xpose.msra.mxu0 0
        %916 = vmatprep.mubr.bf16.mxu0 0
        %917 = vmatmul.mubr.bf16.gmra.mrb[0].mxu0 %v879
        %v918 = vpop.f32.mrb[0].mxu0
        %v919 = vadd.f32 0.0, %v918
        %v920 = vpop.f32.mrb[0].mxu0
        %v921 = vpop.f32.mrb[0].mxu0
        %v922 = vpop.f32.mrb[0].mxu0
        %923 = vdwg.mxu0
        %v924 = vsel %vm525, %v919, -inf
        %925 = vmax.xlane.f32.xlu0 %v924
        %v926 = vpop.xlane.xlu0 %925
        %v927 = vsub.f32 %v919, %v926
        %v928 = vmul.f32 %v927, 1.442695
        %v929 = vpow.pop %v928
        %v930 = vsel %vm525, %v929, 0.0
        %931 = vadd.xlane.f32.xlu0 %v930
        %v932 = vpop.xlane.xlu0 %931
        %v933 = vrcp.pop %v932
        %v934 = vmul.f32 %v929, %v933
        %v935 = vpack.c.bf16 %v934, %v934
        %936 = vrot.lane.b32.xlu0 %v521, 40
        %v937 = vpop.permute.xlu0 %936
        %v939 = vsel %vm525, %v935, 0
        %v942 = vsel %vm589, %v937, 0
        %944 = vmatprep.subr.bf16.mxu0 0
        %945 = vmatpush1.bf16.msra.mxu0 %v942
        %946 = vmatprep.subr.bf16.mxu0 0
        %947 = vmatpush1.bf16.msra.mxu0 0
        %948 = vmatprep.subr.bf16.mxu0 0
        %949 = vmatpush1.bf16.msra.mxu0 0
        %950 = vmatprep.subr.bf16.mxu0 0
        %951 = vmatpush1.bf16.msra.mxu0 0
        %952 = vmatprep.subr.bf16.mxu0 0
        %953 = vmatpush1.bf16.msra.mxu0 0
        %954 = vmatprep.subr.bf16.mxu0 0
        %955 = vmatpush1.bf16.msra.mxu0 0
        %956 = vmatprep.subr.bf16.mxu0 0
        %957 = vmatpush1.bf16.msra.mxu0 0
        %958 = vmatprep.subr.bf16.mxu0 0
        %959 = vmatpush1.bf16.msra.mxu0 0
        %960 = vmatprep.subr.bf16.mxu0 0
        %961 = vmatpush1.bf16.msra.mxu0 0
        %962 = vmatprep.subr.bf16.mxu0 0
        %963 = vmatpush1.bf16.msra.mxu0 0
        %964 = vmatprep.subr.bf16.mxu0 0
        %965 = vmatpush1.bf16.msra.mxu0 0
        %966 = vmatprep.subr.bf16.mxu0 0
        %967 = vmatpush1.bf16.msra.mxu0 0
        %968 = vmatprep.subr.bf16.mxu0 0
        %969 = vmatpush1.bf16.msra.mxu0 0
        %970 = vmatprep.subr.bf16.mxu0 0
        %971 = vmatpush1.bf16.msra.mxu0 0
        %972 = vmatprep.subr.bf16.mxu0 0
        %973 = vmatpush1.bf16.msra.mxu0 0
        %974 = vmatprep.subr.bf16.mxu0 0
        %975 = vmatpush1.bf16.msra.mxu0 0
        %976 = vmatprep.mubr.bf16.mxu0 0
        %977 = vmatmul.mubr.bf16.gmra.mrb[0].mxu0 %v939
        %v978 = vpop.f32.mrb[0].mxu0
        %v979 = vadd.f32 0.0, %v978
        %v980 = vpop.f32.mrb[0].mxu0
        %v981 = vpop.f32.mrb[0].mxu0
        %v982 = vpop.f32.mrb[0].mxu0
        %983 = vdwg.mxu0
        %v984 = vpack.c.bf16 %v979, %v979
        %v986 = vunpack.c.l.b16 %v984
        %v987 = vpack.c.b16 %v986, %v986
        %988 = vrot.lane.b32.xlu0 %v987, 24
        %v989 = vpop.permute.xlu0 %988
        %vm991 = vcmask 257216
        %992 = vst.msk [vmem:[#allocation2] sm:$0xf] %vm991, %v989
        %v993 = vld [vmem:[#allocation2] sm:$0xf]
        %v994 = vld [vmem:[%s3] sm:$0xf]
        %v995 = vld [vmem:[%s3 + $0x4] sm:$0xf]
        %v996 = vld [vmem:[%s3 + $0x8] sm:$0xf]
        %v997 = vld [vmem:[%s3 + $0xc] sm:$0xf]
        %v998 = vld [vmem:[%s4] sm:$0x1]
        %v1000 = vlaneseq
        %v1001 = vshrl.u32 %v1000, 7
        %v1002 = vsub.s32 0, %v1001
        %v1003 = vrot.slane %v998, %v1002
        %v1009 = vunpack.c.l.b16 %v994
        %v1010 = vunpack.c.l.b16 %v995
        %v1011 = vunpack.c.l.b16 %v996
        %v1012 = vunpack.c.l.b16 %v997
        %v1013 = vpack.c.b16 %v1010, %v1009
        %v1014 = vpack.c.b16 %v1012, %v1011
        %v1018 = vsel %vm477, %v993, 0
        %1020 = vmatprep.subr.bf16.mxu0 0
        %1021 = vmatpush1.bf16.msra.mxu0 %v1013
        %1022 = vmatprep.subr.bf16.mxu0 0
        %1023 = vmatpush1.bf16.msra.mxu0 %v1014
        %1024 = vmatprep.subr.bf16.mxu0 0
        %1025 = vmatpush1.bf16.msra.mxu0 0
        %1026 = vmatprep.subr.bf16.mxu0 0
        %1027 = vmatpush1.bf16.msra.mxu0 0
        %1028 = vmatprep.subr.bf16.mxu0 0
        %1029 = vmatpush1.bf16.msra.mxu0 0
        %1030 = vmatprep.subr.bf16.mxu0 0
        %1031 = vmatpush1.bf16.msra.mxu0 0
        %1032 = vmatprep.subr.bf16.mxu0 0
        %1033 = vmatpush1.bf16.msra.mxu0 0
        %1034 = vmatprep.subr.bf16.mxu0 0
        %1035 = vmatpush1.bf16.msra.mxu0 0
        %1036 = vmatprep.subr.bf16.mxu0 0
        %1037 = vmatpush1.bf16.msra.mxu0 0
        %1038 = vmatprep.subr.bf16.mxu0 0
        %1039 = vmatpush1.bf16.msra.mxu0 0
        %1040 = vmatprep.subr.bf16.mxu0 0
        %1041 = vmatpush1.bf16.msra.mxu0 0
        %1042 = vmatprep.subr.bf16.mxu0 0
        %1043 = vmatpush1.bf16.msra.mxu0 0
        %1044 = vmatprep.subr.bf16.mxu0 0
        %1045 = vmatpush1.bf16.msra.mxu0 0
        %1046 = vmatprep.subr.bf16.mxu0 0
        %1047 = vmatpush1.bf16.msra.mxu0 0
        %1048 = vmatprep.subr.bf16.mxu0 0
        %1049 = vmatpush1.bf16.msra.mxu0 0
        %1050 = vmatprep.subr.bf16.mxu0 0
        %1051 = vmatpush1.bf16.msra.mxu0 0
        %1052 = vmatprep.mubr.bf16.mxu0 0
        %1053 = vmatmul.mubr.bf16.gmra.mrb[0].mxu0 %v1018
        %v1054 = vpop.f32.mrb[0].mxu0
        %v1055 = vadd.f32 %v1003, %v1054
        %v1056 = vpop.f32.mrb[0].mxu0
        %v1057 = vpop.f32.mrb[0].mxu0
        %v1058 = vpop.f32.mrb[0].mxu0
        %1059 = vdwg.mxu0
        %v1060 = vadd.f32 %v452, %v1055
        %v1061 = vld [vmem:[%s5] sm:$0x1]
        %v1062 = vld [vmem:[%s6] sm:$0x1]
        %v1063 = vsel %vm477, %v1060, 0.0
        %1064 = vadd.xlane.f32.xlu0 %v1063
        %v1065 = vpop.xlane.xlu0 %1064
        %v1066 = vmul.f32 %v1065, 0.03125
        %v1067 = vmul.f32 %v1060, %v1060
        %v1068 = vsel %vm477, %v1067, 0.0
        %1069 = vadd.xlane.f32.xlu0 %v1068
        %v1070 = vpop.xlane.xlu0 %1069
        %v1071 = vmul.f32 %v1070, 0.03125
        %v1072 = vmul.f32 %v1066, %v1066
        %v1073 = vsub.f32 %v1071, %v1072
        %v1074 = vadd.f32 %v1073, 1e-05
        %v1075 = vrsqrt.pop %v1074
        %v1076 = vsub.f32 %v1060, %v1066
        %v1077 = vmul.f32 %v1076, %v1075
        %v1079 = vlaneseq
        %v1080 = vshrl.u32 %v1079, 7
        %v1081 = vsub.s32 0, %v1080
        %v1082 = vrot.slane %v1061, %v1081
        %v1084 = vmul.f32 %v1077, %v1082
        %v1086 = vlaneseq
        %v1087 = vshrl.u32 %v1086, 7
        %v1088 = vsub.s32 0, %v1087
        %v1089 = vrot.slane %v1062, %v1088
        %v1091 = vadd.f32 %v1084, %v1089
        %v1092 = vpack.c.bf16 %v1091, %v1091
        %v1093 = vld [vmem:[#allocation3] sm:$0xf]
        %v1094 = vld [vmem:[#allocation3 + $0x4] sm:$0xf]
        %v1095 = vld [vmem:[#allocation3 + $0x8] sm:$0xf]
        %v1096 = vld [vmem:[#allocation3 + $0xc] sm:$0xf]
        %v1097 = vld [vmem:[%s8] sm:$0x1]
        %v1099 = vlaneseq
        %v1100 = vshrl.u32 %v1099, 7
        %v1101 = vsub.s32 0, %v1100
        %v1102 = vrot.slane %v1097, %v1101
        %v1108 = vunpack.c.l.b16 %v1093
        %v1109 = vunpack.c.l.b16 %v1094
        %v1110 = vunpack.c.l.b16 %v1095
        %v1111 = vunpack.c.l.b16 %v1096
        %v1112 = vpack.c.b16 %v1109, %v1108
        %v1113 = vpack.c.b16 %v1111, %v1110
        %v1117 = vsel %vm477, %v1092, 0
        %1119 = vmatprep.subr.bf16.mxu0 0
        %1120 = vmatpush1.bf16.msra.mxu0 %v1112
        %1121 = vmatprep.subr.bf16.mxu0 0
        %1122 = vmatpush1.bf16.msra.mxu0 %v1113
        %1123 = vmatprep.subr.bf16.mxu0 0
        %1124 = vmatpush1.bf16.msra.mxu0 0
        %1125 = vmatprep.subr.bf16.mxu0 0
        %1126 = vmatpush1.bf16.msra.mxu0 0
        %1127 = vmatprep.subr.bf16.mxu0 0
        %1128 = vmatpush1.bf16.msra.mxu0 0
        %1129 = vmatprep.subr.bf16.mxu0 0
        %1130 = vmatpush1.bf16.msra.mxu0 0
        %1131 = vmatprep.subr.bf16.mxu0 0
        %1132 = vmatpush1.bf16.msra.mxu0 0
        %1133 = vmatprep.subr.bf16.mxu0 0
        %1134 = vmatpush1.bf16.msra.mxu0 0
        %1135 = vmatprep.subr.bf16.mxu0 0
        %1136 = vmatpush1.bf16.msra.mxu0 0
        %1137 = vmatprep.subr.bf16.mxu0 0
        %1138 = vmatpush1.bf16.msra.mxu0 0
        %1139 = vmatprep.subr.bf16.mxu0 0
        %1140 = vmatpush1.bf16.msra.mxu0 0
        %1141 = vmatprep.subr.bf16.mxu0 0
        %1142 = vmatpush1.bf16.msra.mxu0 0
        %1143 = vmatprep.subr.bf16.mxu0 0
        %1144 = vmatpush1.bf16.msra.mxu0 0
        %1145 = vmatprep.subr.bf16.mxu0 0
        %1146 = vmatpush1.bf16.msra.mxu0 0
        %1147 = vmatprep.subr.bf16.mxu0 0
        %1148 = vmatpush1.bf16.msra.mxu0 0
        %1149 = vmatprep.subr.bf16.mxu0 0
        %1150 = vmatpush1.bf16.msra.mxu0 0
        %1151 = vmatprep.mubr.bf16.mxu0 0
        %1152 = vmatmul.mubr.bf16.gmra.mrb[0].mxu0 %v1117
        %v1153 = vpop.f32.mrb[0].mxu0
        %v1154 = vadd.f32 %v1102, %v1153
        %v1155 = vpop.f32.mrb[0].mxu0
        %v1156 = vpop.f32.mrb[0].mxu0
        %v1157 = vpop.f32.mrb[0].mxu0
        %1158 = vdwg.mxu0
        %v1159 = vmax.f32 %v1154, 0.0
        %v1160 = vpack.c.bf16 %v1159, %v1159
        %v1161 = vld [vmem:[%s9] sm:$0xf]
        %v1162 = vld [vmem:[%s9 + $0x4] sm:$0xf]
        %v1163 = vld [vmem:[%s9 + $0x8] sm:$0xf]
        %v1164 = vld [vmem:[%s9 + $0xc] sm:$0xf]
        %v1165 = vld [vmem:[%s9 + $0x10] sm:$0xf]
        %v1166 = vld [vmem:[%s9 + $0x14] sm:$0xf]
        %v1167 = vld [vmem:[%s9 + $0x18] sm:$0xf]
        %v1168 = vld [vmem:[%s9 + $0x1c] sm:$0xf]
        %v1177 = vunpack.c.l.b16 %v1161
        %v1178 = vunpack.c.l.b16 %v1162
        %v1179 = vunpack.c.l.b16 %v1163
        %v1180 = vunpack.c.l.b16 %v1164
        %v1181 = vunpack.c.l.b16 %v1165
        %v1182 = vunpack.c.l.b16 %v1166
        %v1183 = vunpack.c.l.b16 %v1167
        %v1184 = vunpack.c.l.b16 %v1168
        %v1185 = vpack.c.b16 %v1178, %v1177
        %v1186 = vpack.c.b16 %v1180, %v1179
        %v1187 = vpack.c.b16 %v1182, %v1181
        %v1188 = vpack.c.b16 %v1184, %v1183
        %vm1193 = vcmask 523264
        %v1195 = vsel %vm1193, %v1160, 0
        %1197 = vmatprep.subr.bf16.mxu0 0
        %1198 = vmatpush1.bf16.msra.mxu0 %v1185
        %1199 = vmatprep.subr.bf16.mxu0 0
        %1200 = vmatpush1.bf16.msra.mxu0 %v1186
        %1201 = vmatprep.subr.bf16.mxu0 0
        %1202 = vmatpush1.bf16.msra.mxu0 %v1187
        %1203 = vmatprep.subr.bf16.mxu0 0
        %1204 = vmatpush1.bf16.msra.mxu0 %v1188
        %1205 = vmatprep.subr.bf16.mxu0 0
        %1206 = vmatpush1.bf16.msra.mxu0 0
        %1207 = vmatprep.subr.bf16.mxu0 0
        %1208 = vmatpush1.bf16.msra.mxu0 0
        %1209 = vmatprep.subr.bf16.mxu0 0
        %1210 = vmatpush1.bf16.msra.mxu0 0
        %1211 = vmatprep.subr.bf16.mxu0 0
        %1212 = vmatpush1.bf16.msra.mxu0 0
        %1213 = vmatprep.subr.bf16.mxu0 0
        %1214 = vmatpush1.bf16.msra.mxu0 0
        %1215 = vmatprep.subr.bf16.mxu0 0
        %1216 = vmatpush1.bf16.msra.mxu0 0
        %1217 = vmatprep.subr.bf16.mxu0 0
        %1218 = vmatpush1.bf16.msra.mxu0 0
        %1219 = vmatprep.subr.bf16.mxu0 0
        %1220 = vmatpush1.bf16.msra.mxu0 0
        %1221 = vmatprep.subr.bf16.mxu0 0
        %1222 = vmatpush1.bf16.msra.mxu0 0
        %1223 = vmatprep.subr.bf16.mxu0 0
        %1224 = vmatpush1.bf16.msra.mxu0 0
        %1225 = vmatprep.subr.bf16.mxu0 0
        %1226 = vmatpush1.bf16.msra.mxu0 0
        %1227 = vmatprep.subr.bf16.mxu0 0
        %1228 = vmatpush1.bf16.msra.mxu0 0
        %1229 = vmatprep.mubr.bf16.mxu0 0
        %1230 = vmatmul.mubr.bf16.gmra.mrb[0].mxu0 %v1195
        %v1231 = vpop.f32.mrb[0].mxu0
        %v1232 = vadd.f32 0.0, %v1231
        %v1233 = vpop.f32.mrb[0].mxu0
        %v1234 = vpop.f32.mrb[0].mxu0
        %v1235 = vpop.f32.mrb[0].mxu0
        %1236 = vdwg.mxu0
        %v1237 = vadd.f32 %v1091, %v1232
        %v1238 = vld [vmem:[%s10] sm:$0x1]
        %v1240 = vlaneseq
        %v1241 = vshrl.u32 %v1240, 7
        %v1242 = vsub.s32 0, %v1241
        %v1243 = vrot.slane %v1238, %v1242
        %v1245 = vadd.f32 %v1237, %v1243
        %v1246 = vld [vmem:[%s11] sm:$0x1]
        %v1247 = vld [vmem:[%s12] sm:$0x1]
        %v1248 = vsel %vm477, %v1245, 0.0
        %1249 = vadd.xlane.f32.xlu0 %v1248
        %v1250 = vpop.xlane.xlu0 %1249
        %v1251 = vmul.f32 %v1250, 0.03125
        %v1252 = vmul.f32 %v1245, %v1245
        %v1253 = vsel %vm477, %v1252, 0.0
        %1254 = vadd.xlane.f32.xlu0 %v1253
        %v1255 = vpop.xlane.xlu0 %1254
        %v1256 = vmul.f32 %v1255, 0.03125
        %v1257 = vmul.f32 %v1251, %v1251
        %v1258 = vsub.f32 %v1256, %v1257
        %v1259 = vadd.f32 %v1258, 1e-05
        %v1260 = vrsqrt.pop %v1259
        %v1261 = vsub.f32 %v1245, %v1251
        %v1262 = vmul.f32 %v1261, %v1260
        %v1264 = vlaneseq
        %v1265 = vshrl.u32 %v1264, 7
        %v1266 = vsub.s32 0, %v1265
        %v1267 = vrot.slane %v1246, %v1266
        %v1269 = vmul.f32 %v1262, %v1267
        %v1271 = vlaneseq
        %v1272 = vshrl.u32 %v1271, 7
        %v1273 = vsub.s32 0, %v1272
        %v1274 = vrot.slane %v1247, %v1273
        %v1276 = vadd.f32 %v1269, %v1274
        %1277 = vst.msk [vmem:[%s446] sm:$0xff] %vm477, %v1276
        %s1278 = sand.u32 %s314, 1
        %s1279 = scalar_lea.sflag [#allocation5], %s1278
        %s1280 = sand.u32 %s314, 1
        %s1281 = smul.addr %s1280, 8
        %s1282 = scalar_lea.vmem [#allocation6], %s1281
        // Predicated region
        $region77: #{tpu_custom_call.1} parent=71 // pred_check
          %p1283 = pneg %p324
        $region78: #{tpu_custom_call.1} parent=71 // pred_check_branch
          %1285 = sbr.rel (%p1283) target = $region80
        $region79: #{tpu_custom_call.1} parent=71 // pred_region
          %s1287 = ssub.s32 128, 128
          %1288 = vsyncadd %s1279, %s1287
          %s1289 = smul.addr %s28, 128
          %s1290 = scalar_lea.hbm %s13, %s1289
          %s1292 = sshll.u32 %s1282, 4
          %s1293 = int_to_ptr.vmem [resolvable:$true] %s1292
          %1295 = dma.vmem_to_hbm [thread:$0]  %s1293, 128, %s1290, %s1279
        $region80: #{tpu_custom_call.1} parent=71 // pred_fallthru
          _
      $region72: #{tpu_custom_call.1} parent=5 // pred_fallthru
        _
      %p1296 = scmp.le.s32.totalorder 2, %s23
      // Predicated region
      $region81: #{tpu_custom_call.1} parent=5 // pred_check
        %p1297 = pneg %p1296
      $region82: #{tpu_custom_call.1} parent=5 // pred_check_branch
        %1299 = sbr.rel (%p1297) target = $region84
      $region83: #{tpu_custom_call.1} parent=5 // pred_region
        %s1300 = ssub.s32 %s23, 2
        // Predicated region
        $region85: #{tpu_custom_call.1} parent=83 // pred_check
          %p1301 = pneg %p330
        $region86: #{tpu_custom_call.1} parent=83 // pred_check_branch
          %1303 = sbr.rel (%p1301) target = $region88
        $region87: #{tpu_custom_call.1} parent=83 // pred_region
          %s1304 = sand.u32 %s315, 1
          %s1305 = scalar_lea.sflag [#allocation5], %s1304
          %s1306 = sand.u32 %s315, 1
          %s1307 = smul.addr %s1306, 8
          %s1308 = scalar_lea.vmem [#allocation6], %s1307
          %1309 = dma.done %s1305, 128
        $region88: #{tpu_custom_call.1} parent=83 // pred_fallthru
          _
      $region84: #{tpu_custom_call.1} parent=5 // pred_fallthru
        _
    $region6: #{tpu_custom_call.1} parent=1 // loop_footer
      %s27 = sadd.s32 1, %s23
    $region7: #{tpu_custom_call.1} parent=1 // loop_footer_branch
      %22 = sbr.rel target = $region3
    $region8: #{tpu_custom_call.1} parent=1 // loop_exit
      _
    %1310 = vsyncpa [#allocation4], 1
    %s1311 = scalar_lea.sflag [#allocation4], 1
    %1312 = vsyncpa %s1311, 1
    %1313 = vsyncpa [#allocation5], 1
    %s1314 = scalar_lea.sflag [#allocation5], 1
    %1315 = vsyncpa %s1314, 1

// kernel: tpu_custom_call.1
$region0: #{tpu_custom_call.1}
  #allocation0 [shape = 'u32[]', space=smem, size = 0x4, offset = 0x4, fixed_abs, tag = 'smem constant byte address 0x4 - core index']
  #allocation1 [shape = 'u32[144,128]{1,0:T(1,128)}', space=vmem, size = 0x12000, scoped, tag = 'internal scratch']
  #allocation2 [shape = 'bf16[8,32]{1,0:T(8,128)(2,1)}', space=vmem, size = 0x800, scoped, tag = 'scratch operand']
  %s0 = inlined_call_operand.vmem [shape: f32[16,32], index: 0, kind: input, shape index: {}]
  %s1 = inlined_call_operand.vmem [shape: bf16[32,96], index: 1, kind: input, shape index: {}]
  %s2 = inlined_call_operand.vmem [shape: f32[1,96], index: 2, kind: input, shape index: {}]
  %s3 = inlined_call_operand.vmem [shape: bf16[32,32], index: 3, kind: input, shape index: {}]
  %s4 = inlined_call_operand.vmem [shape: f32[1,32], index: 4, kind: input, shape index: {}]
  %s5 = inlined_call_operand.vmem [shape: f32[1,32], index: 5, kind: input, shape index: {}]
  %s6 = inlined_call_operand.vmem [shape: f32[1,32], index: 6, kind: input, shape index: {}]
  %s7 = inlined_call_operand.hbm [shape: bf16[32,64], index: 7, kind: input, shape index: {}]
  %s8 = inlined_call_operand.vmem [shape: f32[1,64], index: 8, kind: input, shape index: {}]
  %s9 = inlined_call_operand.vmem [shape: bf16[64,32], index: 9, kind: input, shape index: {}]
  %s10 = inlined_call_operand.vmem [shape: f32[1,32], index: 10, kind: input, shape index: {}]
  %s11 = inlined_call_operand.vmem [shape: f32[1,32], index: 11, kind: input, shape index: {}]
  %s12 = inlined_call_operand.vmem [shape: f32[1,32], index: 12, kind: input, shape index: {}]
  %s13 = inlined_call_operand.hbm [shape: f32[16,32], index: 13, kind: output, shape index: {}]
  %s14 = sld [smem:[#allocation0]]
  $region89: #{tpu_custom_call.1} parent=0
    _
  %s16 = ssub.s32 1, %s14
  %s17 = scalar_select 0, %s16, %s14
  $region1: #{tpu_custom_call.1} parent=0
    #allocation3 [shape = 'u8[8192]{0}', space=vmem, size = 0x2000, scoped, tag = 'input window, operand 7, single buffered']
    #allocation4 [shape = 's32[2]{0}', space=sflag, size = 0x8, scoped, tag = 'scoped memory for tpu_custom_call.1']
    #allocation5 [shape = 's32[2]{0}', space=sflag, size = 0x8, scoped, tag = 'scoped memory for tpu_custom_call.1']
    #allocation6 [shape = 'u8[8192]{0}', space=vmem, size = 0x2000, scoped, tag = 'output window, operand 0']
    %18 = vsyncpa [#allocation4], 0
    %19 = vsyncpa [#allocation5], 0
    %s20 = scalar_lea.sflag [#allocation5], 1
    %21 = vsyncpa %s20, 0
    loop: start=0, step=1, limit=4
    $region2: #{tpu_custom_call.1} parent=1 // loop_pre_header
      _
    $region3: #{tpu_custom_call.1} parent=1 // loop_header
      %s23 = sphi 0, %s27
      %p24 = scmp.ge.s32.totalorder %s23, 4
      %s33 = sphi 0, %s35
      %s36 = sphi 0, %s33
      %s37 = sphi 0, %s36
      %s53 = sphi 0, %s37
      %s57 = sphi 0, %s57
      %s59 = sphi 0, %s57
      %s60 = sphi 0, %s59
      %s74 = sphi 0, %s60
      %s78 = sphi 0, %s78
      %s80 = sphi 0, %s78
      %s81 = sphi 0, %s80
      %s95 = sphi 0, %s81
      %s99 = sphi 0, %s99
      %s101 = sphi 0, %s99
      %s102 = sphi 0, %s101
      %s116 = sphi 0, %s102
      %s120 = sphi 0, %s120
      %s122 = sphi 0, %s120
      %s123 = sphi 0, %s122
      %s137 = sphi 0, %s123
      %s141 = sphi 0, %s141
      %s143 = sphi 0, %s141
      %s144 = sphi 0, %s143
      %s158 = sphi 0, %s144
      %s162 = sphi 0, %s162
      %s164 = sphi 0, %s162
      %s165 = sphi 0, %s164
      %s179 = sphi 0, %s165
      %s183 = sphi 0, %s183
      %s185 = sphi 0, %s183
      %s186 = sphi 0, %s185
      %s200 = sphi 0, %s186
      %s204 = sphi 0, %s204
      %s206 = sphi 0, %s204
      %s207 = sphi 0, %s206
      %s221 = sphi 0, %s207
      %s225 = sphi 0, %s225
      %s227 = sphi 0, %s225
      %s228 = sphi 0, %s227
      %s242 = sphi 0, %s228
      %s246 = sphi 0, %s246
      %s248 = sphi 0, %s246
      %s249 = sphi 0, %s248
      %s263 = sphi 0, %s249
      %s267 = sphi 0, %s267
      %s269 = sphi 0, %s267
      %s270 = sphi 0, %s269
      %s284 = sphi 0, %s270
      %s288 = sphi 0, %s288
      %s290 = sphi 0, %s288
      %s291 = sphi 0, %s290
      %s305 = sphi 0, %s291
      %s311 = sphi 0, %s313
      %s314 = sphi 0, %s311
      %s315 = sphi 0, %s314
      %s331 = sphi 0, %s315
    $region4: #{tpu_custom_call.1} parent=1 // loop_header_branch
      %26 = sbr.rel (%p24) target = $region8
    $region5: #{tpu_custom_call.1} parent=1 // loop_body
      %s28 = ssub.s32 %s23, 1
      %s29 = ssub.s32 %s23, 2
      %s30 = sadd.s32 %s23, 1
      %s31 = ssub.s32 %s23, %s30
      %p32 = scmp.eq.s32.totalorder %s31, 0
      %s34 = sadd.s32 %s33, 1
      %s35 = scalar_select %p32, %s33, %s34
      %p38 = pneg %p32
      %p39 = scmp.eq.s32.totalorder %s23, 1
      %p40 = por %p38, %p39
      %p41 = scmp.ne.s32.totalorder %s33, %s36
      %p42 = scmp.eq.s32.totalorder %s23, 0
      %p43 = por %p41, %p42
      %p44 = scmp.ne.s32.totalorder %s33, %s36
      %p45 = scmp.eq.s32.totalorder %s28, 1
      %p46 = por %p44, %p45
      %p47 = scmp.ne.s32.totalorder %s36, %s37
      %p48 = scmp.eq.s32.totalorder %s28, 0
      %p49 = por %p47, %p48
      %p50 = scmp.ne.s32.totalorder %s36, %s37
      %p51 = scmp.eq.s32.totalorder %s29, 1
      %p52 = por %p50, %p51
      %p54 = scmp.ne.s32.totalorder %s37, %s53
      %p55 = scmp.eq.s32.totalorder %s29, 0
      %p56 = por %p54, %p55
      %s58 = sadd.s32 %s57, 1
      %p61 = scmp.eq.s32.totalorder %s23, 1
      %p62 = scmp.ne.s32.totalorder %s57, %s59
      %p63 = scmp.eq.s32.totalorder %s23, 0
      %p64 = por %p62, %p63
      %p65 = scmp.ne.s32.totalorder %s57, %s59
      %p66 = scmp.eq.s32.totalorder %s28, 1
      %p67 = por %p65, %p66
      %p68 = scmp.ne.s32.totalorder %s59, %s60
      %p69 = scmp.eq.s32.totalorder %s28, 0
      %p70 = por %p68, %p69
      %p71 = scmp.ne.s32.totalorder %s59, %s60
      %p72 = scmp.eq.s32.totalorder %s29, 1
      %p73 = por %p71, %p72
      %p75 = scmp.ne.s32.totalorder %s60, %s74
      %p76 = scmp.eq.s32.totalorder %s29, 0
      %p77 = por %p75, %p76
      %s79 = sadd.s32 %s78, 1
      %p82 = scmp.eq.s32.totalorder %s23, 1
      %p83 = scmp.ne.s32.totalorder %s78, %s80
      %p84 = scmp.eq.s32.totalorder %s23, 0
      %p85 = por %p83, %p84
      %p86 = scmp.ne.s32.totalorder %s78, %s80
      %p87 = scmp.eq.s32.totalorder %s28, 1
      %p88 = por %p86, %p87
      %p89 = scmp.ne.s32.totalorder %s80, %s81
      %p90 = scmp.eq.s32.totalorder %s28, 0
      %p91 = por %p89, %p90
      %p92 = scmp.ne.s32.totalorder %s80, %s81
      %p93 = scmp.eq.s32.totalorder %s29, 1
      %p94 = por %p92, %p93
      %p96 = scmp.ne.s32.totalorder %s81, %s95
      %p97 = scmp.eq.s32.totalorder %s29, 0
      %p98 = por %p96, %p97
      %s100 = sadd.s32 %s99, 1
      %p103 = scmp.eq.s32.totalorder %s23, 1
      %p104 = scmp.ne.s32.totalorder %s99, %s101
      %p105 = scmp.eq.s32.totalorder %s23, 0
      %p106 = por %p104, %p105
      %p107 = scmp.ne.s32.totalorder %s99, %s101
      %p108 = scmp.eq.s32.totalorder %s28, 1
      %p109 = por %p107, %p108
      %p110 = scmp.ne.s32.totalorder %s101, %s102
      %p111 = scmp.eq.s32.totalorder %s28, 0
      %p112 = por %p110, %p111
      %p113 = scmp.ne.s32.totalorder %s101, %s102
      %p114 = scmp.eq.s32.totalorder %s29, 1
      %p115 = por %p113, %p114
      %p117 = scmp.ne.s32.totalorder %s102, %s116
      %p118 = scmp.eq.s32.totalorder %s29, 0
      %p119 = por %p117, %p118
      %s121 = sadd.s32 %s120, 1
      %p124 = scmp.eq.s32.totalorder %s23, 1
      %p125 = scmp.ne.s32.totalorder %s120, %s122
      %p126 = scmp.eq.s32.totalorder %s23, 0
      %p127 = por %p125, %p126
      %p128 = scmp.ne.s32.totalorder %s120, %s122
      %p129 = scmp.eq.s32.totalorder %s28, 1
      %p130 = por %p128, %p129
      %p131 = scmp.ne.s32.totalorder %s122, %s123
      %p132 = scmp.eq.s32.totalorder %s28, 0
      %p133 = por %p131, %p132
      %p134 = scmp.ne.s32.totalorder %s122, %s123
      %p135 = scmp.eq.s32.totalorder %s29, 1
      %p136 = por %p134, %p135
      %p138 = scmp.ne.s32.totalorder %s123, %s137
      %p139 = scmp.eq.s32.totalorder %s29, 0
      %p140 = por %p138, %p139
      %s142 = sadd.s32 %s141, 1
      %p145 = scmp.eq.s32.totalorder %s23, 1
      %p146 = scmp.ne.s32.totalorder %s141, %s143
      %p147 = scmp.eq.s32.totalorder %s23, 0
      %p148 = por %p146, %p147
      %p149 = scmp.ne.s32.totalorder %s141, %s143
      %p150 = scmp.eq.s32.totalorder %s28, 1
      %p151 = por %p149, %p150
      %p152 = scmp.ne.s32.totalorder %s143, %s144
      %p153 = scmp.eq.s32.totalorder %s28, 0
      %p154 = por %p152, %p153
      %p155 = scmp.ne.s32.totalorder %s143, %s144
      %p156 = scmp.eq.s32.totalorder %s29, 1
      %p157 = por %p155, %p156
      %p159 = scmp.ne.s32.totalorder %s144, %s158
      %p160 = scmp.eq.s32.totalorder %s29, 0
      %p161 = por %p159, %p160
      %s163 = sadd.s32 %s162, 1
      %p166 = scmp.eq.s32.totalorder %s23, 1
      %p167 = scmp.ne.s32.totalorder %s162, %s164
      %p168 = scmp.eq.s32.totalorder %s23, 0
      %p169 = por %p167, %p168
      %p170 = scmp.ne.s32.totalorder %s162, %s164
      %p171 = scmp.eq.s32.totalorder %s28, 1
      %p172 = por %p170, %p171
      %p173 = scmp.ne.s32.totalorder %s164, %s165
      %p174 = scmp.eq.s32.totalorder %s28, 0
      %p175 = por %p173, %p174
      %p176 = scmp.ne.s32.totalorder %s164, %s165
      %p177 = scmp.eq.s32.totalorder %s29, 1
      %p178 = por %p176, %p177
      %p180 = scmp.ne.s32.totalorder %s165, %s179
      %p181 = scmp.eq.s32.totalorder %s29, 0
      %p182 = por %p180, %p181
      %s184 = sadd.s32 %s183, 1
      %p187 = scmp.eq.s32.totalorder %s23, 1
      %p188 = scmp.ne.s32.totalorder %s183, %s185
      %p189 = scmp.eq.s32.totalorder %s23, 0
      %p190 = por %p188, %p189
      %p191 = scmp.ne.s32.totalorder %s183, %s185
      %p192 = scmp.eq.s32.totalorder %s28, 1
      %p193 = por %p191, %p192
      %p194 = scmp.ne.s32.totalorder %s185, %s186
      %p195 = scmp.eq.s32.totalorder %s28, 0
      %p196 = por %p194, %p195
      %p197 = scmp.ne.s32.totalorder %s185, %s186
      %p198 = scmp.eq.s32.totalorder %s29, 1
      %p199 = por %p197, %p198
      %p201 = scmp.ne.s32.totalorder %s186, %s200
      %p202 = scmp.eq.s32.totalorder %s29, 0
      %p203 = por %p201, %p202
      %s205 = sadd.s32 %s204, 1
      %p208 = scmp.eq.s32.totalorder %s23, 1
      %p209 = scmp.ne.s32.totalorder %s204, %s206
      %p210 = scmp.eq.s32.totalorder %s23, 0
      %p211 = por %p209, %p210
      %p212 = scmp.ne.s32.totalorder %s204, %s206
      %p213 = scmp.eq.s32.totalorder %s28, 1
      %p214 = por %p212, %p213
      %p215 = scmp.ne.s32.totalorder %s206, %s207
      %p216 = scmp.eq.s32.totalorder %s28, 0
      %p217 = por %p215, %p216
      %p218 = scmp.ne.s32.totalorder %s206, %s207
      %p219 = scmp.eq.s32.totalorder %s29, 1
      %p220 = por %p218, %p219
      %p222 = scmp.ne.s32.totalorder %s207, %s221
      %p223 = scmp.eq.s32.totalorder %s29, 0
      %p224 = por %p222, %p223
      %s226 = sadd.s32 %s225, 1
      %p229 = scmp.eq.s32.totalorder %s23, 1
      %p230 = scmp.ne.s32.totalorder %s225, %s227
      %p231 = scmp.eq.s32.totalorder %s23, 0
      %p232 = por %p230, %p231
      %p233 = scmp.ne.s32.totalorder %s225, %s227
      %p234 = scmp.eq.s32.totalorder %s28, 1
      %p235 = por %p233, %p234
      %p236 = scmp.ne.s32.totalorder %s227, %s228
      %p237 = scmp.eq.s32.totalorder %s28, 0
      %p238 = por %p236, %p237
      %p239 = scmp.ne.s32.totalorder %s227, %s228
      %p240 = scmp.eq.s32.totalorder %s29, 1
      %p241 = por %p239, %p240
      %p243 = scmp.ne.s32.totalorder %s228, %s242
      %p244 = scmp.eq.s32.totalorder %s29, 0
      %p245 = por %p243, %p244
      %s247 = sadd.s32 %s246, 1
      %p250 = scmp.eq.s32.totalorder %s23, 1
      %p251 = scmp.ne.s32.totalorder %s246, %s248
      %p252 = scmp.eq.s32.totalorder %s23, 0
      %p253 = por %p251, %p252
      %p254 = scmp.ne.s32.totalorder %s246, %s248
      %p255 = scmp.eq.s32.totalorder %s28, 1
      %p256 = por %p254, %p255
      %p257 = scmp.ne.s32.totalorder %s248, %s249
      %p258 = scmp.eq.s32.totalorder %s28, 0
      %p259 = por %p257, %p258
      %p260 = scmp.ne.s32.totalorder %s248, %s249
      %p261 = scmp.eq.s32.totalorder %s29, 1
      %p262 = por %p260, %p261
      %p264 = scmp.ne.s32.totalorder %s249, %s263
      %p265 = scmp.eq.s32.totalorder %s29, 0
      %p266 = por %p264, %p265
      %s268 = sadd.s32 %s267, 1
      %p271 = scmp.eq.s32.totalorder %s23, 1
      %p272 = scmp.ne.s32.totalorder %s267, %s269
      %p273 = scmp.eq.s32.totalorder %s23, 0
      %p274 = por %p272, %p273
      %p275 = scmp.ne.s32.totalorder %s267, %s269
      %p276 = scmp.eq.s32.totalorder %s28, 1
      %p277 = por %p275, %p276
      %p278 = scmp.ne.s32.totalorder %s269, %s270
      %p279 = scmp.eq.s32.totalorder %s28, 0
      %p280 = por %p278, %p279
      %p281 = scmp.ne.s32.totalorder %s269, %s270
      %p282 = scmp.eq.s32.totalorder %s29, 1
      %p283 = por %p281, %p282
      %p285 = scmp.ne.s32.totalorder %s270, %s284
      %p286 = scmp.eq.s32.totalorder %s29, 0
      %p287 = por %p285, %p286
      %s289 = sadd.s32 %s288, 1
      %p292 = scmp.eq.s32.totalorder %s23, 1
      %p293 = scmp.ne.s32.totalorder %s288, %s290
      %p294 = scmp.eq.s32.totalorder %s23, 0
      %p295 = por %p293, %p294
      %p296 = scmp.ne.s32.totalorder %s288, %s290
      %p297 = scmp.eq.s32.totalorder %s28, 1
      %p298 = por %p296, %p297
      %p299 = scmp.ne.s32.totalorder %s290, %s291
      %p300 = scmp.eq.s32.totalorder %s28, 0
      %p301 = por %p299, %p300
      %p302 = scmp.ne.s32.totalorder %s290, %s291
      %p303 = scmp.eq.s32.totalorder %s29, 1
      %p304 = por %p302, %p303
      %p306 = scmp.ne.s32.totalorder %s291, %s305
      %p307 = scmp.eq.s32.totalorder %s29, 0
      %p308 = por %p306, %p307
      %s309 = ssub.s32 %s23, %s30
      %p310 = scmp.eq.s32.totalorder %s309, 0
      %s312 = sadd.s32 %s311, 1
      %s313 = scalar_select %p310, %s311, %s312
      %p316 = pneg %p310
      %p317 = scmp.eq.s32.totalorder %s23, 1
      %p318 = por %p316, %p317
      %p319 = scmp.ne.s32.totalorder %s311, %s314
      %p320 = scmp.eq.s32.totalorder %s23, 0
      %p321 = por %p319, %p320
      %p322 = scmp.ne.s32.totalorder %s311, %s314
      %p323 = scmp.eq.s32.totalorder %s28, 1
      %p324 = por %p322, %p323
      %p325 = scmp.ne.s32.totalorder %s314, %s315
      %p326 = scmp.eq.s32.totalorder %s28, 0
      %p327 = por %p325, %p326
      %p328 = scmp.ne.s32.totalorder %s314, %s315
      %p329 = scmp.eq.s32.totalorder %s29, 1
      %p330 = por %p328, %p329
      %p332 = scmp.ne.s32.totalorder %s315, %s331
      %p333 = scmp.eq.s32.totalorder %s29, 0
      %p334 = por %p332, %p333
      %p335 = scmp.le.s32.totalorder 1, %s23
      %p336 = scmp.lt.s32.totalorder %s23, 3
      %p337 = pnand %p335, %p336
      %p338 = pneg %p337
      // Predicated region
      $region9: #{tpu_custom_call.1} parent=5 // pred_check
        _
      $region10: #{tpu_custom_call.1} parent=5 // pred_check_branch
        %340 = sbr.rel (%p337) target = $region12
      $region11: #{tpu_custom_call.1} parent=5 // pred_region
        %s341 = ssub.s32 %s23, 1
        // Predicated region
        $region13: #{tpu_custom_call.1} parent=11 // pred_check
          %p342 = pneg %p70
        $region14: #{tpu_custom_call.1} parent=11 // pred_check_branch
          %344 = sbr.rel (%p342) target = $region16
        $region15: #{tpu_custom_call.1} parent=11 // pred_region
          _
        $region16: #{tpu_custom_call.1} parent=11 // pred_fallthru
          _
        // Predicated region
        $region17: #{tpu_custom_call.1} parent=11 // pred_check
          %p345 = pneg %p91
        $region18: #{tpu_custom_call.1} parent=11 // pred_check_branch
          %347 = sbr.rel (%p345) target = $region20
        $region19: #{tpu_custom_call.1} parent=11 // pred_region
          _
        $region20: #{tpu_custom_call.1} parent=11 // pred_fallthru
          _
        // Predicated region
        $region21: #{tpu_custom_call.1} parent=11 // pred_check
          %p348 = pneg %p112
        $region22: #{tpu_custom_call.1} parent=11 // pred_check_branch
          %350 = sbr.rel (%p348) target = $region24
        $region23: #{tpu_custom_call.1} parent=11 // pred_region
          _
        $region24: #{tpu_custom_call.1} parent=11 // pred_fallthru
          _
        // Predicated region
        $region25: #{tpu_custom_call.1} parent=11 // pred_check
          %p351 = pneg %p133
        $region26: #{tpu_custom_call.1} parent=11 // pred_check_branch
          %353 = sbr.rel (%p351) target = $region28
        $region27: #{tpu_custom_call.1} parent=11 // pred_region
          _
        $region28: #{tpu_custom_call.1} parent=11 // pred_fallthru
          _
        // Predicated region
        $region29: #{tpu_custom_call.1} parent=11 // pred_check
          %p354 = pneg %p154
        $region30: #{tpu_custom_call.1} parent=11 // pred_check_branch
          %356 = sbr.rel (%p354) target = $region32
        $region31: #{tpu_custom_call.1} parent=11 // pred_region
          _
        $region32: #{tpu_custom_call.1} parent=11 // pred_fallthru
          _
        // Predicated region
        $region33: #{tpu_custom_call.1} parent=11 // pred_check
          %p357 = pneg %p175
        $region34: #{tpu_custom_call.1} parent=11 // pred_check_branch
          %359 = sbr.rel (%p357) target = $region36
        $region35: #{tpu_custom_call.1} parent=11 // pred_region
          _
        $region36: #{tpu_custom_call.1} parent=11 // pred_fallthru
          _
        // Predicated region
        $region37: #{tpu_custom_call.1} parent=11 // pred_check
          %p360 = pneg %p196
        $region38: #{tpu_custom_call.1} parent=11 // pred_check_branch
          %362 = sbr.rel (%p360) target = $region40
        $region39: #{tpu_custom_call.1} parent=11 // pred_region
          %s364 = ssub.s32 256, 256
          %365 = vsyncadd [#allocation4], %s364
          %s366 = sshll.u32 [#allocation3], 4
          %s367 = int_to_ptr.vmem [resolvable:$true] %s366
          %372 = dma.hbm_to_vmem [thread:$0]  %s7, 256, %s367, [#allocation4], 64, 64, 4
        $region40: #{tpu_custom_call.1} parent=11 // pred_fallthru
          _
        // Predicated region
        $region41: #{tpu_custom_call.1} parent=11 // pred_check
          %p373 = pneg %p217
        $region42: #{tpu_custom_call.1} parent=11 // pred_check_branch
          %375 = sbr.rel (%p373) target = $region44
        $region43: #{tpu_custom_call.1} parent=11 // pred_region
          _
        $region44: #{tpu_custom_call.1} parent=11 // pred_fallthru
          _
        // Predicated region
        $region45: #{tpu_custom_call.1} parent=11 // pred_check
          %p376 = pneg %p238
        $region46: #{tpu_custom_call.1} parent=11 // pred_check_branch
          %378 = sbr.rel (%p376) target = $region48
        $region47: #{tpu_custom_call.1} parent=11 // pred_region
          _
        $region48: #{tpu_custom_call.1} parent=11 // pred_fallthru
          _
        // Predicated region
        $region49: #{tpu_custom_call.1} parent=11 // pred_check
          %p379 = pneg %p259
        $region50: #{tpu_custom_call.1} parent=11 // pred_check_branch
          %381 = sbr.rel (%p379) target = $region52
        $region51: #{tpu_custom_call.1} parent=11 // pred_region
          _
        $region52: #{tpu_custom_call.1} parent=11 // pred_fallthru
          _
        // Predicated region
        $region53: #{tpu_custom_call.1} parent=11 // pred_check
          %p382 = pneg %p280
        $region54: #{tpu_custom_call.1} parent=11 // pred_check_branch
          %384 = sbr.rel (%p382) target = $region56
        $region55: #{tpu_custom_call.1} parent=11 // pred_region
          _
        $region56: #{tpu_custom_call.1} parent=11 // pred_fallthru
          _
        // Predicated region
        $region57: #{tpu_custom_call.1} parent=11 // pred_check
          %p385 = pneg %p301
        $region58: #{tpu_custom_call.1} parent=11 // pred_check_branch
          %387 = sbr.rel (%p385) target = $region60
        $region59: #{tpu_custom_call.1} parent=11 // pred_region
          _
        $region60: #{tpu_custom_call.1} parent=11 // pred_fallthru
          _
      $region12: #{tpu_custom_call.1} parent=5 // pred_fallthru
        _
      %p388 = scmp.lt.s32.totalorder %s23, 2
      // Predicated region
      $region61: #{tpu_custom_call.1} parent=5 // pred_check
        %p389 = pneg %p388
      $region62: #{tpu_custom_call.1} parent=5 // pred_check_branch
        %391 = sbr.rel (%p389) target = $region64
      $region63: #{tpu_custom_call.1} parent=5 // pred_region
        // Predicated region
        $region65: #{tpu_custom_call.1} parent=63 // pred_check
          %p392 = pneg %p43
        $region66: #{tpu_custom_call.1} parent=63 // pred_check_branch
          %394 = sbr.rel (%p392) target = $region68
        $region67: #{tpu_custom_call.1} parent=63 // pred_region
          %p395 = scmp.lt.s32.totalorder %s23, 1
          %s396 = scalar_select %p395, %s23, 1
          %s397 = smul.addr %s396, 8
          %s398 = scalar_lea.vmem %s0, %s397
        $region68: #{tpu_custom_call.1} parent=63 // pred_fallthru
          _
      $region64: #{tpu_custom_call.1} parent=5 // pred_fallthru
        _
      %p399 = scmp.le.s32.totalorder 1, %s23
      %p400 = scmp.lt.s32.totalorder %s23, 3
      %p401 = pnand %p399, %p400
      %p402 = pneg %p401
      // Predicated region
      $region69: #{tpu_custom_call.1} parent=5 // pred_check
        _
      $region70: #{tpu_custom_call.1} parent=5 // pred_check_branch
        %404 = sbr.rel (%p401) target = $region72
      $region71: #{tpu_custom_call.1} parent=5 // pred_region
        %s405 = ssub.s32 %s23, 1
        // Predicated region
        $region73: #{tpu_custom_call.1} parent=71 // pred_check
          %p406 = pneg %p196
        $region74: #{tpu_custom_call.1} parent=71 // pred_check_branch
          %408 = sbr.rel (%p406) target = $region76
        $region75: #{tpu_custom_call.1} parent=71 // pred_region
          %409 = dma.done [#allocation4], 256
        $region76: #{tpu_custom_call.1} parent=71 // pred_fallthru
          _
        %p410 = scmp.lt.s32.totalorder %s28, 1
        %s411 = scalar_select %p410, %s28, 1
        %s412 = smul.addr %s411, 8
        %s413 = scalar_lea.vmem %s0, %s412
        %p414 = pneg %p49
        %p415 = pneg %p46
        %p416 = pneg %p70
        %p417 = pneg %p67
        %p418 = pneg %p91
        %p419 = pneg %p88
        %p420 = pneg %p112
        %p421 = pneg %p109
        %p422 = pneg %p133
        %p423 = pneg %p130
        %p424 = pneg %p154
        %p425 = pneg %p151
        %p426 = pneg %p175
        %p427 = pneg %p172
        %p428 = pneg %p196
        %p429 = pneg %p193
        %p430 = pneg %p217
        %p431 = pneg %p214
        %p432 = pneg %p238
        %p433 = pneg %p235
        %p434 = pneg %p259
        %p435 = pneg %p256
        %p436 = pneg %p280
        %p437 = pneg %p277
        %p438 = pneg %p301
        %p439 = pneg %p298
        %p440 = pneg %p327
        %p441 = pneg %p324
        %s442 = sand.u32 %s314, 1
        %s443 = scalar_lea.sflag [#allocation5], %s442
        %s444 = sand.u32 %s314, 1
        %s445 = smul.addr %s444, 8
        %s446 = scalar_lea.vmem [#allocation6], %s445
        %p447 = scmp.lt.s32.totalorder %s28, 1
        %s448 = scalar_select %p447, %s28, 1
        %s449 = smul.addr %s448, 8
        %s450 = scalar_lea.vmem %s0, %s449
        %v452 = vld [vmem:[%s450] sm:$0xff]
        %v453 = vpack.c.bf16 %v452, %v452
        %v454 = vld [vmem:[%s1] sm:$0xf]
        %v455 = vld [vmem:[%s1 + $0x4] sm:$0xf]
        %v456 = vld [vmem:[%s1 + $0x8] sm:$0xf]
        %v457 = vld [vmem:[%s1 + $0xc] sm:$0xf]
        %v458 = vld [vmem:[%s2] sm:$0x1]
        %v460 = vlaneseq
        %v461 = vshrl.u32 %v460, 7
        %v462 = vsub.s32 0, %v461
        %v463 = vrot.slane %v458, %v462
        %v469 = vunpack.c.l.b16 %v454
        %v470 = vunpack.c.l.b16 %v455
        %v471 = vunpack.c.l.b16 %v456
        %v472 = vunpack.c.l.b16 %v457
        %v473 = vpack.c.b16 %v470, %v469
        %v474 = vpack.c.b16 %v472, %v471
        %vm477 = vcmask 261120
        %v479 = vsel %vm477, %v453, 0
        %481 = vmatprep.subr.bf16.mxu0 0
        %482 = vmatpush1.bf16.msra.mxu0 %v473
        %483 = vmatprep.subr.bf16.mxu0 0
        %484 = vmatpush1.bf16.msra.mxu0 %v474
        %485 = vmatprep.subr.bf16.mxu0 0
        %486 = vmatpush1.bf16.msra.mxu0 0
        %487 = vmatprep.subr.bf16.mxu0 0
        %488 = vmatpush1.bf16.msra.mxu0 0
        %489 = vmatprep.subr.bf16.mxu0 0
        %490 = vmatpush1.bf16.msra.mxu0 0
        %491 = vmatprep.subr.bf16.mxu0 0
        %492 = vmatpush1.bf16.msra.mxu0 0
        %493 = vmatprep.subr.bf16.mxu0 0
        %494 = vmatpush1.bf16.msra.mxu0 0
        %495 = vmatprep.subr.bf16.mxu0 0
        %496 = vmatpush1.bf16.msra.mxu0 0
        %497 = vmatprep.subr.bf16.mxu0 0
        %498 = vmatpush1.bf16.msra.mxu0 0
        %499 = vmatprep.subr.bf16.mxu0 0
        %500 = vmatpush1.bf16.msra.mxu0 0
        %501 = vmatprep.subr.bf16.mxu0 0
        %502 = vmatpush1.bf16.msra.mxu0 0
        %503 = vmatprep.subr.bf16.mxu0 0
        %504 = vmatpush1.bf16.msra.mxu0 0
        %505 = vmatprep.subr.bf16.mxu0 0
        %506 = vmatpush1.bf16.msra.mxu0 0
        %507 = vmatprep.subr.bf16.mxu0 0
        %508 = vmatpush1.bf16.msra.mxu0 0
        %509 = vmatprep.subr.bf16.mxu0 0
        %510 = vmatpush1.bf16.msra.mxu0 0
        %511 = vmatprep.subr.bf16.mxu0 0
        %512 = vmatpush1.bf16.msra.mxu0 0
        %513 = vmatprep.mubr.bf16.mxu0 0
        %514 = vmatmul.mubr.bf16.gmra.mrb[0].mxu0 %v479
        %v515 = vpop.f32.mrb[0].mxu0
        %v516 = vadd.f32 %v463, %v515
        %v517 = vpop.f32.mrb[0].mxu0
        %v518 = vpop.f32.mrb[0].mxu0
        %v519 = vpop.f32.mrb[0].mxu0
        %520 = vdwg.mxu0
        %v521 = vpack.c.bf16 %v516, %v516
        %523 = vrot.lane.b32.xlu0 %v521, 96
        %v524 = vpop.permute.xlu0 %523
        %vm525 = vcmask 64512
        %v527 = vsel %vm525, %v521, 0
        %v530 = vsel %vm525, %v524, 0
        %532 = vmatprep.subr.bf16.mxu0 0
        %533 = vmatpush1.bf16.xpose.msra.mxu0 %v530
        %534 = vmatprep.subr.bf16.mxu0 0
        %535 = vmatpush1.bf16.xpose.msra.mxu0 0
        %536 = vmatprep.subr.bf16.mxu0 0
        %537 = vmatpush1.bf16.xpose.msra.mxu0 0
        %538 = vmatprep.subr.bf16.mxu0 0
        %539 = vmatpush1.bf16.xpose.msra.mxu0 0
        %540 = vmatprep.subr.bf16.mxu0 0
        %541 = vmatpush1.bf16.xpose.msra.mxu0 0
        %542 = vmatprep.subr.bf16.mxu0 0
        %543 = vmatpush1.bf16.xpose.msra.mxu0 0
        %544 = vmatprep.subr.bf16.mxu0 0
        %545 = vmatpush1.bf16.xpose.msra.mxu0 0
        %546 = vmatprep.subr.bf16.mxu0 0
        %547 = vmatpush1.bf16.xpose.msra.mxu0 0
        %548 = vmatprep.subr.bf16.mxu0 0
        %549 = vmatpush1.bf16.xpose.msra.mxu0 0
        %550 = vmatprep.subr.bf16.mxu0 0
        %551 = vmatpush1.bf16.xpose.msra.mxu0 0
        %552 = vmatprep.subr.bf16.mxu0 0
        %553 = vmatpush1.bf16.xpose.msra.mxu0 0
        %554 = vmatprep.subr.bf16.mxu0 0
        %555 = vmatpush1.bf16.xpose.msra.mxu0 0
        %556 = vmatprep.subr.bf16.mxu0 0
        %557 = vmatpush1.bf16.xpose.msra.mxu0 0
        %558 = vmatprep.subr.bf16.mxu0 0
        %559 = vmatpush1.bf16.xpose.msra.mxu0 0
        %560 = vmatprep.subr.bf16.mxu0 0
        %561 = vmatpush1.bf16.xpose.msra.mxu0 0
        %562 = vmatprep.subr.bf16.mxu0 0
        %563 = vmatpush1.bf16.xpose.msra.mxu0 0
        %564 = vmatprep.mubr.bf16.mxu0 0
        %565 = vmatmul.mubr.bf16.gmra.mrb[0].mxu0 %v527
        %v566 = vpop.f32.mrb[0].mxu0
        %v567 = vadd.f32 0.0, %v566
        %v568 = vpop.f32.mrb[0].mxu0
        %v569 = vpop.f32.mrb[0].mxu0
        %v570 = vpop.f32.mrb[0].mxu0
        %571 = vdwg.mxu0
        %v572 = vsel %vm525, %v567, -inf
        %573 = vmax.xlane.f32.xlu0 %v572
        %v574 = vpop.xlane.xlu0 %573
        %v575 = vsub.f32 %v567, %v574
        %v576 = vmul.f32 %v575, 1.442695
        %v577 = vpow.pop %v576
        %v578 = vsel %vm525, %v577, 0.0
        %579 = vadd.xlane.f32.xlu0 %v578
        %v580 = vpop.xlane.xlu0 %579
        %v581 = vrcp.pop %v580
        %v582 = vmul.f32 %v577, %v581
        %v583 = vpack.c.bf16 %v582, %v582
        %584 = vrot.lane.b32.xlu0 %v521, 64
        %v585 = vpop.permute.xlu0 %584
        %v587 = vsel %vm525, %v583, 0
        %vm589 = vcmask 1043456
        %v591 = vsel %vm589, %v585, 0
        %593 = vmatprep.subr.bf16.mxu0 0
        %594 = vmatpush1.bf16.msra.mxu0 %v591
        %595 = vmatprep.subr.bf16.mxu0 0
        %596 = vmatpush1.bf16.msra.mxu0 0
        %597 = vmatprep.subr.bf16.mxu0 0
        %598 = vmatpush1.bf16.msra.mxu0 0
        %599 = vmatprep.subr.bf16.mxu0 0
        %600 = vmatpush1.bf16.msra.mxu0 0
        %601 = vmatprep.subr.bf16.mxu0 0
        %602 = vmatpush1.bf16.msra.mxu0 0
        %603 = vmatprep.subr.bf16.mxu0 0
        %604 = vmatpush1.bf16.msra.mxu0 0
        %605 = vmatprep.subr.bf16.mxu0 0
        %606 = vmatpush1.bf16.msra.mxu0 0
        %607 = vmatprep.subr.bf16.mxu0 0
        %608 = vmatpush1.bf16.msra.mxu0 0
        %609 = vmatprep.subr.bf16.mxu0 0
        %610 = vmatpush1.bf16.msra.mxu0 0
        %611 = vmatprep.subr.bf16.mxu0 0
        %612 = vmatpush1.bf16.msra.mxu0 0
        %613 = vmatprep.subr.bf16.mxu0 0
        %614 = vmatpush1.bf16.msra.mxu0 0
        %615 = vmatprep.subr.bf16.mxu0 0
        %616 = vmatpush1.bf16.msra.mxu0 0
        %617 = vmatprep.subr.bf16.mxu0 0
        %618 = vmatpush1.bf16.msra.mxu0 0
        %619 = vmatprep.subr.bf16.mxu0 0
        %620 = vmatpush1.bf16.msra.mxu0 0
        %621 = vmatprep.subr.bf16.mxu0 0
        %622 = vmatpush1.bf16.msra.mxu0 0
        %623 = vmatprep.subr.bf16.mxu0 0
        %624 = vmatpush1.bf16.msra.mxu0 0
        %625 = vmatprep.mubr.bf16.mxu0 0
        %626 = vmatmul.mubr.bf16.gmra.mrb[0].mxu0 %v587
        %v627 = vpop.f32.mrb[0].mxu0
        %v628 = vadd.f32 0.0, %v627
        %v629 = vpop.f32.mrb[0].mxu0
        %v630 = vpop.f32.mrb[0].mxu0
        %v631 = vpop.f32.mrb[0].mxu0
        %632 = vdwg.mxu0
        %v633 = vpack.c.bf16 %v628, %v628
        %vm634 = vcmask 60416
        %635 = vst.msk [vmem:[#allocation2] sm:$0xf] %vm634, %v633
        %636 = vrot.lane.b32.xlu0 %v521, 120
        %v637 = vpop.permute.xlu0 %636
        %638 = vrot.lane.b32.xlu0 %v521, 88
        %v639 = vpop.permute.xlu0 %638
        %v641 = vsel %vm525, %v637, 0
        %v644 = vsel %vm525, %v639, 0
        %646 = vmatprep.subr.bf16.mxu0 0
        %647 = vmatpush1.bf16.xpose.msra.mxu0 %v644
        %648 = vmatprep.subr.bf16.mxu0 0
        %649 = vmatpush1.bf16.xpose.msra.mxu0 0
        %650 = vmatprep.subr.bf16.mxu0 0
        %651 = vmatpush1.bf16.xpose.msra.mxu0 0
        %652 = vmatprep.subr.bf16.mxu0 0
        %653 = vmatpush1.bf16.xpose.msra.mxu0 0
        %654 = vmatprep.subr.bf16.mxu0 0
        %655 = vmatpush1.bf16.xpose.msra.mxu0 0
        %656 = vmatprep.subr.bf16.mxu0 0
        %657 = vmatpush1.bf16.xpose.msra.mxu0 0
        %658 = vmatprep.subr.bf16.mxu0 0
        %659 = vmatpush1.bf16.xpose.msra.mxu0 0
        %660 = vmatprep.subr.bf16.mxu0 0
        %661 = vmatpush1.bf16.xpose.msra.mxu0 0
        %662 = vmatprep.subr.bf16.mxu0 0
        %663 = vmatpush1.bf16.xpose.msra.mxu0 0
        %664 = vmatprep.subr.bf16.mxu0 0
        %665 = vmatpush1.bf16.xpose.msra.mxu0 0
        %666 = vmatprep.subr.bf16.mxu0 0
        %667 = vmatpush1.bf16.xpose.msra.mxu0 0
        %668 = vmatprep.subr.bf16.mxu0 0
        %669 = vmatpush1.bf16.xpose.msra.mxu0 0
        %670 = vmatprep.subr.bf16.mxu0 0
        %671 = vmatpush1.bf16.xpose.msra.mxu0 0
        %672 = vmatprep.subr.bf16.mxu0 0
        %673 = vmatpush1.bf16.xpose.msra.mxu0 0
        %674 = vmatprep.subr.bf16.mxu0 0
        %675 = vmatpush1.bf16.xpose.msra.mxu0 0
        %676 = vmatprep.subr.bf16.mxu0 0
        %677 = vmatpush1.bf16.xpose.msra.mxu0 0
        %678 = vmatprep.mubr.bf16.mxu0 0
        %679 = vmatmul.mubr.bf16.gmra.mrb[0].mxu0 %v641
        %v680 = vpop.f32.mrb[0].mxu0
        %v681 = vadd.f32 0.0, %v680
        %v682 = vpop.f32.mrb[0].mxu0
        %v683 = vpop.f32.mrb[0].mxu0
        %v684 = vpop.f32.mrb[0].mxu0
        %685 = vdwg.mxu0
        %v686 = vsel %vm525, %v681, -inf
        %687 = vmax.xlane.f32.xlu0 %v686
        %v688 = vpop.xlane.xlu0 %687
        %v689 = vsub.f32 %v681, %v688
        %v690 = vmul.f32 %v689, 1.442695
        %v691 = vpow.pop %v690
        %v692 = vsel %vm525, %v691, 0.0
        %693 = vadd.xlane.f32.xlu0 %v692
        %v694 = vpop.xlane.xlu0 %693
        %v695 = vrcp.pop %v694
        %v696 = vmul.f32 %v691, %v695
        %v697 = vpack.c.bf16 %v696, %v696
        %698 = vrot.lane.b32.xlu0 %v521, 56
        %v699 = vpop.permute.xlu0 %698
        %v701 = vsel %vm525, %v697, 0
        %v704 = vsel %vm589, %v699, 0
        %706 = vmatprep.subr.bf16.mxu0 0
        %707 = vmatpush1.bf16.msra.mxu0 %v704
        %708 = vmatprep.subr.bf16.mxu0 0
        %709 = vmatpush1.bf16.msra.mxu0 0
        %710 = vmatprep.subr.bf16.mxu0 0
        %711 = vmatpush1.bf16.msra.mxu0 0
        %712 = vmatprep.subr.bf16.mxu0 0
        %713 = vmatpush1.bf16.msra.mxu0 0
        %714 = vmatprep.subr.bf16.mxu0 0
        %715 = vmatpush1.bf16.msra.mxu0 0
        %716 = vmatprep.subr.bf16.mxu0 0
        %717 = vmatpush1.bf16.msra.mxu0 0
        %718 = vmatprep.subr.bf16.mxu0 0
        %719 = vmatpush1.bf16.msra.mxu0 0
        %720 = vmatprep.subr.bf16.mxu0 0
        %721 = vmatpush1.bf16.msra.mxu0 0
        %722 = vmatprep.subr.bf16.mxu0 0
        %723 = vmatpush1.bf16.msra.mxu0 0
        %724 = vmatprep.subr.bf16.mxu0 0
        %725 = vmatpush1.bf16.msra.mxu0 0
        %726 = vmatprep.subr.bf16.mxu0 0
        %727 = vmatpush1.bf16.msra.mxu0 0
        %728 = vmatprep.subr.bf16.mxu0 0
        %729 = vmatpush1.bf16.msra.mxu0 0
        %730 = vmatprep.subr.bf16.mxu0 0
        %731 = vmatpush1.bf16.msra.mxu0 0
        %732 = vmatprep.subr.bf16.mxu0 0
        %733 = vmatpush1.bf16.msra.mxu0 0
        %734 = vmatprep.subr.bf16.mxu0 0
        %735 = vmatpush1.bf16.msra.mxu0 0
        %736 = vmatprep.subr.bf16.mxu0 0
        %737 = vmatpush1.bf16.msra.mxu0 0
        %738 = vmatprep.mubr.bf16.mxu0 0
        %739 = vmatmul.mubr.bf16.gmra.mrb[0].mxu0 %v701
        %v740 = vpop.f32.mrb[0].mxu0
        %v741 = vadd.f32 0.0, %v740
        %v742 = vpop.f32.mrb[0].mxu0
        %v743 = vpop.f32.mrb[0].mxu0
        %v744 = vpop.f32.mrb[0].mxu0
        %745 = vdwg.mxu0
        %v746 = vpack.c.bf16 %v741, %v741
        %v748 = vunpack.c.l.b16 %v746
        %v749 = vpack.c.b16 %v748, %v748
        %750 = vrot.lane.b32.xlu0 %v749, 8
        %v751 = vpop.permute.xlu0 %750
        %vm753 = vcmask 126016
        %754 = vst.msk [vmem:[#allocation2] sm:$0xf] %vm753, %v751
        %755 = vrot.lane.b32.xlu0 %v521, 112
        %v756 = vpop.permute.xlu0 %755
        %757 = vrot.lane.b32.xlu0 %v521, 80
        %v758 = vpop.permute.xlu0 %757
        %v760 = vsel %vm525, %v756, 0
        %v763 = vsel %vm525, %v758, 0
        %765 = vmatprep.subr.bf16.mxu0 0
        %766 = vmatpush1.bf16.xpose.msra.mxu0 %v763
        %767 = vmatprep.subr.bf16.mxu0 0
        %768 = vmatpush1.bf16.xpose.msra.mxu0 0
        %769 = vmatprep.subr.bf16.mxu0 0
        %770 = vmatpush1.bf16.xpose.msra.mxu0 0
        %771 = vmatprep.subr.bf16.mxu0 0
        %772 = vmatpush1.bf16.xpose.msra.mxu0 0
        %773 = vmatprep.subr.bf16.mxu0 0
        %774 = vmatpush1.bf16.xpose.msra.mxu0 0
        %775 = vmatprep.subr.bf16.mxu0 0
        %776 = vmatpush1.bf16.xpose.msra.mxu0 0
        %777 = vmatprep.subr.bf16.mxu0 0
        %778 = vmatpush1.bf16.xpose.msra.mxu0 0
        %779 = vmatprep.subr.bf16.mxu0 0
        %780 = vmatpush1.bf16.xpose.msra.mxu0 0
        %781 = vmatprep.subr.bf16.mxu0 0
        %782 = vmatpush1.bf16.xpose.msra.mxu0 0
        %783 = vmatprep.subr.bf16.mxu0 0
        %784 = vmatpush1.bf16.xpose.msra.mxu0 0
        %785 = vmatprep.subr.bf16.mxu0 0
        %786 = vmatpush1.bf16.xpose.msra.mxu0 0
        %787 = vmatprep.subr.bf16.mxu0 0
        %788 = vmatpush1.bf16.xpose.msra.mxu0 0
        %789 = vmatprep.subr.bf16.mxu0 0
        %790 = vmatpush1.bf16.xpose.msra.mxu0 0
        %791 = vmatprep.subr.bf16.mxu0 0
        %792 = vmatpush1.bf16.xpose.msra.mxu0 0
        %793 = vmatprep.subr.bf16.mxu0 0
        %794 = vmatpush1.bf16.xpose.msra.mxu0 0
        %795 = vmatprep.subr.bf16.mxu0 0
        %796 = vmatpush1.bf16.xpose.msra.mxu0 0
        %797 = vmatprep.mubr.bf16.mxu0 0
        %798 = vmatmul.mubr.bf16.gmra.mrb[0].mxu0 %v760
        %v799 = vpop.f32.mrb[0].mxu0
        %v800 = vadd.f32 0.0, %v799
        %v801 = vpop.f32.mrb[0].mxu0
        %v802 = vpop.f32.mrb[0].mxu0
        %v803 = vpop.f32.mrb[0].mxu0
        %804 = vdwg.mxu0
        %v805 = vsel %vm525, %v800, -inf
        %806 = vmax.xlane.f32.xlu0 %v805
        %v807 = vpop.xlane.xlu0 %806
        %v808 = vsub.f32 %v800, %v807
        %v809 = vmul.f32 %v808, 1.442695
        %v810 = vpow.pop %v809
        %v811 = vsel %vm525, %v810, 0.0
        %812 = vadd.xlane.f32.xlu0 %v811
        %v813 = vpop.xlane.xlu0 %812
        %v814 = vrcp.pop %v813
        %v815 = vmul.f32 %v810, %v814
        %v816 = vpack.c.bf16 %v815, %v815
        %817 = vrot.lane.b32.xlu0 %v521, 48
        %v818 = vpop.permute.xlu0 %817
        %v820 = vsel %vm525, %v816, 0
        %v823 = vsel %vm589, %v818, 0
        %825 = vmatprep.subr.bf16.mxu0 0
        %826 = vmatpush1.bf16.msra.mxu0 %v823
        %827 = vmatprep.subr.bf16.mxu0 0
        %828 = vmatpush1.bf16.msra.mxu0 0
        %829 = vmatprep.subr.bf16.mxu0 0
        %830 = vmatpush1.bf16.msra.mxu0 0
        %831 = vmatprep.subr.bf16.mxu0 0
        %832 = vmatpush1.bf16.msra.mxu0 0
        %833 = vmatprep.subr.bf16.mxu0 0
        %834 = vmatpush1.bf16.msra.mxu0 0
        %835 = vmatprep.subr.bf16.mxu0 0
        %836 = vmatpush1.bf16.msra.mxu0 0
        %837 = vmatprep.subr.bf16.mxu0 0
        %838 = vmatpush1.bf16.msra.mxu0 0
        %839 = vmatprep.subr.bf16.mxu0 0
        %840 = vmatpush1.bf16.msra.mxu0 0
        %841 = vmatprep.subr.bf16.mxu0 0
        %842 = vmatpush1.bf16.msra.mxu0 0
        %843 = vmatprep.subr.bf16.mxu0 0
        %844 = vmatpush1.bf16.msra.mxu0 0
        %845 = vmatprep.subr.bf16.mxu0 0
        %846 = vmatpush1.bf16.msra.mxu0 0
        %847 = vmatprep.subr.bf16.mxu0 0
        %848 = vmatpush1.bf16.msra.mxu0 0
        %849 = vmatprep.subr.bf16.mxu0 0
        %850 = vmatpush1.bf16.msra.mxu0 0
        %851 = vmatprep.subr.bf16.mxu0 0
        %852 = vmatpush1.bf16.msra.mxu0 0
        %853 = vmatprep.subr.bf16.mxu0 0
        %854 = vmatpush1.bf16.msra.mxu0 0
        %855 = vmatprep.subr.bf16.mxu0 0
        %856 = vmatpush1.bf16.msra.mxu0 0
        %857 = vmatprep.mubr.bf16.mxu0 0
        %858 = vmatmul.mubr.bf16.gmra.mrb[0].mxu0 %v820
        %v859 = vpop.f32.mrb[0].mxu0
        %v860 = vadd.f32 0.0, %v859
        %v861 = vpop.f32.mrb[0].mxu0
        %v862 = vpop.f32.mrb[0].mxu0
        %v863 = vpop.f32.mrb[0].mxu0
        %864 = vdwg.mxu0
        %v865 = vpack.c.bf16 %v860, %v860
        %v867 = vunpack.c.l.b16 %v865
        %v868 = vpack.c.b16 %v867, %v867
        %869 = vrot.lane.b32.xlu0 %v868, 16
        %v870 = vpop.permute.xlu0 %869
        %vm872 = vcmask 191616
        %873 = vst.msk [vmem:[#allocation2] sm:$0xf] %vm872, %v870
        %874 = vrot.lane.b32.xlu0 %v521, 104
        %v875 = vpop.permute.xlu0 %874
        %876 = vrot.lane.b32.xlu0 %v521, 72
        %v877 = vpop.permute.xlu0 %876
        %v879 = vsel %vm525, %v875, 0
        %v882 = vsel %vm525, %v877, 0
        %884 = vmatprep.subr.bf16.mxu0 0
        %885 = vmatpush1.bf16.xpose.msra.mxu0 %v882
        %886 = vmatprep.subr.bf16.mxu0 0
        %887 = vmatpush1.bf16.xpose.msra.mxu0 0
        %888 = vmatprep.subr.bf16.mxu0 0
        %889 = vmatpush1.bf16.xpose.msra.mxu0 0
        %890 = vmatprep.subr.bf16.mxu0 0
        %891 = vmatpush1.bf16.xpose.msra.mxu0 0
        %892 = vmatprep.subr.bf16.mxu0 0
        %893 = vmatpush1.bf16.xpose.msra.mxu0 0
        %894 = vmatprep.subr.bf16.mxu0 0
        %895 = vmatpush1.bf16.xpose.msra.mxu0 0
        %896 = vmatprep.subr.bf16.mxu0 0
        %897 = vmatpush1.bf16.xpose.msra.mxu0 0
        %898 = vmatprep.subr.bf16.mxu0 0
        %899 = vmatpush1.bf16.xpose.msra.mxu0 0
        %900 = vmatprep.subr.bf16.mxu0 0
        %901 = vmatpush1.bf16.xpose.msra.mxu0 0
        %902 = vmatprep.subr.bf16.mxu0 0
        %903 = vmatpush1.bf16.xpose.msra.mxu0 0
        %904 = vmatprep.subr.bf16.mxu0 0
        %905 = vmatpush1.bf16.xpose.msra.mxu0 0
        %906 = vmatprep.subr.bf16.mxu0 0
        %907 = vmatpush1.bf16.xpose.msra.mxu0 0
        %908 = vmatprep.subr.bf16.mxu0 0
        %909 = vmatpush1.bf16.xpose.msra.mxu0 0
        %910 = vmatprep.subr.bf16.mxu0 0
        %911 = vmatpush1.bf16.xpose.msra.mxu0 0
        %912 = vmatprep.subr.bf16.mxu0 0
        %913 = vmatpush1.bf16.xpose.msra.mxu0 0
        %914 = vmatprep.subr.bf16.mxu0 0
        %915 = vmatpush1.bf16.xpose.msra.mxu0 0
        %916 = vmatprep.mubr.bf16.mxu0 0
        %917 = vmatmul.mubr.bf16.gmra.mrb[0].mxu0 %v879
        %v918 = vpop.f32.mrb[0].mxu0
        %v919 = vadd.f32 0.0, %v918
        %v920 = vpop.f32.mrb[0].mxu0
        %v921 = vpop.f32.mrb[0].mxu0
        %v922 = vpop.f32.mrb[0].mxu0
        %923 = vdwg.mxu0
        %v924 = vsel %vm525, %v919, -inf
        %925 = vmax.xlane.f32.xlu0 %v924
        %v926 = vpop.xlane.xlu0 %925
        %v927 = vsub.f32 %v919, %v926
        %v928 = vmul.f32 %v927, 1.442695
        %v929 = vpow.pop %v928
        %v930 = vsel %vm525, %v929, 0.0
        %931 = vadd.xlane.f32.xlu0 %v930
        %v932 = vpop.xlane.xlu0 %931
        %v933 = vrcp.pop %v932
        %v934 = vmul.f32 %v929, %v933
        %v935 = vpack.c.bf16 %v934, %v934
        %936 = vrot.lane.b32.xlu0 %v521, 40
        %v937 = vpop.permute.xlu0 %936
        %v939 = vsel %vm525, %v935, 0
        %v942 = vsel %vm589, %v937, 0
        %944 = vmatprep.subr.bf16.mxu0 0
        %945 = vmatpush1.bf16.msra.mxu0 %v942
        %946 = vmatprep.subr.bf16.mxu0 0
        %947 = vmatpush1.bf16.msra.mxu0 0
        %948 = vmatprep.subr.bf16.mxu0 0
        %949 = vmatpush1.bf16.msra.mxu0 0
        %950 = vmatprep.subr.bf16.mxu0 0
        %951 = vmatpush1.bf16.msra.mxu0 0
        %952 = vmatprep.subr.bf16.mxu0 0
        %953 = vmatpush1.bf16.msra.mxu0 0
        %954 = vmatprep.subr.bf16.mxu0 0
        %955 = vmatpush1.bf16.msra.mxu0 0
        %956 = vmatprep.subr.bf16.mxu0 0
        %957 = vmatpush1.bf16.msra.mxu0 0
        %958 = vmatprep.subr.bf16.mxu0 0
        %959 = vmatpush1.bf16.msra.mxu0 0
        %960 = vmatprep.subr.bf16.mxu0 0
        %961 = vmatpush1.bf16.msra.mxu0 0
        %962 = vmatprep.subr.bf16.mxu0 0
        %963 = vmatpush1.bf16.msra.mxu0 0
        %964 = vmatprep.subr.bf16.mxu0 0
        %965 = vmatpush1.bf16.msra.mxu0 0
        %966 = vmatprep.subr.bf16.mxu0 0
        %967 = vmatpush1.bf16.msra.mxu0 0
        %968 = vmatprep.subr.bf16.mxu0 0
        %969 = vmatpush1.bf16.msra.mxu0 0
        %970 = vmatprep.subr.bf16.mxu0 0
        %971 = vmatpush1.bf16.msra.mxu0 0
        %972 = vmatprep.subr.bf16.mxu0 0
        %973 = vmatpush1.bf16.msra.mxu0 0
        %974 = vmatprep.subr.bf16.mxu0 0
        %975 = vmatpush1.bf16.msra.mxu0 0
        %976 = vmatprep.mubr.bf16.mxu0 0
        %977 = vmatmul.mubr.bf16.gmra.mrb[0].mxu0 %v939
        %v978 = vpop.f32.mrb[0].mxu0
        %v979 = vadd.f32 0.0, %v978
        %v980 = vpop.f32.mrb[0].mxu0
        %v981 = vpop.f32.mrb[0].mxu0
        %v982 = vpop.f32.mrb[0].mxu0
        %983 = vdwg.mxu0
        %v984 = vpack.c.bf16 %v979, %v979
        %v986 = vunpack.c.l.b16 %v984
        %v987 = vpack.c.b16 %v986, %v986
        %988 = vrot.lane.b32.xlu0 %v987, 24
        %v989 = vpop.permute.xlu0 %988
        %vm991 = vcmask 257216
        %992 = vst.msk [vmem:[#allocation2] sm:$0xf] %vm991, %v989
        %v993 = vld [vmem:[#allocation2] sm:$0xf]
        %v994 = vld [vmem:[%s3] sm:$0xf]
        %v995 = vld [vmem:[%s3 + $0x4] sm:$0xf]
        %v996 = vld [vmem:[%s3 + $0x8] sm:$0xf]
        %v997 = vld [vmem:[%s3 + $0xc] sm:$0xf]
        %v998 = vld [vmem:[%s4] sm:$0x1]
        %v1000 = vlaneseq
        %v1001 = vshrl.u32 %v1000, 7
        %v1002 = vsub.s32 0, %v1001
        %v1003 = vrot.slane %v998, %v1002
        %v1009 = vunpack.c.l.b16 %v994
        %v1010 = vunpack.c.l.b16 %v995
        %v1011 = vunpack.c.l.b16 %v996
        %v1012 = vunpack.c.l.b16 %v997
        %v1013 = vpack.c.b16 %v1010, %v1009
        %v1014 = vpack.c.b16 %v1012, %v1011
        %v1018 = vsel %vm477, %v993, 0
        %1020 = vmatprep.subr.bf16.mxu0 0
        %1021 = vmatpush1.bf16.msra.mxu0 %v1013
        %1022 = vmatprep.subr.bf16.mxu0 0
        %1023 = vmatpush1.bf16.msra.mxu0 %v1014
        %1024 = vmatprep.subr.bf16.mxu0 0
        %1025 = vmatpush1.bf16.msra.mxu0 0
        %1026 = vmatprep.subr.bf16.mxu0 0
        %1027 = vmatpush1.bf16.msra.mxu0 0
        %1028 = vmatprep.subr.bf16.mxu0 0
        %1029 = vmatpush1.bf16.msra.mxu0 0
        %1030 = vmatprep.subr.bf16.mxu0 0
        %1031 = vmatpush1.bf16.msra.mxu0 0
        %1032 = vmatprep.subr.bf16.mxu0 0
        %1033 = vmatpush1.bf16.msra.mxu0 0
        %1034 = vmatprep.subr.bf16.mxu0 0
        %1035 = vmatpush1.bf16.msra.mxu0 0
        %1036 = vmatprep.subr.bf16.mxu0 0
        %1037 = vmatpush1.bf16.msra.mxu0 0
        %1038 = vmatprep.subr.bf16.mxu0 0
        %1039 = vmatpush1.bf16.msra.mxu0 0
        %1040 = vmatprep.subr.bf16.mxu0 0
        %1041 = vmatpush1.bf16.msra.mxu0 0
        %1042 = vmatprep.subr.bf16.mxu0 0
        %1043 = vmatpush1.bf16.msra.mxu0 0
        %1044 = vmatprep.subr.bf16.mxu0 0
        %1045 = vmatpush1.bf16.msra.mxu0 0
        %1046 = vmatprep.subr.bf16.mxu0 0
        %1047 = vmatpush1.bf16.msra.mxu0 0
        %1048 = vmatprep.subr.bf16.mxu0 0
        %1049 = vmatpush1.bf16.msra.mxu0 0
        %1050 = vmatprep.subr.bf16.mxu0 0
        %1051 = vmatpush1.bf16.msra.mxu0 0
        %1052 = vmatprep.mubr.bf16.mxu0 0
        %1053 = vmatmul.mubr.bf16.gmra.mrb[0].mxu0 %v1018
        %v1054 = vpop.f32.mrb[0].mxu0
        %v1055 = vadd.f32 %v1003, %v1054
        %v1056 = vpop.f32.mrb[0].mxu0
        %v1057 = vpop.f32.mrb[0].mxu0
        %v1058 = vpop.f32.mrb[0].mxu0
        %1059 = vdwg.mxu0
        %v1060 = vadd.f32 %v452, %v1055
        %v1061 = vld [vmem:[%s5] sm:$0x1]
        %v1062 = vld [vmem:[%s6] sm:$0x1]
        %v1063 = vsel %vm477, %v1060, 0.0
        %1064 = vadd.xlane.f32.xlu0 %v1063
        %v1065 = vpop.xlane.xlu0 %1064
        %v1066 = vmul.f32 %v1065, 0.03125
        %v1067 = vmul.f32 %v1060, %v1060
        %v1068 = vsel %vm477, %v1067, 0.0
        %1069 = vadd.xlane.f32.xlu0 %v1068
        %v1070 = vpop.xlane.xlu0 %1069
        %v1071 = vmul.f32 %v1070, 0.03125
        %v1072 = vmul.f32 %v1066, %v1066
        %v1073 = vsub.f32 %v1071, %v1072
        %v1074 = vadd.f32 %v1073, 1e-05
        %v1075 = vrsqrt.pop %v1074
        %v1076 = vsub.f32 %v1060, %v1066
        %v1077 = vmul.f32 %v1076, %v1075
        %v1079 = vlaneseq
        %v1080 = vshrl.u32 %v1079, 7
        %v1081 = vsub.s32 0, %v1080
        %v1082 = vrot.slane %v1061, %v1081
        %v1084 = vmul.f32 %v1077, %v1082
        %v1086 = vlaneseq
        %v1087 = vshrl.u32 %v1086, 7
        %v1088 = vsub.s32 0, %v1087
        %v1089 = vrot.slane %v1062, %v1088
        %v1091 = vadd.f32 %v1084, %v1089
        %v1092 = vpack.c.bf16 %v1091, %v1091
        %v1093 = vld [vmem:[#allocation3] sm:$0xf]
        %v1094 = vld [vmem:[#allocation3 + $0x4] sm:$0xf]
        %v1095 = vld [vmem:[#allocation3 + $0x8] sm:$0xf]
        %v1096 = vld [vmem:[#allocation3 + $0xc] sm:$0xf]
        %v1097 = vld [vmem:[%s8] sm:$0x1]
        %v1099 = vlaneseq
        %v1100 = vshrl.u32 %v1099, 7
        %v1101 = vsub.s32 0, %v1100
        %v1102 = vrot.slane %v1097, %v1101
        %v1108 = vunpack.c.l.b16 %v1093
        %v1109 = vunpack.c.l.b16 %v1094
        %v1110 = vunpack.c.l.b16 %v1095
        %v1111 = vunpack.c.l.b16 %v1096
        %v1112 = vpack.c.b16 %v1109, %v1108
        %v1113 = vpack.c.b16 %v1111, %v1110
        %v1117 = vsel %vm477, %v1092, 0
        %1119 = vmatprep.subr.bf16.mxu0 0
        %1120 = vmatpush1.bf16.msra.mxu0 %v1112
        %1121 = vmatprep.subr.bf16.mxu0 0
        %1122 = vmatpush1.bf16.msra.mxu0 %v1113
        %1123 = vmatprep.subr.bf16.mxu0 0
        %1124 = vmatpush1.bf16.msra.mxu0 0
        %1125 = vmatprep.subr.bf16.mxu0 0
        %1126 = vmatpush1.bf16.msra.mxu0 0
        %1127 = vmatprep.subr.bf16.mxu0 0
        %1128 = vmatpush1.bf16.msra.mxu0 0
        %1129 = vmatprep.subr.bf16.mxu0 0
        %1130 = vmatpush1.bf16.msra.mxu0 0
        %1131 = vmatprep.subr.bf16.mxu0 0
        %1132 = vmatpush1.bf16.msra.mxu0 0
        %1133 = vmatprep.subr.bf16.mxu0 0
        %1134 = vmatpush1.bf16.msra.mxu0 0
        %1135 = vmatprep.subr.bf16.mxu0 0
        %1136 = vmatpush1.bf16.msra.mxu0 0
        %1137 = vmatprep.subr.bf16.mxu0 0
        %1138 = vmatpush1.bf16.msra.mxu0 0
        %1139 = vmatprep.subr.bf16.mxu0 0
        %1140 = vmatpush1.bf16.msra.mxu0 0
        %1141 = vmatprep.subr.bf16.mxu0 0
        %1142 = vmatpush1.bf16.msra.mxu0 0
        %1143 = vmatprep.subr.bf16.mxu0 0
        %1144 = vmatpush1.bf16.msra.mxu0 0
        %1145 = vmatprep.subr.bf16.mxu0 0
        %1146 = vmatpush1.bf16.msra.mxu0 0
        %1147 = vmatprep.subr.bf16.mxu0 0
        %1148 = vmatpush1.bf16.msra.mxu0 0
        %1149 = vmatprep.subr.bf16.mxu0 0
        %1150 = vmatpush1.bf16.msra.mxu0 0
        %1151 = vmatprep.mubr.bf16.mxu0 0
        %1152 = vmatmul.mubr.bf16.gmra.mrb[0].mxu0 %v1117
        %v1153 = vpop.f32.mrb[0].mxu0
        %v1154 = vadd.f32 %v1102, %v1153
        %v1155 = vpop.f32.mrb[0].mxu0
        %v1156 = vpop.f32.mrb[0].mxu0
        %v1157 = vpop.f32.mrb[0].mxu0
        %1158 = vdwg.mxu0
        %v1159 = vmax.f32 %v1154, 0.0
        %v1160 = vpack.c.bf16 %v1159, %v1159
        %v1161 = vld [vmem:[%s9] sm:$0xf]
        %v1162 = vld [vmem:[%s9 + $0x4] sm:$0xf]
        %v1163 = vld [vmem:[%s9 + $0x8] sm:$0xf]
        %v1164 = vld [vmem:[%s9 + $0xc] sm:$0xf]
        %v1165 = vld [vmem:[%s9 + $0x10] sm:$0xf]
        %v1166 = vld [vmem:[%s9 + $0x14] sm:$0xf]
        %v1167 = vld [vmem:[%s9 + $0x18] sm:$0xf]
        %v1168 = vld [vmem:[%s9 + $0x1c] sm:$0xf]
        %v1177 = vunpack.c.l.b16 %v1161
        %v1178 = vunpack.c.l.b16 %v1162
        %v1179 = vunpack.c.l.b16 %v1163
        %v1180 = vunpack.c.l.b16 %v1164
        %v1181 = vunpack.c.l.b16 %v1165
        %v1182 = vunpack.c.l.b16 %v1166
        %v1183 = vunpack.c.l.b16 %v1167
        %v1184 = vunpack.c.l.b16 %v1168
        %v1185 = vpack.c.b16 %v1178, %v1177
        %v1186 = vpack.c.b16 %v1180, %v1179
        %v1187 = vpack.c.b16 %v1182, %v1181
        %v1188 = vpack.c.b16 %v1184, %v1183
        %vm1193 = vcmask 523264
        %v1195 = vsel %vm1193, %v1160, 0
        %1197 = vmatprep.subr.bf16.mxu0 0
        %1198 = vmatpush1.bf16.msra.mxu0 %v1185
        %1199 = vmatprep.subr.bf16.mxu0 0
        %1200 = vmatpush1.bf16.msra.mxu0 %v1186
        %1201 = vmatprep.subr.bf16.mxu0 0
        %1202 = vmatpush1.bf16.msra.mxu0 %v1187
        %1203 = vmatprep.subr.bf16.mxu0 0
        %1204 = vmatpush1.bf16.msra.mxu0 %v1188
        %1205 = vmatprep.subr.bf16.mxu0 0
        %1206 = vmatpush1.bf16.msra.mxu0 0
        %1207 = vmatprep.subr.bf16.mxu0 0
        %1208 = vmatpush1.bf16.msra.mxu0 0
        %1209 = vmatprep.subr.bf16.mxu0 0
        %1210 = vmatpush1.bf16.msra.mxu0 0
        %1211 = vmatprep.subr.bf16.mxu0 0
        %1212 = vmatpush1.bf16.msra.mxu0 0
        %1213 = vmatprep.subr.bf16.mxu0 0
        %1214 = vmatpush1.bf16.msra.mxu0 0
        %1215 = vmatprep.subr.bf16.mxu0 0
        %1216 = vmatpush1.bf16.msra.mxu0 0
        %1217 = vmatprep.subr.bf16.mxu0 0
        %1218 = vmatpush1.bf16.msra.mxu0 0
        %1219 = vmatprep.subr.bf16.mxu0 0
        %1220 = vmatpush1.bf16.msra.mxu0 0
        %1221 = vmatprep.subr.bf16.mxu0 0
        %1222 = vmatpush1.bf16.msra.mxu0 0
        %1223 = vmatprep.subr.bf16.mxu0 0
        %1224 = vmatpush1.bf16.msra.mxu0 0
        %1225 = vmatprep.subr.bf16.mxu0 0
        %1226 = vmatpush1.bf16.msra.mxu0 0
        %1227 = vmatprep.subr.bf16.mxu0 0
        %1228 = vmatpush1.bf16.msra.mxu0 0
        %1229 = vmatprep.mubr.bf16.mxu0 0
        %1230 = vmatmul.mubr.bf16.gmra.mrb[0].mxu0 %v1195
        %v1231 = vpop.f32.mrb[0].mxu0
        %v1232 = vadd.f32 0.0, %v1231
        %v1233 = vpop.f32.mrb[0].mxu0
        %v1234 = vpop.f32.mrb[0].mxu0
        %v1235 = vpop.f32.mrb[0].mxu0
        %1236 = vdwg.mxu0
        %v1237 = vadd.f32 %v1091, %v1232
        %v1238 = vld [vmem:[%s10] sm:$0x1]
        %v1240 = vlaneseq
        %v1241 = vshrl.u32 %v1240, 7
        %v1242 = vsub.s32 0, %v1241
        %v1243 = vrot.slane %v1238, %v1242
        %v1245 = vadd.f32 %v1237, %v1243
        %v1246 = vld [vmem:[%s11] sm:$0x1]
        %v1247 = vld [vmem:[%s12] sm:$0x1]
        %v1248 = vsel %vm477, %v1245, 0.0
        %1249 = vadd.xlane.f32.xlu0 %v1248
        %v1250 = vpop.xlane.xlu0 %1249
        %v1251 = vmul.f32 %v1250, 0.03125
        %v1252 = vmul.f32 %v1245, %v1245
        %v1253 = vsel %vm477, %v1252, 0.0
        %1254 = vadd.xlane.f32.xlu0 %v1253
        %v1255 = vpop.xlane.xlu0 %1254
        %v1256 = vmul.f32 %v1255, 0.03125
        %v1257 = vmul.f32 %v1251, %v1251
        %v1258 = vsub.f32 %v1256, %v1257
        %v1259 = vadd.f32 %v1258, 1e-05
        %v1260 = vrsqrt.pop %v1259
        %v1261 = vsub.f32 %v1245, %v1251
        %v1262 = vmul.f32 %v1261, %v1260
        %v1264 = vlaneseq
        %v1265 = vshrl.u32 %v1264, 7
        %v1266 = vsub.s32 0, %v1265
        %v1267 = vrot.slane %v1246, %v1266
        %v1269 = vmul.f32 %v1262, %v1267
        %v1271 = vlaneseq
        %v1272 = vshrl.u32 %v1271, 7
        %v1273 = vsub.s32 0, %v1272
        %v1274 = vrot.slane %v1247, %v1273
        %v1276 = vadd.f32 %v1269, %v1274
        %1277 = vst.msk [vmem:[%s446] sm:$0xff] %vm477, %v1276
        %s1278 = sand.u32 %s314, 1
        %s1279 = scalar_lea.sflag [#allocation5], %s1278
        %s1280 = sand.u32 %s314, 1
        %s1281 = smul.addr %s1280, 8
        %s1282 = scalar_lea.vmem [#allocation6], %s1281
        // Predicated region
        $region77: #{tpu_custom_call.1} parent=71 // pred_check
          %p1283 = pneg %p324
        $region78: #{tpu_custom_call.1} parent=71 // pred_check_branch
          %1285 = sbr.rel (%p1283) target = $region80
        $region79: #{tpu_custom_call.1} parent=71 // pred_region
          %s1287 = ssub.s32 128, 128
          %1288 = vsyncadd %s1279, %s1287
          %s1289 = smul.addr %s28, 128
          %s1290 = scalar_lea.hbm %s13, %s1289
          %s1292 = sshll.u32 %s1282, 4
          %s1293 = int_to_ptr.vmem [resolvable:$true] %s1292
          %1295 = dma.vmem_to_hbm [thread:$0]  %s1293, 128, %s1290, %s1279
        $region80: #{tpu_custom_call.1} parent=71 // pred_fallthru
          _
      $region72: #{tpu_custom_call.1} parent=5 // pred_fallthru
        _
      %p1296 = scmp.le.s32.totalorder 2, %s23
      // Predicated region
      $region81: #{tpu_custom_call.1} parent=5 // pred_check
        %p1297 = pneg %p1296
      $region82: #{tpu_custom_call.1} parent=5 // pred_check_branch
        %1299 = sbr.rel (%p1297) target = $region84
      $region83: #{tpu_custom_call.1} parent=5 // pred_region
        %s1300 = ssub.s32 %s23, 2
        // Predicated region
        $region85: #{tpu_custom_call.1} parent=83 // pred_check
          %p1301 = pneg %p330
        $region86: #{tpu_custom_call.1} parent=83 // pred_check_branch
          %1303 = sbr.rel (%p1301) target = $region88
        $region87: #{tpu_custom_call.1} parent=83 // pred_region
          %s1304 = sand.u32 %s315, 1
          %s1305 = scalar_lea.sflag [#allocation5], %s1304
          %s1306 = sand.u32 %s315, 1
          %s1307 = smul.addr %s1306, 8
          %s1308 = scalar_lea.vmem [#allocation6], %s1307
          %1309 = dma.done %s1305, 128
        $region88: #{tpu_custom_call.1} parent=83 // pred_fallthru
          _
      $region84: #{tpu_custom_call.1} parent=5 // pred_fallthru
        _
    $region6: #{tpu_custom_call.1} parent=1 // loop_footer
      %s27 = sadd.s32 1, %s23
    $region7: #{tpu_custom_call.1} parent=1 // loop_footer_branch
      %22 = sbr.rel target = $region3
    $region8: #{tpu_custom_call.1} parent=1 // loop_exit
      _
    %1310 = vsyncpa [#allocation4], 1
    %s1311 = scalar_lea.sflag [#allocation4], 1
    %1312 = vsyncpa %s1311, 1
    %1313 = vsyncpa [#allocation5], 1
    %s1314 = scalar_lea.sflag [#allocation5], 1
    %1315 = vsyncpa %s1314, 1

</llo_original>
